<compile_context>
chip_gen: v7x
topology: tpu7x:2x2x1
jax: 0.10.0
libtpu: 0.0.40
codegen_flags: <defaults>
</compile_context>

<pallas_src>
import functools

import jax
import jax.numpy as jnp
from jax import lax
from jax.experimental import pallas as pl
from jax.experimental.pallas import tpu as pltpu

GN_GROUPS = 32
GN_EPS = 1e-6


# ----------------------------- fused Pallas kernel -----------------------------

def _attn_block_kernel(x_ref, gmat_ref, colp_ref, wqvT_ref, bqvT_ref,
                       wk_ref, wp_ref, o_ref, *, cg, eps):
    """Fused GroupNorm(32, C) + q/k/v 1x1 conv + softmax attention + proj_out +
    residual for one batch element.

    x_ref:    (1, C, S) f32
    gmat_ref: (C, C)   f32  block-diagonal "same GroupNorm group" ones
    colp_ref: (C, 4)   f32  columns = [gamma, beta, bk, bp]
    wqvT_ref: (C, 2C)  bf16 [wq^T * C^-0.5 | wv^T]
    bqvT_ref: (1, 2C)  f32  [bq * C^-0.5  | bv]
    wk_ref / wp_ref: (C, C) bf16
    """
    f32 = jnp.float32
    bf16 = jnp.bfloat16

    x = x_ref[0].astype(f32)                        # (C, S)
    C, S = x.shape
    inv_n = 1.0 / float(cg * S)

    gamma = colp_ref[:, 0:1]                        # (C, 1)
    beta = colp_ref[:, 1:2]
    bk = colp_ref[:, 2:3]
    bp = colp_ref[:, 3:4]

    # ---- GroupNorm (two-pass mean/var; group stats via tiny block-diag matmuls) ----
    gmat = gmat_ref[...]                            # (C, C) precomputed mask
    row_sum = jnp.sum(x, axis=1, keepdims=True)     # (C, 1) lane reduce
    mean = jnp.dot(gmat, row_sum, preferred_element_type=f32) * inv_n   # (C, 1)
    d = x - mean
    sq_sum = jnp.sum(d * d, axis=1, keepdims=True)                      # (C, 1)
    var = jnp.dot(gmat, sq_sum, preferred_element_type=f32) * inv_n     # (C, 1)
    h = (d * lax.rsqrt(var + eps)) * gamma + beta                       # (C, S) f32

    # ---- attention: bf16 operands, f32 accumulation ----
    hb = h.astype(bf16)                             # (C, S)
    h_t = hb.T                                      # (S, C) XLU transpose (free filler)

    # Fused q/v projection: one (S,C)x(C,2C) matmul fills the 256-wide MXU.
    qv = jnp.dot(h_t, wqvT_ref[...], preferred_element_type=f32) + bqvT_ref[...]   # (S, 2C)
    q_t = qv[:, :C].astype(bf16)                    # (S, C); C^-0.5 pre-folded into wq/bq
    v_t = qv[:, C:].astype(bf16)                    # (S, C)
    k = (jnp.dot(wk_ref[...], hb, preferred_element_type=f32) + bk).astype(bf16)   # (C, S)

    # scores[i, j] = sum_c q[c, i] * k[c, j] * C^-0.5   (scale pre-folded)
    scores = jnp.dot(q_t, k, preferred_element_type=f32)                # (S, S)
    scores = scores - jnp.max(scores, axis=1, keepdims=True)            # softmax over keys
    p = jnp.exp(scores)
    # TODO(synk): on v6e/v7x a bf16 exp may relieve the single EUP slot; keep f32
    # (v5e has no bf16 EUP/VPU) until a bundle dump shows EUP as the binding slot.
    denom = jnp.sum(p, axis=1, keepdims=True)                           # (S, 1)

    # Deferred (flash-style) normalization: scale the (S, C) result, not (S, S).
    attn_t = jnp.dot(p.astype(bf16), v_t, preferred_element_type=f32)   # (S, C)
    attn_t = attn_t * pl.reciprocal(denom, approx=True)
    attn = attn_t.astype(bf16).T                                        # (C, S)

    out = jnp.dot(wp_ref[...], attn, preferred_element_type=f32) + bp   # (C, S)
    o_ref[0] = (x + out).astype(o_ref.dtype)


# ----------------------------- wrapper -----------------------------

def prepare_attn_params(p, compute_dtype=jnp.bfloat16, groups=GN_GROUPS):
    """One-time parameter prep: fold C^-0.5 into the q projection, fuse q/v
    weights into one (C, 2C) operand, pack (C,)-shaped params into one
    lane-dense (C, 4) array, precompute the GroupNorm same-group mask, and
    cast matmul weights to bf16."""
    C = p["q"]["w"].shape[0]
    cg = C // groups
    scale = float(C) ** (-0.5)

    wq = p["q"]["w"].reshape(C, C) * scale
    wv = p["v"]["w"].reshape(C, C)

    gidx = jnp.arange(C, dtype=jnp.int32) // cg
    gmat = (gidx[:, None] == gidx[None, :]).astype(jnp.float32)          # (C, C)

    colp = jnp.stack([p["norm"]["gamma"], p["norm"]["beta"],
                      p["k"]["b"], p["proj_out"]["b"]],
                     axis=1).astype(jnp.float32)                          # (C, 4)

    return {
        "gmat": gmat,
        "colp": colp,
        "wqvT": jnp.concatenate([wq.T, wv.T], axis=1).astype(compute_dtype),      # (C, 2C)
        "bqvT": jnp.concatenate([p["q"]["b"] * scale, p["v"]["b"]]
                                ).reshape(1, 2 * C).astype(jnp.float32),           # (1, 2C)
        "wk": p["k"]["w"].reshape(C, C).astype(compute_dtype),
        "wp": p["proj_out"]["w"].reshape(C, C).astype(compute_dtype),
    }


def _vmem_limit_bytes(C, S):
    """Shape- and generation-aware scoped-VMEM limit."""
    est = (4 * C * S * 4                       # (1,C,S) f32 in + out, double-buffered
           + 2 * (4 * C * C * 2 + C * C * 4)   # bf16 weights + f32 gmat (assume 2 bufs)
           + 3 * S * S * 4                     # scores / exp / bf16 copy of p
           + 12 * C * S * 4                    # h / q / k / v / attn temporaries
           + (2 << 20))                        # compiler-internal scratch slack
    try:
        info = pltpu.get_tpu_info()
        phys = int(getattr(info, "vmem_capacity_bytes", 0)
                   or getattr(info, "vmem_size_bytes", 0)
                   or (64 << 20))
    except Exception:            # query unavailable -> assume smallest (v7x) VMEM
        phys = 64 << 20
    return min(max(est, 32 << 20), (phys * 7) // 8)


def _build_attn_call(B, C, S, dtype, *, groups, eps, single_buffer_weights):
    batch_spec = pl.BlockSpec((1, C, S), lambda b: (b, 0, 0))

    def const_spec(shape):
        kwargs = {}
        if single_buffer_weights:
            # Grid-invariant operands: one buffer is enough (VMEM headroom on v7x).
            kwargs["pipeline_mode"] = pl.Buffered(buffer_count=1)
        return pl.BlockSpec(shape, lambda b: (0, 0), **kwargs)

    in_specs = [
        batch_spec,                    # x
        const_spec((C, C)),            # gmat
        const_spec((C, 4)),            # [gamma | beta | bk | bp]
        const_spec((C, 2 * C)),        # [wq^T * scale | wv^T]
        const_spec((1, 2 * C)),        # [bq * scale | bv]
        const_spec((C, C)),            # wk
        const_spec((C, C)),            # wp
    ]
    kern = functools.partial(_attn_block_kernel, cg=C // groups, eps=eps)

    # TODO(synk): for large S (>= ~2k) add a query-tiled online-softmax inner loop
    # (plus a second "parallel" grid axis so v7x's 2 TensorCores stay busy when B
    # is small/odd) so the (S, S) scores matrix never fully materializes.
    return pl.pallas_call(
        kern,
        out_shape=jax.ShapeDtypeStruct((B, C, S), dtype),
        grid=(B,),
        in_specs=in_specs,
        out_specs=batch_spec,
        input_output_aliases={0: 0},   # residual output reuses x's HBM buffer
        compiler_params=pltpu.CompilerParams(
            dimension_semantics=("parallel",),
            vmem_limit_bytes=_vmem_limit_bytes(C, S),
        ),
    )


def pallas_attn_block(pp, x, *, groups=GN_GROUPS, eps=GN_EPS):
    B, C, S = x.shape
    assert C % groups == 0 and S % 128 == 0, (C, S)
    operands = (x, pp["gmat"], pp["colp"], pp["wqvT"], pp["bqvT"], pp["wk"], pp["wp"])
    try:
        return _build_attn_call(B, C, S, x.dtype, groups=groups, eps=eps,
                                single_buffer_weights=True)(*operands)
    except Exception:
        # Fallback for jax/Mosaic versions without single-buffered pipeline_mode
        # support; identical numerics, weights just get default double-buffering.
        return _build_attn_call(B, C, S, x.dtype, groups=groups, eps=eps,
                                single_buffer_weights=False)(*operands)


# ----------------------------- pure-JAX reference -----------------------------

_HI = lax.Precision.HIGHEST


def ref_attn_block(p, x, *, groups=GN_GROUPS, eps=GN_EPS):
    B, C, S = x.shape
    xg = x.reshape(B, groups, C // groups, S)
    m = xg.mean(axis=(2, 3), keepdims=True)
    v = ((xg - m) ** 2).mean(axis=(2, 3), keepdims=True)
    h = ((xg - m) / jnp.sqrt(v + eps)).reshape(B, C, S)
    h = h * p["norm"]["gamma"][None, :, None] + p["norm"]["beta"][None, :, None]

    def conv1x1(t, w, b):
        return (jnp.einsum("oc,bcs->bos", w.reshape(C, C), t, precision=_HI)
                + b[None, :, None])

    q = conv1x1(h, p["q"]["w"], p["q"]["b"])
    k = conv1x1(h, p["k"]["w"], p["k"]["b"])
    v_ = conv1x1(h, p["v"]["w"], p["v"]["b"])
    w_ = jnp.einsum("bci,bcj->bij", q, k, precision=_HI) * (int(C) ** (-0.5))
    w_ = jax.nn.softmax(w_, axis=2)
    h_ = jnp.einsum("bcj,bij->bci", v_, w_, precision=_HI)
    h_ = conv1x1(h_, p["proj_out"]["w"], p["proj_out"]["b"])
    return x + h_


# ----------------------------- parameter construction -----------------------------

def _conv_params(key, c_in, c_out, ksize):
    kw, kb = jax.random.split(key)
    bound = 1.0 / float(jnp.sqrt(c_in * ksize))
    w = jax.random.uniform(kw, (c_out, c_in, ksize), jnp.float32, -bound, bound)
    b = jax.random.uniform(kb, (c_out,), jnp.float32, -bound, bound)
    return {"w": w, "b": b}


def _norm_params(key, c):
    kg, kb = jax.random.split(key)
    return {"gamma": 1.0 + 0.1 * jax.random.normal(kg, (c,), jnp.float32),
            "beta": 0.1 * jax.random.normal(kb, (c,), jnp.float32)}


def build_attn_params(key, c):
    ks = jax.random.split(key, 5)
    return {"norm": _norm_params(ks[0], c),
            "q": _conv_params(ks[1], c, c, 1),
            "k": _conv_params(ks[2], c, c, 1),
            "v": _conv_params(ks[3], c, c, 1),
            "proj_out": _conv_params(ks[4], c, c, 1)}


# ----------------------------- main -----------------------------

if __name__ == "__main__":
    B, C, S = 2, 128, 256   # C multiple of 32 (GroupNorm groups), S multiple of 128

    key = jax.random.PRNGKey(0)
    pk, xk = jax.random.split(key)
    params = build_attn_params(pk, C)
    x = jax.random.normal(xk, (B, C, S), jnp.float32)

    pp = prepare_attn_params(params)
    # Reference first: the Pallas call aliases x's HBM buffer (input_output_aliases),
    # which donates/invalidates x for any later use.
    y_ref = jax.block_until_ready(ref_attn_block(params, x))
    y = jax.block_until_ready(pallas_attn_block(pp, x))

    assert y.shape == (B, C, S), y.shape
    err = float(jnp.max(jnp.abs(y - y_ref)))
    scale = float(jnp.max(jnp.abs(y_ref)))
    assert err <= 5e-2 * (1.0 + scale), f"mismatch: max|diff|={err}, scale={scale}"
    print("KERNEL_OK")
</pallas_src>

<mosaic_0001>
module attributes {stable_mosaic.version = 11 : i64} {
  func.func @_attn_block_kernel(%arg0: i32, %arg1: memref<1x128x256xf32, #tpu.memory_space<vmem>>, %arg2: memref<128x128xf32, #tpu.memory_space<vmem>>, %arg3: memref<128x4xf32, #tpu.memory_space<vmem>>, %arg4: memref<128x256xbf16, #tpu.memory_space<vmem>>, %arg5: memref<1x256xf32, #tpu.memory_space<vmem>>, %arg6: memref<128x128xbf16, #tpu.memory_space<vmem>>, %arg7: memref<128x128xbf16, #tpu.memory_space<vmem>>, %arg8: memref<1x128x256xf32, #tpu.memory_space<vmem>>) attributes {dimension_semantics = [#tpu.dimension_semantics<parallel>], iteration_bounds = array<i64: 2>, scalar_prefetch = 0 : i64, scratch_operands = 0 : i64, tpu.core_type = #tpu.core_type<tc>, window_params = [{transform_indices = @transform_0, window_bounds = array<i64: 1, 128, 256>}, {pipeline_mode = #tpu.pipeline_mode<synchronous>, transform_indices = @transform_1, window_bounds = array<i64: 128, 128>}, {pipeline_mode = #tpu.pipeline_mode<synchronous>, transform_indices = @transform_2, window_bounds = array<i64: 128, 4>}, {pipeline_mode = #tpu.pipeline_mode<synchronous>, transform_indices = @transform_3, window_bounds = array<i64: 128, 256>}, {pipeline_mode = #tpu.pipeline_mode<synchronous>, transform_indices = @transform_4, window_bounds = array<i64: 1, 256>}, {pipeline_mode = #tpu.pipeline_mode<synchronous>, transform_indices = @transform_5, window_bounds = array<i64: 128, 128>}, {pipeline_mode = #tpu.pipeline_mode<synchronous>, transform_indices = @transform_6, window_bounds = array<i64: 128, 128>}, {transform_indices = @transform_7, window_bounds = array<i64: 1, 128, 256>}]} {
    %c0 = arith.constant 0 : index
    %c0_0 = arith.constant 0 : index
    %c0_1 = arith.constant 0 : index
    %0 = vector.load %arg1[%c0, %c0_0, %c0_1] : memref<1x128x256xf32, #tpu.memory_space<vmem>>, vector<1x128x256xf32>
    %1 = vector.shape_cast %0 : vector<1x128x256xf32> to vector<128x256xf32>
    %c0_2 = arith.constant 0 : index
    %c0_3 = arith.constant 0 : index
    %2 = vector.load %arg3[%c0_2, %c0_3] : memref<128x4xf32, #tpu.memory_space<vmem>>, vector<128x1xf32>
    %c0_4 = arith.constant 0 : index
    %c1 = arith.constant 1 : index
    %3 = vector.load %arg3[%c0_4, %c1] : memref<128x4xf32, #tpu.memory_space<vmem>>, vector<128x1xf32>
    %c0_5 = arith.constant 0 : index
    %c2 = arith.constant 2 : index
    %4 = vector.load %arg3[%c0_5, %c2] : memref<128x4xf32, #tpu.memory_space<vmem>>, vector<128x1xf32>
    %c0_6 = arith.constant 0 : index
    %c3 = arith.constant 3 : index
    %5 = vector.load %arg3[%c0_6, %c3] : memref<128x4xf32, #tpu.memory_space<vmem>>, vector<128x1xf32>
    %c0_7 = arith.constant 0 : index
    %c0_8 = arith.constant 0 : index
    %6 = vector.load %arg2[%c0_7, %c0_8] : memref<128x128xf32, #tpu.memory_space<vmem>>, vector<128x128xf32>
    %cst = arith.constant dense<0.000000e+00> : vector<128xf32>
    %7 = vector.multi_reduction <add>, %1, %cst [1] : vector<128x256xf32> to vector<128xf32>
    %8 = vector.shape_cast %7 : vector<128xf32> to vector<128x1xf32>
    %cst_9 = arith.constant dense<0.000000e+00> : vector<128x1xf32>
    %9 = tpu.matmul %6, %8, %cst_9 {dimension_numbers = #tpu.dot_dimension_numbers<[1], [0], [0], [1], [0, 0, 1, 1], [], []>} : vector<128x128xf32>, vector<128x1xf32>, vector<128x1xf32> -> vector<128x1xf32>
    %cst_10 = arith.constant 9.765625E-4 : f32
    %10 = vector.broadcast %cst_10 : f32 to vector<128x1xf32>
    %11 = arith.mulf %9, %10 : vector<128x1xf32>
    %12 = vector.broadcast %11 : vector<128x1xf32> to vector<128x256xf32>
    %13 = arith.subf %1, %12 : vector<128x256xf32>
    %14 = arith.mulf %13, %13 : vector<128x256xf32>
    %cst_11 = arith.constant dense<0.000000e+00> : vector<128xf32>
    %15 = vector.multi_reduction <add>, %14, %cst_11 [1] : vector<128x256xf32> to vector<128xf32>
    %16 = vector.shape_cast %15 : vector<128xf32> to vector<128x1xf32>
    %cst_12 = arith.constant dense<0.000000e+00> : vector<128x1xf32>
    %17 = tpu.matmul %6, %16, %cst_12 {dimension_numbers = #tpu.dot_dimension_numbers<[1], [0], [0], [1], [0, 0, 1, 1], [], []>} : vector<128x128xf32>, vector<128x1xf32>, vector<128x1xf32> -> vector<128x1xf32>
    %cst_13 = arith.constant 9.765625E-4 : f32
    %18 = vector.broadcast %cst_13 : f32 to vector<128x1xf32>
    %19 = arith.mulf %17, %18 : vector<128x1xf32>
    %cst_14 = arith.constant 9.99999997E-7 : f32
    %20 = vector.broadcast %cst_14 : f32 to vector<128x1xf32>
    %21 = arith.addf %19, %20 : vector<128x1xf32>
    %22 = math.rsqrt %21 : vector<128x1xf32>
    %23 = vector.broadcast %22 : vector<128x1xf32> to vector<128x256xf32>
    %24 = arith.mulf %13, %23 : vector<128x256xf32>
    %25 = vector.broadcast %2 : vector<128x1xf32> to vector<128x256xf32>
    %26 = arith.mulf %24, %25 : vector<128x256xf32>
    %27 = vector.broadcast %3 : vector<128x1xf32> to vector<128x256xf32>
    %28 = arith.addf %26, %27 : vector<128x256xf32>
    %29 = arith.truncf %28 : vector<128x256xf32> to vector<128x256xbf16>
    %30 = tpu.transpose %29, [1, 0] : vector<128x256xbf16> -> vector<256x128xbf16>
    %c0_15 = arith.constant 0 : index
    %c0_16 = arith.constant 0 : index
    %31 = vector.load %arg4[%c0_15, %c0_16] : memref<128x256xbf16, #tpu.memory_space<vmem>>, vector<128x256xbf16>
    %cst_17 = arith.constant dense<0.000000e+00> : vector<256x256xf32>
    %32 = tpu.matmul %30, %31, %cst_17 {dimension_numbers = #tpu.dot_dimension_numbers<[1], [0], [0], [1], [0, 0, 1, 1], [], []>} : vector<256x128xbf16>, vector<128x256xbf16>, vector<256x256xf32> -> vector<256x256xf32>
    %c0_18 = arith.constant 0 : index
    %c0_19 = arith.constant 0 : index
    %33 = vector.load %arg5[%c0_18, %c0_19] : memref<1x256xf32, #tpu.memory_space<vmem>>, vector<1x256xf32>
    %34 = vector.broadcast %33 : vector<1x256xf32> to vector<256x256xf32>
    %35 = arith.addf %32, %34 : vector<256x256xf32>
    %36 = vector.extract_strided_slice %35 {offsets = [0, 0], sizes = [256, 128], strides = [1, 1]} : vector<256x256xf32> to vector<256x128xf32>
    %37 = arith.truncf %36 : vector<256x128xf32> to vector<256x128xbf16>
    %38 = vector.extract_strided_slice %35 {offsets = [0, 128], sizes = [256, 128], strides = [1, 1]} : vector<256x256xf32> to vector<256x128xf32>
    %39 = arith.truncf %38 : vector<256x128xf32> to vector<256x128xbf16>
    %c0_20 = arith.constant 0 : index
    %c0_21 = arith.constant 0 : index
    %40 = vector.load %arg6[%c0_20, %c0_21] : memref<128x128xbf16, #tpu.memory_space<vmem>>, vector<128x128xbf16>
    %cst_22 = arith.constant dense<0.000000e+00> : vector<128x256xf32>
    %41 = tpu.matmul %40, %29, %cst_22 {dimension_numbers = #tpu.dot_dimension_numbers<[1], [0], [0], [1], [0, 0, 1, 1], [], []>} : vector<128x128xbf16>, vector<128x256xbf16>, vector<128x256xf32> -> vector<128x256xf32>
    %42 = vector.broadcast %4 : vector<128x1xf32> to vector<128x256xf32>
    %43 = arith.addf %41, %42 : vector<128x256xf32>
    %44 = arith.truncf %43 : vector<128x256xf32> to vector<128x256xbf16>
    %cst_23 = arith.constant dense<0.000000e+00> : vector<256x256xf32>
    %45 = tpu.matmul %37, %44, %cst_23 {dimension_numbers = #tpu.dot_dimension_numbers<[1], [0], [0], [1], [0, 0, 1, 1], [], []>} : vector<256x128xbf16>, vector<128x256xbf16>, vector<256x256xf32> -> vector<256x256xf32>
    %cst_24 = arith.constant dense<0xFF800000> : vector<256xf32>
    %46 = vector.multi_reduction <maximumf>, %45, %cst_24 [1] : vector<256x256xf32> to vector<256xf32>
    %47 = vector.shape_cast %46 : vector<256xf32> to vector<256x1xf32>
    %48 = vector.broadcast %47 : vector<256x1xf32> to vector<256x256xf32>
    %49 = arith.subf %45, %48 : vector<256x256xf32>
    %50 = math.exp %49 : vector<256x256xf32>
    %cst_25 = arith.constant dense<0.000000e+00> : vector<256xf32>
    %51 = vector.multi_reduction <add>, %50, %cst_25 [1] : vector<256x256xf32> to vector<256xf32>
    %52 = vector.shape_cast %51 : vector<256xf32> to vector<256x1xf32>
    %53 = arith.truncf %50 : vector<256x256xf32> to vector<256x256xbf16>
    %cst_26 = arith.constant dense<0.000000e+00> : vector<256x128xf32>
    %54 = tpu.matmul %53, %39, %cst_26 {dimension_numbers = #tpu.dot_dimension_numbers<[1], [0], [0], [1], [0, 0, 1, 1], [], []>} : vector<256x256xbf16>, vector<256x128xbf16>, vector<256x128xf32> -> vector<256x128xf32>
    %55 = tpu.reciprocal %52 {approx = true} : vector<256x1xf32> -> vector<256x1xf32>
    %56 = vector.broadcast %55 : vector<256x1xf32> to vector<256x128xf32>
    %57 = arith.mulf %54, %56 : vector<256x128xf32>
    %58 = arith.truncf %57 : vector<256x128xf32> to vector<256x128xbf16>
    %59 = tpu.transpose %58, [1, 0] : vector<256x128xbf16> -> vector<128x256xbf16>
    %c0_27 = arith.constant 0 : index
    %c0_28 = arith.constant 0 : index
    %60 = vector.load %arg7[%c0_27, %c0_28] : memref<128x128xbf16, #tpu.memory_space<vmem>>, vector<128x128xbf16>
    %cst_29 = arith.constant dense<0.000000e+00> : vector<128x256xf32>
    %61 = tpu.matmul %60, %59, %cst_29 {dimension_numbers = #tpu.dot_dimension_numbers<[1], [0], [0], [1], [0, 0, 1, 1], [], []>} : vector<128x128xbf16>, vector<128x256xbf16>, vector<128x256xf32> -> vector<128x256xf32>
    %62 = vector.broadcast %5 : vector<128x1xf32> to vector<128x256xf32>
    %63 = arith.addf %61, %62 : vector<128x256xf32>
    %64 = arith.addf %1, %63 : vector<128x256xf32>
    %c0_30 = arith.constant 0 : index
    %c0_31 = arith.constant 0 : index
    %c0_32 = arith.constant 0 : index
    %65 = vector.load %arg8[%c0_30, %c0_31, %c0_32] : memref<1x128x256xf32, #tpu.memory_space<vmem>>, vector<1x128x256xf32>
    %66 = vector.shape_cast %65 : vector<1x128x256xf32> to vector<128x256xf32>
    %67 = vector.shape_cast %64 : vector<128x256xf32> to vector<1x128x256xf32>
    tpu.vector_store %arg8[%c0_30, %c0_31, %c0_32], %67 {strides = array<i32>} : memref<1x128x256xf32, #tpu.memory_space<vmem>>, vector<1x128x256xf32>,
    return
  }
  func.func @transform_0(%arg0: i32) -> (i32, i32, i32) {
    %c0_i32 = arith.constant 0 : i32
    %c0_i32_0 = arith.constant 0 : i32
    %c0_i32_1 = arith.constant 0 : i32
    return %arg0, %c0_i32, %c0_i32_0 : i32, i32, i32
  }
  func.func @transform_1(%arg0: i32) -> (i32, i32) {
    %c0_i32 = arith.constant 0 : i32
    %c0_i32_0 = arith.constant 0 : i32
    %c0_i32_1 = arith.constant 0 : i32
    return %c0_i32, %c0_i32_0 : i32, i32
  }
  func.func @transform_2(%arg0: i32) -> (i32, i32) {
    %c0_i32 = arith.constant 0 : i32
    %c0_i32_0 = arith.constant 0 : i32
    %c0_i32_1 = arith.constant 0 : i32
    return %c0_i32, %c0_i32_0 : i32, i32
  }
  func.func @transform_3(%arg0: i32) -> (i32, i32) {
    %c0_i32 = arith.constant 0 : i32
    %c0_i32_0 = arith.constant 0 : i32
    %c0_i32_1 = arith.constant 0 : i32
    return %c0_i32, %c0_i32_0 : i32, i32
  }
  func.func @transform_4(%arg0: i32) -> (i32, i32) {
    %c0_i32 = arith.constant 0 : i32
    %c0_i32_0 = arith.constant 0 : i32
    %c0_i32_1 = arith.constant 0 : i32
    return %c0_i32, %c0_i32_0 : i32, i32
  }
  func.func @transform_5(%arg0: i32) -> (i32, i32) {
    %c0_i32 = arith.constant 0 : i32
    %c0_i32_0 = arith.constant 0 : i32
    %c0_i32_1 = arith.constant 0 : i32
    return %c0_i32, %c0_i32_0 : i32, i32
  }
  func.func @transform_6(%arg0: i32) -> (i32, i32) {
    %c0_i32 = arith.constant 0 : i32
    %c0_i32_0 = arith.constant 0 : i32
    %c0_i32_1 = arith.constant 0 : i32
    return %c0_i32, %c0_i32_0 : i32, i32
  }
  func.func @transform_7(%arg0: i32) -> (i32, i32, i32) {
    %c0_i32 = arith.constant 0 : i32
    %c0_i32_0 = arith.constant 0 : i32
    %c0_i32_1 = arith.constant 0 : i32
    return %arg0, %c0_i32, %c0_i32_0 : i32, i32, i32
  }
}

module attributes {stable_mosaic.version = 11 : i64} {
  func.func @_attn_block_kernel(%arg0: i32, %arg1: memref<1x128x256xf32, #tpu.memory_space<vmem>>, %arg2: memref<128x128xf32, #tpu.memory_space<vmem>>, %arg3: memref<128x4xf32, #tpu.memory_space<vmem>>, %arg4: memref<128x256xbf16, #tpu.memory_space<vmem>>, %arg5: memref<1x256xf32, #tpu.memory_space<vmem>>, %arg6: memref<128x128xbf16, #tpu.memory_space<vmem>>, %arg7: memref<128x128xbf16, #tpu.memory_space<vmem>>, %arg8: memref<1x128x256xf32, #tpu.memory_space<vmem>>) attributes {dimension_semantics = [#tpu.dimension_semantics<parallel>], iteration_bounds = array<i64: 2>, scalar_prefetch = 0 : i64, scratch_operands = 0 : i64, tpu.core_type = #tpu.core_type<tc>, window_params = [{transform_indices = @transform_0, window_bounds = array<i64: 1, 128, 256>}, {pipeline_mode = #tpu.pipeline_mode<synchronous>, transform_indices = @transform_1, window_bounds = array<i64: 128, 128>}, {pipeline_mode = #tpu.pipeline_mode<synchronous>, transform_indices = @transform_2, window_bounds = array<i64: 128, 4>}, {pipeline_mode = #tpu.pipeline_mode<synchronous>, transform_indices = @transform_3, window_bounds = array<i64: 128, 256>}, {pipeline_mode = #tpu.pipeline_mode<synchronous>, transform_indices = @transform_4, window_bounds = array<i64: 1, 256>}, {pipeline_mode = #tpu.pipeline_mode<synchronous>, transform_indices = @transform_5, window_bounds = array<i64: 128, 128>}, {pipeline_mode = #tpu.pipeline_mode<synchronous>, transform_indices = @transform_6, window_bounds = array<i64: 128, 128>}, {transform_indices = @transform_7, window_bounds = array<i64: 1, 128, 256>}]} {
    %c0 = arith.constant 0 : index
    %c0_0 = arith.constant 0 : index
    %c0_1 = arith.constant 0 : index
    %0 = vector.load %arg1[%c0, %c0_0, %c0_1] : memref<1x128x256xf32, #tpu.memory_space<vmem>>, vector<1x128x256xf32>
    %1 = vector.shape_cast %0 : vector<1x128x256xf32> to vector<128x256xf32>
    %c0_2 = arith.constant 0 : index
    %c0_3 = arith.constant 0 : index
    %2 = vector.load %arg3[%c0_2, %c0_3] : memref<128x4xf32, #tpu.memory_space<vmem>>, vector<128x1xf32>
    %c0_4 = arith.constant 0 : index
    %c1 = arith.constant 1 : index
    %3 = vector.load %arg3[%c0_4, %c1] : memref<128x4xf32, #tpu.memory_space<vmem>>, vector<128x1xf32>
    %c0_5 = arith.constant 0 : index
    %c2 = arith.constant 2 : index
    %4 = vector.load %arg3[%c0_5, %c2] : memref<128x4xf32, #tpu.memory_space<vmem>>, vector<128x1xf32>
    %c0_6 = arith.constant 0 : index
    %c3 = arith.constant 3 : index
    %5 = vector.load %arg3[%c0_6, %c3] : memref<128x4xf32, #tpu.memory_space<vmem>>, vector<128x1xf32>
    %c0_7 = arith.constant 0 : index
    %c0_8 = arith.constant 0 : index
    %6 = vector.load %arg2[%c0_7, %c0_8] : memref<128x128xf32, #tpu.memory_space<vmem>>, vector<128x128xf32>
    %cst = arith.constant dense<0.000000e+00> : vector<128xf32>
    %7 = vector.multi_reduction <add>, %1, %cst [1] : vector<128x256xf32> to vector<128xf32>
    %8 = vector.shape_cast %7 : vector<128xf32> to vector<128x1xf32>
    %cst_9 = arith.constant dense<0.000000e+00> : vector<128x1xf32>
    %9 = tpu.matmul %6, %8, %cst_9 {dimension_numbers = #tpu.dot_dimension_numbers<[1], [0], [0], [1], [0, 0, 1, 1], [], []>} : vector<128x128xf32>, vector<128x1xf32>, vector<128x1xf32> -> vector<128x1xf32>
    %cst_10 = arith.constant 9.765625E-4 : f32
    %10 = vector.broadcast %cst_10 : f32 to vector<128x1xf32>
    %11 = arith.mulf %9, %10 : vector<128x1xf32>
    %12 = vector.broadcast %11 : vector<128x1xf32> to vector<128x256xf32>
    %13 = arith.subf %1, %12 : vector<128x256xf32>
    %14 = arith.mulf %13, %13 : vector<128x256xf32>
    %cst_11 = arith.constant dense<0.000000e+00> : vector<128xf32>
    %15 = vector.multi_reduction <add>, %14, %cst_11 [1] : vector<128x256xf32> to vector<128xf32>
    %16 = vector.shape_cast %15 : vector<128xf32> to vector<128x1xf32>
    %cst_12 = arith.constant dense<0.000000e+00> : vector<128x1xf32>
    %17 = tpu.matmul %6, %16, %cst_12 {dimension_numbers = #tpu.dot_dimension_numbers<[1], [0], [0], [1], [0, 0, 1, 1], [], []>} : vector<128x128xf32>, vector<128x1xf32>, vector<128x1xf32> -> vector<128x1xf32>
    %cst_13 = arith.constant 9.765625E-4 : f32
    %18 = vector.broadcast %cst_13 : f32 to vector<128x1xf32>
    %19 = arith.mulf %17, %18 : vector<128x1xf32>
    %cst_14 = arith.constant 9.99999997E-7 : f32
    %20 = vector.broadcast %cst_14 : f32 to vector<128x1xf32>
    %21 = arith.addf %19, %20 : vector<128x1xf32>
    %22 = math.rsqrt %21 : vector<128x1xf32>
    %23 = vector.broadcast %22 : vector<128x1xf32> to vector<128x256xf32>
    %24 = arith.mulf %13, %23 : vector<128x256xf32>
    %25 = vector.broadcast %2 : vector<128x1xf32> to vector<128x256xf32>
    %26 = arith.mulf %24, %25 : vector<128x256xf32>
    %27 = vector.broadcast %3 : vector<128x1xf32> to vector<128x256xf32>
    %28 = arith.addf %26, %27 : vector<128x256xf32>
    %29 = arith.truncf %28 : vector<128x256xf32> to vector<128x256xbf16>
    %30 = tpu.transpose %29, [1, 0] : vector<128x256xbf16> -> vector<256x128xbf16>
    %c0_15 = arith.constant 0 : index
    %c0_16 = arith.constant 0 : index
    %31 = vector.load %arg4[%c0_15, %c0_16] : memref<128x256xbf16, #tpu.memory_space<vmem>>, vector<128x256xbf16>
    %cst_17 = arith.constant dense<0.000000e+00> : vector<256x256xf32>
    %32 = tpu.matmul %30, %31, %cst_17 {dimension_numbers = #tpu.dot_dimension_numbers<[1], [0], [0], [1], [0, 0, 1, 1], [], []>} : vector<256x128xbf16>, vector<128x256xbf16>, vector<256x256xf32> -> vector<256x256xf32>
    %c0_18 = arith.constant 0 : index
    %c0_19 = arith.constant 0 : index
    %33 = vector.load %arg5[%c0_18, %c0_19] : memref<1x256xf32, #tpu.memory_space<vmem>>, vector<1x256xf32>
    %34 = vector.broadcast %33 : vector<1x256xf32> to vector<256x256xf32>
    %35 = arith.addf %32, %34 : vector<256x256xf32>
    %36 = vector.extract_strided_slice %35 {offsets = [0, 0], sizes = [256, 128], strides = [1, 1]} : vector<256x256xf32> to vector<256x128xf32>
    %37 = arith.truncf %36 : vector<256x128xf32> to vector<256x128xbf16>
    %38 = vector.extract_strided_slice %35 {offsets = [0, 128], sizes = [256, 128], strides = [1, 1]} : vector<256x256xf32> to vector<256x128xf32>
    %39 = arith.truncf %38 : vector<256x128xf32> to vector<256x128xbf16>
    %c0_20 = arith.constant 0 : index
    %c0_21 = arith.constant 0 : index
    %40 = vector.load %arg6[%c0_20, %c0_21] : memref<128x128xbf16, #tpu.memory_space<vmem>>, vector<128x128xbf16>
    %cst_22 = arith.constant dense<0.000000e+00> : vector<128x256xf32>
    %41 = tpu.matmul %40, %29, %cst_22 {dimension_numbers = #tpu.dot_dimension_numbers<[1], [0], [0], [1], [0, 0, 1, 1], [], []>} : vector<128x128xbf16>, vector<128x256xbf16>, vector<128x256xf32> -> vector<128x256xf32>
    %42 = vector.broadcast %4 : vector<128x1xf32> to vector<128x256xf32>
    %43 = arith.addf %41, %42 : vector<128x256xf32>
    %44 = arith.truncf %43 : vector<128x256xf32> to vector<128x256xbf16>
    %cst_23 = arith.constant dense<0.000000e+00> : vector<256x256xf32>
    %45 = tpu.matmul %37, %44, %cst_23 {dimension_numbers = #tpu.dot_dimension_numbers<[1], [0], [0], [1], [0, 0, 1, 1], [], []>} : vector<256x128xbf16>, vector<128x256xbf16>, vector<256x256xf32> -> vector<256x256xf32>
    %cst_24 = arith.constant dense<0xFF800000> : vector<256xf32>
    %46 = vector.multi_reduction <maximumf>, %45, %cst_24 [1] : vector<256x256xf32> to vector<256xf32>
    %47 = vector.shape_cast %46 : vector<256xf32> to vector<256x1xf32>
    %48 = vector.broadcast %47 : vector<256x1xf32> to vector<256x256xf32>
    %49 = arith.subf %45, %48 : vector<256x256xf32>
    %50 = math.exp %49 : vector<256x256xf32>
    %cst_25 = arith.constant dense<0.000000e+00> : vector<256xf32>
    %51 = vector.multi_reduction <add>, %50, %cst_25 [1] : vector<256x256xf32> to vector<256xf32>
    %52 = vector.shape_cast %51 : vector<256xf32> to vector<256x1xf32>
    %53 = arith.truncf %50 : vector<256x256xf32> to vector<256x256xbf16>
    %cst_26 = arith.constant dense<0.000000e+00> : vector<256x128xf32>
    %54 = tpu.matmul %53, %39, %cst_26 {dimension_numbers = #tpu.dot_dimension_numbers<[1], [0], [0], [1], [0, 0, 1, 1], [], []>} : vector<256x256xbf16>, vector<256x128xbf16>, vector<256x128xf32> -> vector<256x128xf32>
    %55 = tpu.reciprocal %52 {approx = true} : vector<256x1xf32> -> vector<256x1xf32>
    %56 = vector.broadcast %55 : vector<256x1xf32> to vector<256x128xf32>
    %57 = arith.mulf %54, %56 : vector<256x128xf32>
    %58 = arith.truncf %57 : vector<256x128xf32> to vector<256x128xbf16>
    %59 = tpu.transpose %58, [1, 0] : vector<256x128xbf16> -> vector<128x256xbf16>
    %c0_27 = arith.constant 0 : index
    %c0_28 = arith.constant 0 : index
    %60 = vector.load %arg7[%c0_27, %c0_28] : memref<128x128xbf16, #tpu.memory_space<vmem>>, vector<128x128xbf16>
    %cst_29 = arith.constant dense<0.000000e+00> : vector<128x256xf32>
    %61 = tpu.matmul %60, %59, %cst_29 {dimension_numbers = #tpu.dot_dimension_numbers<[1], [0], [0], [1], [0, 0, 1, 1], [], []>} : vector<128x128xbf16>, vector<128x256xbf16>, vector<128x256xf32> -> vector<128x256xf32>
    %62 = vector.broadcast %5 : vector<128x1xf32> to vector<128x256xf32>
    %63 = arith.addf %61, %62 : vector<128x256xf32>
    %64 = arith.addf %1, %63 : vector<128x256xf32>
    %c0_30 = arith.constant 0 : index
    %c0_31 = arith.constant 0 : index
    %c0_32 = arith.constant 0 : index
    %65 = vector.load %arg8[%c0_30, %c0_31, %c0_32] : memref<1x128x256xf32, #tpu.memory_space<vmem>>, vector<1x128x256xf32>
    %66 = vector.shape_cast %65 : vector<1x128x256xf32> to vector<128x256xf32>
    %67 = vector.shape_cast %64 : vector<128x256xf32> to vector<1x128x256xf32>
    tpu.vector_store %arg8[%c0_30, %c0_31, %c0_32], %67 {strides = array<i32>} : memref<1x128x256xf32, #tpu.memory_space<vmem>>, vector<1x128x256xf32>,
    return
  }
  func.func @transform_0(%arg0: i32) -> (i32, i32, i32) {
    %c0_i32 = arith.constant 0 : i32
    %c0_i32_0 = arith.constant 0 : i32
    %c0_i32_1 = arith.constant 0 : i32
    return %arg0, %c0_i32, %c0_i32_0 : i32, i32, i32
  }
  func.func @transform_1(%arg0: i32) -> (i32, i32) {
    %c0_i32 = arith.constant 0 : i32
    %c0_i32_0 = arith.constant 0 : i32
    %c0_i32_1 = arith.constant 0 : i32
    return %c0_i32, %c0_i32_0 : i32, i32
  }
  func.func @transform_2(%arg0: i32) -> (i32, i32) {
    %c0_i32 = arith.constant 0 : i32
    %c0_i32_0 = arith.constant 0 : i32
    %c0_i32_1 = arith.constant 0 : i32
    return %c0_i32, %c0_i32_0 : i32, i32
  }
  func.func @transform_3(%arg0: i32) -> (i32, i32) {
    %c0_i32 = arith.constant 0 : i32
    %c0_i32_0 = arith.constant 0 : i32
    %c0_i32_1 = arith.constant 0 : i32
    return %c0_i32, %c0_i32_0 : i32, i32
  }
  func.func @transform_4(%arg0: i32) -> (i32, i32) {
    %c0_i32 = arith.constant 0 : i32
    %c0_i32_0 = arith.constant 0 : i32
    %c0_i32_1 = arith.constant 0 : i32
    return %c0_i32, %c0_i32_0 : i32, i32
  }
  func.func @transform_5(%arg0: i32) -> (i32, i32) {
    %c0_i32 = arith.constant 0 : i32
    %c0_i32_0 = arith.constant 0 : i32
    %c0_i32_1 = arith.constant 0 : i32
    return %c0_i32, %c0_i32_0 : i32, i32
  }
  func.func @transform_6(%arg0: i32) -> (i32, i32) {
    %c0_i32 = arith.constant 0 : i32
    %c0_i32_0 = arith.constant 0 : i32
    %c0_i32_1 = arith.constant 0 : i32
    return %c0_i32, %c0_i32_0 : i32, i32
  }
  func.func @transform_7(%arg0: i32) -> (i32, i32, i32) {
    %c0_i32 = arith.constant 0 : i32
    %c0_i32_0 = arith.constant 0 : i32
    %c0_i32_1 = arith.constant 0 : i32
    return %arg0, %c0_i32, %c0_i32_0 : i32, i32, i32
  }
}

</mosaic_0001>

<llo_original>
// kernel: tpu_custom_call.1
$region0: #{tpu_custom_call.1}
  #allocation0 [shape = 'u32[]', space=smem, size = 0x4, offset = 0x4, fixed_abs, tag = 'smem constant byte address 0x4 - core index']
  #allocation1 [shape = 'u32[144,128]{1,0:T(1,128)}', space=vmem, size = 0x12000, scoped, tag = 'internal scratch']
  %s0 = inlined_call_operand.hbm [shape: f32[2,128,256], index: 0, kind: input, shape index: {}, may-alias: {0,7}]
  %s1 = inlined_call_operand.vmem [shape: f32[128,128], index: 1, kind: input, shape index: {}]
  %s2 = inlined_call_operand.vmem [shape: f32[128,4], index: 2, kind: input, shape index: {}]
  %s3 = inlined_call_operand.vmem [shape: bf16[128,256], index: 3, kind: input, shape index: {}]
  %s4 = inlined_call_operand.vmem [shape: f32[1,256], index: 4, kind: input, shape index: {}]
  %s5 = inlined_call_operand.vmem [shape: bf16[128,128], index: 5, kind: input, shape index: {}]
  %s6 = inlined_call_operand.vmem [shape: bf16[128,128], index: 6, kind: input, shape index: {}]
  %s7 = inlined_call_operand.hbm [shape: f32[2,128,256], index: 7, kind: output, shape index: {}, may-alias: {0,7}]
  %s8 = sld [smem:[#allocation0]]
  $region65: #{tpu_custom_call.1} parent=0
    _
  %s10 = ssub.s32 1, %s8
  %s11 = scalar_select 0, %s10, %s8
  $region1: #{tpu_custom_call.1} parent=0
    #allocation2 [shape = 'u8[262144]{0}', space=vmem, size = 0x40000, scoped, tag = 'input window, operand 0']
    #allocation3 [shape = 's32[2]{0}', space=sflag, size = 0x8, scoped, tag = 'scoped memory for tpu_custom_call.1']
    #allocation4 [shape = 's32[2]{0}', space=sflag, size = 0x8, scoped, tag = 'scoped memory for tpu_custom_call.1']
    #allocation5 [shape = 'u8[262144]{0}', space=vmem, size = 0x40000, scoped, tag = 'output window, operand 0']
    %12 = vsyncpa [#allocation3], 0
    %s13 = scalar_lea.sflag [#allocation3], 1
    %14 = vsyncpa %s13, 0
    %15 = vsyncpa [#allocation4], 0
    %s16 = scalar_lea.sflag [#allocation4], 1
    %17 = vsyncpa %s16, 0
    loop: start=0, step=1, limit=4
    $region2: #{tpu_custom_call.1} parent=1 // loop_pre_header
      _
    $region3: #{tpu_custom_call.1} parent=1 // loop_header
      %s19 = sphi 0, %s23
      %p20 = scmp.ge.s32.totalorder %s19, 4
      %s29 = sphi 0, %s31
      %s32 = sphi 0, %s29
      %s33 = sphi 0, %s32
      %s49 = sphi 0, %s33
      %s53 = sphi 0, %s53
      %s55 = sphi 0, %s53
      %s56 = sphi 0, %s55
      %s70 = sphi 0, %s56
      %s74 = sphi 0, %s74
      %s76 = sphi 0, %s74
      %s77 = sphi 0, %s76
      %s91 = sphi 0, %s77
      %s95 = sphi 0, %s95
      %s97 = sphi 0, %s95
      %s98 = sphi 0, %s97
      %s112 = sphi 0, %s98
      %s116 = sphi 0, %s116
      %s118 = sphi 0, %s116
      %s119 = sphi 0, %s118
      %s133 = sphi 0, %s119
      %s137 = sphi 0, %s137
      %s139 = sphi 0, %s137
      %s140 = sphi 0, %s139
      %s154 = sphi 0, %s140
      %s158 = sphi 0, %s158
      %s160 = sphi 0, %s158
      %s161 = sphi 0, %s160
      %s175 = sphi 0, %s161
      %s181 = sphi 0, %s183
      %s184 = sphi 0, %s181
      %s185 = sphi 0, %s184
      %s201 = sphi 0, %s185
    $region4: #{tpu_custom_call.1} parent=1 // loop_header_branch
      %22 = sbr.rel (%p20) target = $region8
    $region5: #{tpu_custom_call.1} parent=1 // loop_body
      %s24 = ssub.s32 %s19, 1
      %s25 = ssub.s32 %s19, 2
      %s26 = sadd.s32 %s19, 1
      %s27 = ssub.s32 %s19, %s26
      %p28 = scmp.eq.s32.totalorder %s27, 0
      %s30 = sadd.s32 %s29, 1
      %s31 = scalar_select %p28, %s29, %s30
      %p34 = pneg %p28
      %p35 = scmp.eq.s32.totalorder %s19, 1
      %p36 = por %p34, %p35
      %p37 = scmp.ne.s32.totalorder %s29, %s32
      %p38 = scmp.eq.s32.totalorder %s19, 0
      %p39 = por %p37, %p38
      %p40 = scmp.ne.s32.totalorder %s29, %s32
      %p41 = scmp.eq.s32.totalorder %s24, 1
      %p42 = por %p40, %p41
      %p43 = scmp.ne.s32.totalorder %s32, %s33
      %p44 = scmp.eq.s32.totalorder %s24, 0
      %p45 = por %p43, %p44
      %p46 = scmp.ne.s32.totalorder %s32, %s33
      %p47 = scmp.eq.s32.totalorder %s25, 1
      %p48 = por %p46, %p47
      %p50 = scmp.ne.s32.totalorder %s33, %s49
      %p51 = scmp.eq.s32.totalorder %s25, 0
      %p52 = por %p50, %p51
      %s54 = sadd.s32 %s53, 1
      %p57 = scmp.eq.s32.totalorder %s19, 1
      %p58 = scmp.ne.s32.totalorder %s53, %s55
      %p59 = scmp.eq.s32.totalorder %s19, 0
      %p60 = por %p58, %p59
      %p61 = scmp.ne.s32.totalorder %s53, %s55
      %p62 = scmp.eq.s32.totalorder %s24, 1
      %p63 = por %p61, %p62
      %p64 = scmp.ne.s32.totalorder %s55, %s56
      %p65 = scmp.eq.s32.totalorder %s24, 0
      %p66 = por %p64, %p65
      %p67 = scmp.ne.s32.totalorder %s55, %s56
      %p68 = scmp.eq.s32.totalorder %s25, 1
      %p69 = por %p67, %p68
      %p71 = scmp.ne.s32.totalorder %s56, %s70
      %p72 = scmp.eq.s32.totalorder %s25, 0
      %p73 = por %p71, %p72
      %s75 = sadd.s32 %s74, 1
      %p78 = scmp.eq.s32.totalorder %s19, 1
      %p79 = scmp.ne.s32.totalorder %s74, %s76
      %p80 = scmp.eq.s32.totalorder %s19, 0
      %p81 = por %p79, %p80
      %p82 = scmp.ne.s32.totalorder %s74, %s76
      %p83 = scmp.eq.s32.totalorder %s24, 1
      %p84 = por %p82, %p83
      %p85 = scmp.ne.s32.totalorder %s76, %s77
      %p86 = scmp.eq.s32.totalorder %s24, 0
      %p87 = por %p85, %p86
      %p88 = scmp.ne.s32.totalorder %s76, %s77
      %p89 = scmp.eq.s32.totalorder %s25, 1
      %p90 = por %p88, %p89
      %p92 = scmp.ne.s32.totalorder %s77, %s91
      %p93 = scmp.eq.s32.totalorder %s25, 0
      %p94 = por %p92, %p93
      %s96 = sadd.s32 %s95, 1
      %p99 = scmp.eq.s32.totalorder %s19, 1
      %p100 = scmp.ne.s32.totalorder %s95, %s97
      %p101 = scmp.eq.s32.totalorder %s19, 0
      %p102 = por %p100, %p101
      %p103 = scmp.ne.s32.totalorder %s95, %s97
      %p104 = scmp.eq.s32.totalorder %s24, 1
      %p105 = por %p103, %p104
      %p106 = scmp.ne.s32.totalorder %s97, %s98
      %p107 = scmp.eq.s32.totalorder %s24, 0
      %p108 = por %p106, %p107
      %p109 = scmp.ne.s32.totalorder %s97, %s98
      %p110 = scmp.eq.s32.totalorder %s25, 1
      %p111 = por %p109, %p110
      %p113 = scmp.ne.s32.totalorder %s98, %s112
      %p114 = scmp.eq.s32.totalorder %s25, 0
      %p115 = por %p113, %p114
      %s117 = sadd.s32 %s116, 1
      %p120 = scmp.eq.s32.totalorder %s19, 1
      %p121 = scmp.ne.s32.totalorder %s116, %s118
      %p122 = scmp.eq.s32.totalorder %s19, 0
      %p123 = por %p121, %p122
      %p124 = scmp.ne.s32.totalorder %s116, %s118
      %p125 = scmp.eq.s32.totalorder %s24, 1
      %p126 = por %p124, %p125
      %p127 = scmp.ne.s32.totalorder %s118, %s119
      %p128 = scmp.eq.s32.totalorder %s24, 0
      %p129 = por %p127, %p128
      %p130 = scmp.ne.s32.totalorder %s118, %s119
      %p131 = scmp.eq.s32.totalorder %s25, 1
      %p132 = por %p130, %p131
      %p134 = scmp.ne.s32.totalorder %s119, %s133
      %p135 = scmp.eq.s32.totalorder %s25, 0
      %p136 = por %p134, %p135
      %s138 = sadd.s32 %s137, 1
      %p141 = scmp.eq.s32.totalorder %s19, 1
      %p142 = scmp.ne.s32.totalorder %s137, %s139
      %p143 = scmp.eq.s32.totalorder %s19, 0
      %p144 = por %p142, %p143
      %p145 = scmp.ne.s32.totalorder %s137, %s139
      %p146 = scmp.eq.s32.totalorder %s24, 1
      %p147 = por %p145, %p146
      %p148 = scmp.ne.s32.totalorder %s139, %s140
      %p149 = scmp.eq.s32.totalorder %s24, 0
      %p150 = por %p148, %p149
      %p151 = scmp.ne.s32.totalorder %s139, %s140
      %p152 = scmp.eq.s32.totalorder %s25, 1
      %p153 = por %p151, %p152
      %p155 = scmp.ne.s32.totalorder %s140, %s154
      %p156 = scmp.eq.s32.totalorder %s25, 0
      %p157 = por %p155, %p156
      %s159 = sadd.s32 %s158, 1
      %p162 = scmp.eq.s32.totalorder %s19, 1
      %p163 = scmp.ne.s32.totalorder %s158, %s160
      %p164 = scmp.eq.s32.totalorder %s19, 0
      %p165 = por %p163, %p164
      %p166 = scmp.ne.s32.totalorder %s158, %s160
      %p167 = scmp.eq.s32.totalorder %s24, 1
      %p168 = por %p166, %p167
      %p169 = scmp.ne.s32.totalorder %s160, %s161
      %p170 = scmp.eq.s32.totalorder %s24, 0
      %p171 = por %p169, %p170
      %p172 = scmp.ne.s32.totalorder %s160, %s161
      %p173 = scmp.eq.s32.totalorder %s25, 1
      %p174 = por %p172, %p173
      %p176 = scmp.ne.s32.totalorder %s161, %s175
      %p177 = scmp.eq.s32.totalorder %s25, 0
      %p178 = por %p176, %p177
      %s179 = ssub.s32 %s19, %s26
      %p180 = scmp.eq.s32.totalorder %s179, 0
      %s182 = sadd.s32 %s181, 1
      %s183 = scalar_select %p180, %s181, %s182
      %p186 = pneg %p180
      %p187 = scmp.eq.s32.totalorder %s19, 1
      %p188 = por %p186, %p187
      %p189 = scmp.ne.s32.totalorder %s181, %s184
      %p190 = scmp.eq.s32.totalorder %s19, 0
      %p191 = por %p189, %p190
      %p192 = scmp.ne.s32.totalorder %s181, %s184
      %p193 = scmp.eq.s32.totalorder %s24, 1
      %p194 = por %p192, %p193
      %p195 = scmp.ne.s32.totalorder %s184, %s185
      %p196 = scmp.eq.s32.totalorder %s24, 0
      %p197 = por %p195, %p196
      %p198 = scmp.ne.s32.totalorder %s184, %s185
      %p199 = scmp.eq.s32.totalorder %s25, 1
      %p200 = por %p198, %p199
      %p202 = scmp.ne.s32.totalorder %s185, %s201
      %p203 = scmp.eq.s32.totalorder %s25, 0
      %p204 = por %p202, %p203
      %p205 = scmp.le.s32.totalorder 1, %s19
      %p206 = scmp.lt.s32.totalorder %s19, 3
      %p207 = pnand %p205, %p206
      %p208 = pneg %p207
      // Predicated region
      $region9: #{tpu_custom_call.1} parent=5 // pred_check
        _
      $region10: #{tpu_custom_call.1} parent=5 // pred_check_branch
        %210 = sbr.rel (%p207) target = $region12
      $region11: #{tpu_custom_call.1} parent=5 // pred_region
        %s211 = ssub.s32 %s19, 1
        // Predicated region
        $region13: #{tpu_custom_call.1} parent=11 // pred_check
          %p212 = pneg %p66
        $region14: #{tpu_custom_call.1} parent=11 // pred_check_branch
          %214 = sbr.rel (%p212) target = $region16
        $region15: #{tpu_custom_call.1} parent=11 // pred_region
          _
        $region16: #{tpu_custom_call.1} parent=11 // pred_fallthru
          _
        // Predicated region
        $region17: #{tpu_custom_call.1} parent=11 // pred_check
          %p215 = pneg %p87
        $region18: #{tpu_custom_call.1} parent=11 // pred_check_branch
          %217 = sbr.rel (%p215) target = $region20
        $region19: #{tpu_custom_call.1} parent=11 // pred_region
          _
        $region20: #{tpu_custom_call.1} parent=11 // pred_fallthru
          _
        // Predicated region
        $region21: #{tpu_custom_call.1} parent=11 // pred_check
          %p218 = pneg %p108
        $region22: #{tpu_custom_call.1} parent=11 // pred_check_branch
          %220 = sbr.rel (%p218) target = $region24
        $region23: #{tpu_custom_call.1} parent=11 // pred_region
          _
        $region24: #{tpu_custom_call.1} parent=11 // pred_fallthru
          _
        // Predicated region
        $region25: #{tpu_custom_call.1} parent=11 // pred_check
          %p221 = pneg %p129
        $region26: #{tpu_custom_call.1} parent=11 // pred_check_branch
          %223 = sbr.rel (%p221) target = $region28
        $region27: #{tpu_custom_call.1} parent=11 // pred_region
          _
        $region28: #{tpu_custom_call.1} parent=11 // pred_fallthru
          _
        // Predicated region
        $region29: #{tpu_custom_call.1} parent=11 // pred_check
          %p224 = pneg %p150
        $region30: #{tpu_custom_call.1} parent=11 // pred_check_branch
          %226 = sbr.rel (%p224) target = $region32
        $region31: #{tpu_custom_call.1} parent=11 // pred_region
          _
        $region32: #{tpu_custom_call.1} parent=11 // pred_fallthru
          _
        // Predicated region
        $region33: #{tpu_custom_call.1} parent=11 // pred_check
          %p227 = pneg %p171
        $region34: #{tpu_custom_call.1} parent=11 // pred_check_branch
          %229 = sbr.rel (%p227) target = $region36
        $region35: #{tpu_custom_call.1} parent=11 // pred_region
          _
        $region36: #{tpu_custom_call.1} parent=11 // pred_fallthru
          _
      $region12: #{tpu_custom_call.1} parent=5 // pred_fallthru
        _
      %p230 = scmp.lt.s32.totalorder %s19, 2
      // Predicated region
      $region37: #{tpu_custom_call.1} parent=5 // pred_check
        %p231 = pneg %p230
      $region38: #{tpu_custom_call.1} parent=5 // pred_check_branch
        %233 = sbr.rel (%p231) target = $region40
      $region39: #{tpu_custom_call.1} parent=5 // pred_region
        // Predicated region
        $region41: #{tpu_custom_call.1} parent=39 // pred_check
          %p234 = pneg %p39
        $region42: #{tpu_custom_call.1} parent=39 // pred_check_branch
          %236 = sbr.rel (%p234) target = $region44
        $region43: #{tpu_custom_call.1} parent=39 // pred_region
          %s237 = sand.u32 %s29, 1
          %s238 = scalar_lea.sflag [#allocation3], %s237
          %s239 = sand.u32 %s29, 1
          %s240 = smul.addr %s239, 256
          %s241 = scalar_lea.vmem [#allocation2], %s240
          %s243 = ssub.s32 4096, 4096
          %244 = vsyncadd %s238, %s243
          %s245 = smul.addr %s19, 32
          %s246 = smul.addr %s245, 128
          %s247 = scalar_lea.hbm %s0, %s246
          %s248 = sshll.u32 %s241, 4
          %s249 = int_to_ptr.vmem [resolvable:$true] %s248
          %254 = dma.hbm_to_vmem [thread:$0]  %s247, 4096, %s249, %s238, 256, 256, 16
        $region44: #{tpu_custom_call.1} parent=39 // pred_fallthru
          _
      $region40: #{tpu_custom_call.1} parent=5 // pred_fallthru
        _
      %p255 = scmp.le.s32.totalorder 1, %s19
      %p256 = scmp.lt.s32.totalorder %s19, 3
      %p257 = pnand %p255, %p256
      %p258 = pneg %p257
      // Predicated region
      $region45: #{tpu_custom_call.1} parent=5 // pred_check
        _
      $region46: #{tpu_custom_call.1} parent=5 // pred_check_branch
        %260 = sbr.rel (%p257) target = $region48
      $region47: #{tpu_custom_call.1} parent=5 // pred_region
        %s261 = ssub.s32 %s19, 1
        %s262 = sand.u32 %s32, 1
        %s263 = scalar_lea.sflag [#allocation3], %s262
        %s264 = sand.u32 %s32, 1
        %s265 = smul.addr %s264, 256
        %s266 = scalar_lea.vmem [#allocation2], %s265
        // Predicated region
        $region49: #{tpu_custom_call.1} parent=47 // pred_check
          %p267 = pneg %p45
        $region50: #{tpu_custom_call.1} parent=47 // pred_check_branch
          %269 = sbr.rel (%p267) target = $region52
        $region51: #{tpu_custom_call.1} parent=47 // pred_region
          %270 = dma.done %s263, 4096
        $region52: #{tpu_custom_call.1} parent=47 // pred_fallthru
          _
        %s271 = sand.u32 %s32, 1
        %s272 = scalar_lea.sflag [#allocation3], %s271
        %s273 = sand.u32 %s32, 1
        %s274 = smul.addr %s273, 256
        %s275 = scalar_lea.vmem [#allocation2], %s274
        %p276 = pneg %p45
        %p277 = pneg %p42
        %p278 = pneg %p66
        %p279 = pneg %p63
        %p280 = pneg %p87
        %p281 = pneg %p84
        %p282 = pneg %p108
        %p283 = pneg %p105
        %p284 = pneg %p129
        %p285 = pneg %p126
        %p286 = pneg %p150
        %p287 = pneg %p147
        %p288 = pneg %p171
        %p289 = pneg %p168
        %p290 = pneg %p197
        %p291 = pneg %p194
        %s292 = sand.u32 %s184, 1
        %s293 = scalar_lea.sflag [#allocation4], %s292
        %s294 = sand.u32 %s184, 1
        %s295 = smul.addr %s294, 256
        %s296 = scalar_lea.vmem [#allocation5], %s295
        %v298 = vld [vmem:[%s266] sm:$0xff]
        %v299 = vld [vmem:[%s266 + $0x8] sm:$0xff]
        %v300 = vld [vmem:[%s266 + $0x10] sm:$0xff]
        %v301 = vld [vmem:[%s266 + $0x18] sm:$0xff]
        %v302 = vld [vmem:[%s266 + $0x20] sm:$0xff]
        %v303 = vld [vmem:[%s266 + $0x28] sm:$0xff]
        %v304 = vld [vmem:[%s266 + $0x30] sm:$0xff]
        %v305 = vld [vmem:[%s266 + $0x38] sm:$0xff]
        %v306 = vld [vmem:[%s266 + $0x40] sm:$0xff]
        %v307 = vld [vmem:[%s266 + $0x48] sm:$0xff]
        %v308 = vld [vmem:[%s266 + $0x50] sm:$0xff]
        %v309 = vld [vmem:[%s266 + $0x58] sm:$0xff]
        %v310 = vld [vmem:[%s266 + $0x60] sm:$0xff]
        %v311 = vld [vmem:[%s266 + $0x68] sm:$0xff]
        %v312 = vld [vmem:[%s266 + $0x70] sm:$0xff]
        %v313 = vld [vmem:[%s266 + $0x78] sm:$0xff]
        %v314 = vld [vmem:[%s266 + $0x80] sm:$0xff]
        %v315 = vld [vmem:[%s266 + $0x88] sm:$0xff]
        %v316 = vld [vmem:[%s266 + $0x90] sm:$0xff]
        %v317 = vld [vmem:[%s266 + $0x98] sm:$0xff]
        %v318 = vld [vmem:[%s266 + $0xa0] sm:$0xff]
        %v319 = vld [vmem:[%s266 + $0xa8] sm:$0xff]
        %v320 = vld [vmem:[%s266 + $0xb0] sm:$0xff]
        %v321 = vld [vmem:[%s266 + $0xb8] sm:$0xff]
        %v322 = vld [vmem:[%s266 + $0xc0] sm:$0xff]
        %v323 = vld [vmem:[%s266 + $0xc8] sm:$0xff]
        %v324 = vld [vmem:[%s266 + $0xd0] sm:$0xff]
        %v325 = vld [vmem:[%s266 + $0xd8] sm:$0xff]
        %v326 = vld [vmem:[%s266 + $0xe0] sm:$0xff]
        %v327 = vld [vmem:[%s266 + $0xe8] sm:$0xff]
        %v328 = vld [vmem:[%s266 + $0xf0] sm:$0xff]
        %v329 = vld [vmem:[%s266 + $0xf8] sm:$0xff]
        %v330 = vld [vmem:[%s2] sm:$0xff]
        %v331 = vld [vmem:[%s2 + $0x8] sm:$0xff]
        %v332 = vld [vmem:[%s2 + $0x10] sm:$0xff]
        %v333 = vld [vmem:[%s2 + $0x18] sm:$0xff]
        %v334 = vld [vmem:[%s2 + $0x20] sm:$0xff]
        %v335 = vld [vmem:[%s2 + $0x28] sm:$0xff]
        %v336 = vld [vmem:[%s2 + $0x30] sm:$0xff]
        %v337 = vld [vmem:[%s2 + $0x38] sm:$0xff]
        %v338 = vld [vmem:[%s2 + $0x40] sm:$0xff]
        %v339 = vld [vmem:[%s2 + $0x48] sm:$0xff]
        %v340 = vld [vmem:[%s2 + $0x50] sm:$0xff]
        %v341 = vld [vmem:[%s2 + $0x58] sm:$0xff]
        %v342 = vld [vmem:[%s2 + $0x60] sm:$0xff]
        %v343 = vld [vmem:[%s2 + $0x68] sm:$0xff]
        %v344 = vld [vmem:[%s2 + $0x70] sm:$0xff]
        %v345 = vld [vmem:[%s2 + $0x78] sm:$0xff]
        %v346 = vld [vmem:[%s1] sm:$0xff]
        %v347 = vld [vmem:[%s1 + $0x8] sm:$0xff]
        %v348 = vld [vmem:[%s1 + $0x10] sm:$0xff]
        %v349 = vld [vmem:[%s1 + $0x18] sm:$0xff]
        %v350 = vld [vmem:[%s1 + $0x20] sm:$0xff]
        %v351 = vld [vmem:[%s1 + $0x28] sm:$0xff]
        %v352 = vld [vmem:[%s1 + $0x30] sm:$0xff]
        %v353 = vld [vmem:[%s1 + $0x38] sm:$0xff]
        %v354 = vld [vmem:[%s1 + $0x40] sm:$0xff]
        %v355 = vld [vmem:[%s1 + $0x48] sm:$0xff]
        %v356 = vld [vmem:[%s1 + $0x50] sm:$0xff]
        %v357 = vld [vmem:[%s1 + $0x58] sm:$0xff]
        %v358 = vld [vmem:[%s1 + $0x60] sm:$0xff]
        %v359 = vld [vmem:[%s1 + $0x68] sm:$0xff]
        %v360 = vld [vmem:[%s1 + $0x70] sm:$0xff]
        %v361 = vld [vmem:[%s1 + $0x78] sm:$0xff]
        %v362 = vadd.f32 %v298, %v299
        %363 = vadd.xlane.f32.xlu0 %v362
        %v364 = vpop.xlane.xlu0 %363
        %v365 = vadd.f32 %v300, %v301
        %366 = vadd.xlane.f32.xlu0 %v365
        %v367 = vpop.xlane.xlu0 %366
        %v368 = vadd.f32 %v302, %v303
        %369 = vadd.xlane.f32.xlu0 %v368
        %v370 = vpop.xlane.xlu0 %369
        %v371 = vadd.f32 %v304, %v305
        %372 = vadd.xlane.f32.xlu0 %v371
        %v373 = vpop.xlane.xlu0 %372
        %v374 = vadd.f32 %v306, %v307
        %375 = vadd.xlane.f32.xlu0 %v374
        %v376 = vpop.xlane.xlu0 %375
        %v377 = vadd.f32 %v308, %v309
        %378 = vadd.xlane.f32.xlu0 %v377
        %v379 = vpop.xlane.xlu0 %378
        %v380 = vadd.f32 %v310, %v311
        %381 = vadd.xlane.f32.xlu0 %v380
        %v382 = vpop.xlane.xlu0 %381
        %v383 = vadd.f32 %v312, %v313
        %384 = vadd.xlane.f32.xlu0 %v383
        %v385 = vpop.xlane.xlu0 %384
        %v386 = vadd.f32 %v314, %v315
        %387 = vadd.xlane.f32.xlu0 %v386
        %v388 = vpop.xlane.xlu0 %387
        %v389 = vadd.f32 %v316, %v317
        %390 = vadd.xlane.f32.xlu0 %v389
        %v391 = vpop.xlane.xlu0 %390
        %v392 = vadd.f32 %v318, %v319
        %393 = vadd.xlane.f32.xlu0 %v392
        %v394 = vpop.xlane.xlu0 %393
        %v395 = vadd.f32 %v320, %v321
        %396 = vadd.xlane.f32.xlu0 %v395
        %v397 = vpop.xlane.xlu0 %396
        %v398 = vadd.f32 %v322, %v323
        %399 = vadd.xlane.f32.xlu0 %v398
        %v400 = vpop.xlane.xlu0 %399
        %v401 = vadd.f32 %v324, %v325
        %402 = vadd.xlane.f32.xlu0 %v401
        %v403 = vpop.xlane.xlu0 %402
        %v404 = vadd.f32 %v326, %v327
        %405 = vadd.xlane.f32.xlu0 %v404
        %v406 = vpop.xlane.xlu0 %405
        %v407 = vadd.f32 %v328, %v329
        %408 = vadd.xlane.f32.xlu0 %v407
        %v409 = vpop.xlane.xlu0 %408
        %410 = vmatprep.subr.mxu0 0.0
        %411 = vmatpush1.msra.mxu0 %v364
        %412 = vmatprep.subr.mxu0 0.0
        %413 = vmatpush1.msra.mxu0 %v367
        %414 = vmatprep.subr.mxu0 0.0
        %415 = vmatpush1.msra.mxu0 %v370
        %416 = vmatprep.subr.mxu0 0.0
        %417 = vmatpush1.msra.mxu0 %v373
        %418 = vmatprep.subr.mxu0 0.0
        %419 = vmatpush1.msra.mxu0 %v376
        %420 = vmatprep.subr.mxu0 0.0
        %421 = vmatpush1.msra.mxu0 %v379
        %422 = vmatprep.subr.mxu0 0.0
        %423 = vmatpush1.msra.mxu0 %v382
        %424 = vmatprep.subr.mxu0 0.0
        %425 = vmatpush1.msra.mxu0 %v385
        %426 = vmatprep.subr.mxu0 0.0
        %427 = vmatpush1.msra.mxu0 %v388
        %428 = vmatprep.subr.mxu0 0.0
        %429 = vmatpush1.msra.mxu0 %v391
        %430 = vmatprep.subr.mxu0 0.0
        %431 = vmatpush1.msra.mxu0 %v394
        %432 = vmatprep.subr.mxu0 0.0
        %433 = vmatpush1.msra.mxu0 %v397
        %434 = vmatprep.subr.mxu0 0.0
        %435 = vmatpush1.msra.mxu0 %v400
        %436 = vmatprep.subr.mxu0 0.0
        %437 = vmatpush1.msra.mxu0 %v403
        %438 = vmatprep.subr.mxu0 0.0
        %439 = vmatpush1.msra.mxu0 %v406
        %440 = vmatprep.subr.mxu0 0.0
        %441 = vmatpush1.msra.mxu0 %v409
        %442 = vmatprep.subr.mxu0 0.0
        %443 = vmatpush1.msra.mxu0 0.0
        %444 = vmatprep.subr.mxu0 0.0
        %445 = vmatpush1.msra.mxu0 0.0
        %446 = vmatprep.subr.mxu0 0.0
        %447 = vmatpush1.msra.mxu0 0.0
        %448 = vmatprep.subr.mxu0 0.0
        %449 = vmatpush1.msra.mxu0 0.0
        %450 = vmatprep.subr.mxu0 0.0
        %451 = vmatpush1.msra.mxu0 0.0
        %452 = vmatprep.subr.mxu0 0.0
        %453 = vmatpush1.msra.mxu0 0.0
        %454 = vmatprep.subr.mxu0 0.0
        %455 = vmatpush1.msra.mxu0 0.0
        %456 = vmatprep.subr.mxu0 0.0
        %457 = vmatpush1.msra.mxu0 0.0
        %458 = vmatprep.subr.mxu0 0.0
        %459 = vmatpush1.msra.mxu0 0.0
        %460 = vmatprep.subr.mxu0 0.0
        %461 = vmatpush1.msra.mxu0 0.0
        %462 = vmatprep.subr.mxu0 0.0
        %463 = vmatpush1.msra.mxu0 0.0
        %464 = vmatprep.subr.mxu0 0.0
        %465 = vmatpush1.msra.mxu0 0.0
        %466 = vmatprep.subr.mxu0 0.0
        %467 = vmatpush1.msra.mxu0 0.0
        %468 = vmatprep.subr.mxu0 0.0
        %469 = vmatpush1.msra.mxu0 0.0
        %470 = vmatprep.subr.mxu0 0.0
        %471 = vmatpush1.msra.mxu0 0.0
        %472 = vmatprep.subr.mxu0 0.0
        %473 = vmatpush1.msra.mxu0 0.0
        %474 = vmatprep.mubr.f32.mxu0 0.0
        %475 = vmatmul.mubr.f32.gmra.mrb[0].mxu0 %v346
        %v476 = vpop.f32.mrb[0].mxu0
        %v477 = vadd.f32 0.0, %v476
        %v478 = vpop.f32.mrb[0].mxu0
        %479 = vmatprep.mubr.f32.mxu0 0.0
        %480 = vmatmul.mubr.f32.gmra.mrb[0].mxu0 %v347
        %v481 = vpop.f32.mrb[0].mxu0
        %v482 = vadd.f32 0.0, %v481
        %v483 = vpop.f32.mrb[0].mxu0
        %484 = vmatprep.mubr.f32.mxu0 0.0
        %485 = vmatmul.mubr.f32.gmra.mrb[0].mxu0 %v348
        %v486 = vpop.f32.mrb[0].mxu0
        %v487 = vadd.f32 0.0, %v486
        %v488 = vpop.f32.mrb[0].mxu0
        %489 = vmatprep.mubr.f32.mxu0 0.0
        %490 = vmatmul.mubr.f32.gmra.mrb[0].mxu0 %v349
        %v491 = vpop.f32.mrb[0].mxu0
        %v492 = vadd.f32 0.0, %v491
        %v493 = vpop.f32.mrb[0].mxu0
        %494 = vmatprep.mubr.f32.mxu0 0.0
        %495 = vmatmul.mubr.f32.gmra.mrb[0].mxu0 %v350
        %v496 = vpop.f32.mrb[0].mxu0
        %v497 = vadd.f32 0.0, %v496
        %v498 = vpop.f32.mrb[0].mxu0
        %499 = vmatprep.mubr.f32.mxu0 0.0
        %500 = vmatmul.mubr.f32.gmra.mrb[0].mxu0 %v351
        %v501 = vpop.f32.mrb[0].mxu0
        %v502 = vadd.f32 0.0, %v501
        %v503 = vpop.f32.mrb[0].mxu0
        %504 = vmatprep.mubr.f32.mxu0 0.0
        %505 = vmatmul.mubr.f32.gmra.mrb[0].mxu0 %v352
        %v506 = vpop.f32.mrb[0].mxu0
        %v507 = vadd.f32 0.0, %v506
        %v508 = vpop.f32.mrb[0].mxu0
        %509 = vmatprep.mubr.f32.mxu0 0.0
        %510 = vmatmul.mubr.f32.gmra.mrb[0].mxu0 %v353
        %v511 = vpop.f32.mrb[0].mxu0
        %v512 = vadd.f32 0.0, %v511
        %v513 = vpop.f32.mrb[0].mxu0
        %514 = vmatprep.mubr.f32.mxu0 0.0
        %515 = vmatmul.mubr.f32.gmra.mrb[0].mxu0 %v354
        %v516 = vpop.f32.mrb[0].mxu0
        %v517 = vadd.f32 0.0, %v516
        %v518 = vpop.f32.mrb[0].mxu0
        %519 = vmatprep.mubr.f32.mxu0 0.0
        %520 = vmatmul.mubr.f32.gmra.mrb[0].mxu0 %v355
        %v521 = vpop.f32.mrb[0].mxu0
        %v522 = vadd.f32 0.0, %v521
        %v523 = vpop.f32.mrb[0].mxu0
        %524 = vmatprep.mubr.f32.mxu0 0.0
        %525 = vmatmul.mubr.f32.gmra.mrb[0].mxu0 %v356
        %v526 = vpop.f32.mrb[0].mxu0
        %v527 = vadd.f32 0.0, %v526
        %v528 = vpop.f32.mrb[0].mxu0
        %529 = vmatprep.mubr.f32.mxu0 0.0
        %530 = vmatmul.mubr.f32.gmra.mrb[0].mxu0 %v357
        %v531 = vpop.f32.mrb[0].mxu0
        %v532 = vadd.f32 0.0, %v531
        %v533 = vpop.f32.mrb[0].mxu0
        %534 = vmatprep.mubr.f32.mxu0 0.0
        %535 = vmatmul.mubr.f32.gmra.mrb[0].mxu0 %v358
        %v536 = vpop.f32.mrb[0].mxu0
        %v537 = vadd.f32 0.0, %v536
        %v538 = vpop.f32.mrb[0].mxu0
        %539 = vmatprep.mubr.f32.mxu0 0.0
        %540 = vmatmul.mubr.f32.gmra.mrb[0].mxu0 %v359
        %v541 = vpop.f32.mrb[0].mxu0
        %v542 = vadd.f32 0.0, %v541
        %v543 = vpop.f32.mrb[0].mxu0
        %544 = vmatprep.mubr.f32.mxu0 0.0
        %545 = vmatmul.mubr.f32.gmra.mrb[0].mxu0 %v360
        %v546 = vpop.f32.mrb[0].mxu0
        %v547 = vadd.f32 0.0, %v546
        %v548 = vpop.f32.mrb[0].mxu0
        %549 = vmatprep.mubr.f32.mxu0 0.0
        %550 = vmatmul.mubr.f32.gmra.mrb[0].mxu0 %v361
        %v551 = vpop.f32.mrb[0].mxu0
        %v552 = vadd.f32 0.0, %v551
        %v553 = vpop.f32.mrb[0].mxu0
        %554 = vdwg.mxu0
        %v555 = vmul.f32 %v477, 0.0009765625
        %v556 = vmul.f32 %v482, 0.0009765625
        %v557 = vmul.f32 %v487, 0.0009765625
        %v558 = vmul.f32 %v492, 0.0009765625
        %v559 = vmul.f32 %v497, 0.0009765625
        %v560 = vmul.f32 %v502, 0.0009765625
        %v561 = vmul.f32 %v507, 0.0009765625
        %v562 = vmul.f32 %v512, 0.0009765625
        %v563 = vmul.f32 %v517, 0.0009765625
        %v564 = vmul.f32 %v522, 0.0009765625
        %v565 = vmul.f32 %v527, 0.0009765625
        %v566 = vmul.f32 %v532, 0.0009765625
        %v567 = vmul.f32 %v537, 0.0009765625
        %v568 = vmul.f32 %v542, 0.0009765625
        %v569 = vmul.f32 %v547, 0.0009765625
        %v570 = vmul.f32 %v552, 0.0009765625
        %572 = vset.pattern.permute.xlu0 0
        %573 = vperm.xlu0 %572, %v555
        %v574 = vpop.permute.xlu0 %573
        %577 = vset.pattern.permute.xlu0 0
        %578 = vperm.xlu0 %577, %v556
        %v579 = vpop.permute.xlu0 %578
        %582 = vset.pattern.permute.xlu0 0
        %583 = vperm.xlu0 %582, %v557
        %v584 = vpop.permute.xlu0 %583
        %587 = vset.pattern.permute.xlu0 0
        %588 = vperm.xlu0 %587, %v558
        %v589 = vpop.permute.xlu0 %588
        %592 = vset.pattern.permute.xlu0 0
        %593 = vperm.xlu0 %592, %v559
        %v594 = vpop.permute.xlu0 %593
        %597 = vset.pattern.permute.xlu0 0
        %598 = vperm.xlu0 %597, %v560
        %v599 = vpop.permute.xlu0 %598
        %602 = vset.pattern.permute.xlu0 0
        %603 = vperm.xlu0 %602, %v561
        %v604 = vpop.permute.xlu0 %603
        %607 = vset.pattern.permute.xlu0 0
        %608 = vperm.xlu0 %607, %v562
        %v609 = vpop.permute.xlu0 %608
        %612 = vset.pattern.permute.xlu0 0
        %613 = vperm.xlu0 %612, %v563
        %v614 = vpop.permute.xlu0 %613
        %617 = vset.pattern.permute.xlu0 0
        %618 = vperm.xlu0 %617, %v564
        %v619 = vpop.permute.xlu0 %618
        %622 = vset.pattern.permute.xlu0 0
        %623 = vperm.xlu0 %622, %v565
        %v624 = vpop.permute.xlu0 %623
        %627 = vset.pattern.permute.xlu0 0
        %628 = vperm.xlu0 %627, %v566
        %v629 = vpop.permute.xlu0 %628
        %632 = vset.pattern.permute.xlu0 0
        %633 = vperm.xlu0 %632, %v567
        %v634 = vpop.permute.xlu0 %633
        %637 = vset.pattern.permute.xlu0 0
        %638 = vperm.xlu0 %637, %v568
        %v639 = vpop.permute.xlu0 %638
        %642 = vset.pattern.permute.xlu0 0
        %643 = vperm.xlu0 %642, %v569
        %v644 = vpop.permute.xlu0 %643
        %647 = vset.pattern.permute.xlu0 0
        %648 = vperm.xlu0 %647, %v570
        %v649 = vpop.permute.xlu0 %648
        %v651 = vsub.f32 %v298, %v574
        %v652 = vsub.f32 %v299, %v574
        %v653 = vsub.f32 %v300, %v579
        %v654 = vsub.f32 %v301, %v579
        %v655 = vsub.f32 %v302, %v584
        %v656 = vsub.f32 %v303, %v584
        %v657 = vsub.f32 %v304, %v589
        %v658 = vsub.f32 %v305, %v589
        %v659 = vsub.f32 %v306, %v594
        %v660 = vsub.f32 %v307, %v594
        %v661 = vsub.f32 %v308, %v599
        %v662 = vsub.f32 %v309, %v599
        %v663 = vsub.f32 %v310, %v604
        %v664 = vsub.f32 %v311, %v604
        %v665 = vsub.f32 %v312, %v609
        %v666 = vsub.f32 %v313, %v609
        %v667 = vsub.f32 %v314, %v614
        %v668 = vsub.f32 %v315, %v614
        %v669 = vsub.f32 %v316, %v619
        %v670 = vsub.f32 %v317, %v619
        %v671 = vsub.f32 %v318, %v624
        %v672 = vsub.f32 %v319, %v624
        %v673 = vsub.f32 %v320, %v629
        %v674 = vsub.f32 %v321, %v629
        %v675 = vsub.f32 %v322, %v634
        %v676 = vsub.f32 %v323, %v634
        %v677 = vsub.f32 %v324, %v639
        %v678 = vsub.f32 %v325, %v639
        %v679 = vsub.f32 %v326, %v644
        %v680 = vsub.f32 %v327, %v644
        %v681 = vsub.f32 %v328, %v649
        %v682 = vsub.f32 %v329, %v649
        %v683 = vmul.f32 %v651, %v651
        %v684 = vmul.f32 %v652, %v652
        %v685 = vmul.f32 %v653, %v653
        %v686 = vmul.f32 %v654, %v654
        %v687 = vmul.f32 %v655, %v655
        %v688 = vmul.f32 %v656, %v656
        %v689 = vmul.f32 %v657, %v657
        %v690 = vmul.f32 %v658, %v658
        %v691 = vmul.f32 %v659, %v659
        %v692 = vmul.f32 %v660, %v660
        %v693 = vmul.f32 %v661, %v661
        %v694 = vmul.f32 %v662, %v662
        %v695 = vmul.f32 %v663, %v663
        %v696 = vmul.f32 %v664, %v664
        %v697 = vmul.f32 %v665, %v665
        %v698 = vmul.f32 %v666, %v666
        %v699 = vmul.f32 %v667, %v667
        %v700 = vmul.f32 %v668, %v668
        %v701 = vmul.f32 %v669, %v669
        %v702 = vmul.f32 %v670, %v670
        %v703 = vmul.f32 %v671, %v671
        %v704 = vmul.f32 %v672, %v672
        %v705 = vmul.f32 %v673, %v673
        %v706 = vmul.f32 %v674, %v674
        %v707 = vmul.f32 %v675, %v675
        %v708 = vmul.f32 %v676, %v676
        %v709 = vmul.f32 %v677, %v677
        %v710 = vmul.f32 %v678, %v678
        %v711 = vmul.f32 %v679, %v679
        %v712 = vmul.f32 %v680, %v680
        %v713 = vmul.f32 %v681, %v681
        %v714 = vmul.f32 %v682, %v682
        %v715 = vadd.f32 %v683, %v684
        %716 = vadd.xlane.f32.xlu0 %v715
        %v717 = vpop.xlane.xlu0 %716
        %v718 = vadd.f32 %v685, %v686
        %719 = vadd.xlane.f32.xlu0 %v718
        %v720 = vpop.xlane.xlu0 %719
        %v721 = vadd.f32 %v687, %v688
        %722 = vadd.xlane.f32.xlu0 %v721
        %v723 = vpop.xlane.xlu0 %722
        %v724 = vadd.f32 %v689, %v690
        %725 = vadd.xlane.f32.xlu0 %v724
        %v726 = vpop.xlane.xlu0 %725
        %v727 = vadd.f32 %v691, %v692
        %728 = vadd.xlane.f32.xlu0 %v727
        %v729 = vpop.xlane.xlu0 %728
        %v730 = vadd.f32 %v693, %v694
        %731 = vadd.xlane.f32.xlu0 %v730
        %v732 = vpop.xlane.xlu0 %731
        %v733 = vadd.f32 %v695, %v696
        %734 = vadd.xlane.f32.xlu0 %v733
        %v735 = vpop.xlane.xlu0 %734
        %v736 = vadd.f32 %v697, %v698
        %737 = vadd.xlane.f32.xlu0 %v736
        %v738 = vpop.xlane.xlu0 %737
        %v739 = vadd.f32 %v699, %v700
        %740 = vadd.xlane.f32.xlu0 %v739
        %v741 = vpop.xlane.xlu0 %740
        %v742 = vadd.f32 %v701, %v702
        %743 = vadd.xlane.f32.xlu0 %v742
        %v744 = vpop.xlane.xlu0 %743
        %v745 = vadd.f32 %v703, %v704
        %746 = vadd.xlane.f32.xlu0 %v745
        %v747 = vpop.xlane.xlu0 %746
        %v748 = vadd.f32 %v705, %v706
        %749 = vadd.xlane.f32.xlu0 %v748
        %v750 = vpop.xlane.xlu0 %749
        %v751 = vadd.f32 %v707, %v708
        %752 = vadd.xlane.f32.xlu0 %v751
        %v753 = vpop.xlane.xlu0 %752
        %v754 = vadd.f32 %v709, %v710
        %755 = vadd.xlane.f32.xlu0 %v754
        %v756 = vpop.xlane.xlu0 %755
        %v757 = vadd.f32 %v711, %v712
        %758 = vadd.xlane.f32.xlu0 %v757
        %v759 = vpop.xlane.xlu0 %758
        %v760 = vadd.f32 %v713, %v714
        %761 = vadd.xlane.f32.xlu0 %v760
        %v762 = vpop.xlane.xlu0 %761
        %763 = vmatprep.subr.mxu0 0.0
        %764 = vmatpush1.msra.mxu0 %v717
        %765 = vmatprep.subr.mxu0 0.0
        %766 = vmatpush1.msra.mxu0 %v720
        %767 = vmatprep.subr.mxu0 0.0
        %768 = vmatpush1.msra.mxu0 %v723
        %769 = vmatprep.subr.mxu0 0.0
        %770 = vmatpush1.msra.mxu0 %v726
        %771 = vmatprep.subr.mxu0 0.0
        %772 = vmatpush1.msra.mxu0 %v729
        %773 = vmatprep.subr.mxu0 0.0
        %774 = vmatpush1.msra.mxu0 %v732
        %775 = vmatprep.subr.mxu0 0.0
        %776 = vmatpush1.msra.mxu0 %v735
        %777 = vmatprep.subr.mxu0 0.0
        %778 = vmatpush1.msra.mxu0 %v738
        %779 = vmatprep.subr.mxu0 0.0
        %780 = vmatpush1.msra.mxu0 %v741
        %781 = vmatprep.subr.mxu0 0.0
        %782 = vmatpush1.msra.mxu0 %v744
        %783 = vmatprep.subr.mxu0 0.0
        %784 = vmatpush1.msra.mxu0 %v747
        %785 = vmatprep.subr.mxu0 0.0
        %786 = vmatpush1.msra.mxu0 %v750
        %787 = vmatprep.subr.mxu0 0.0
        %788 = vmatpush1.msra.mxu0 %v753
        %789 = vmatprep.subr.mxu0 0.0
        %790 = vmatpush1.msra.mxu0 %v756
        %791 = vmatprep.subr.mxu0 0.0
        %792 = vmatpush1.msra.mxu0 %v759
        %793 = vmatprep.subr.mxu0 0.0
        %794 = vmatpush1.msra.mxu0 %v762
        %795 = vmatprep.subr.mxu0 0.0
        %796 = vmatpush1.msra.mxu0 0.0
        %797 = vmatprep.subr.mxu0 0.0
        %798 = vmatpush1.msra.mxu0 0.0
        %799 = vmatprep.subr.mxu0 0.0
        %800 = vmatpush1.msra.mxu0 0.0
        %801 = vmatprep.subr.mxu0 0.0
        %802 = vmatpush1.msra.mxu0 0.0
        %803 = vmatprep.subr.mxu0 0.0
        %804 = vmatpush1.msra.mxu0 0.0
        %805 = vmatprep.subr.mxu0 0.0
        %806 = vmatpush1.msra.mxu0 0.0
        %807 = vmatprep.subr.mxu0 0.0
        %808 = vmatpush1.msra.mxu0 0.0
        %809 = vmatprep.subr.mxu0 0.0
        %810 = vmatpush1.msra.mxu0 0.0
        %811 = vmatprep.subr.mxu0 0.0
        %812 = vmatpush1.msra.mxu0 0.0
        %813 = vmatprep.subr.mxu0 0.0
        %814 = vmatpush1.msra.mxu0 0.0
        %815 = vmatprep.subr.mxu0 0.0
        %816 = vmatpush1.msra.mxu0 0.0
        %817 = vmatprep.subr.mxu0 0.0
        %818 = vmatpush1.msra.mxu0 0.0
        %819 = vmatprep.subr.mxu0 0.0
        %820 = vmatpush1.msra.mxu0 0.0
        %821 = vmatprep.subr.mxu0 0.0
        %822 = vmatpush1.msra.mxu0 0.0
        %823 = vmatprep.subr.mxu0 0.0
        %824 = vmatpush1.msra.mxu0 0.0
        %825 = vmatprep.subr.mxu0 0.0
        %826 = vmatpush1.msra.mxu0 0.0
        %827 = vmatprep.mubr.f32.mxu0 0.0
        %828 = vmatmul.mubr.f32.gmra.mrb[0].mxu0 %v346
        %v829 = vpop.f32.mrb[0].mxu0
        %v830 = vadd.f32 0.0, %v829
        %v831 = vpop.f32.mrb[0].mxu0
        %832 = vmatprep.mubr.f32.mxu0 0.0
        %833 = vmatmul.mubr.f32.gmra.mrb[0].mxu0 %v347
        %v834 = vpop.f32.mrb[0].mxu0
        %v835 = vadd.f32 0.0, %v834
        %v836 = vpop.f32.mrb[0].mxu0
        %837 = vmatprep.mubr.f32.mxu0 0.0
        %838 = vmatmul.mubr.f32.gmra.mrb[0].mxu0 %v348
        %v839 = vpop.f32.mrb[0].mxu0
        %v840 = vadd.f32 0.0, %v839
        %v841 = vpop.f32.mrb[0].mxu0
        %842 = vmatprep.mubr.f32.mxu0 0.0
        %843 = vmatmul.mubr.f32.gmra.mrb[0].mxu0 %v349
        %v844 = vpop.f32.mrb[0].mxu0
        %v845 = vadd.f32 0.0, %v844
        %v846 = vpop.f32.mrb[0].mxu0
        %847 = vmatprep.mubr.f32.mxu0 0.0
        %848 = vmatmul.mubr.f32.gmra.mrb[0].mxu0 %v350
        %v849 = vpop.f32.mrb[0].mxu0
        %v850 = vadd.f32 0.0, %v849
        %v851 = vpop.f32.mrb[0].mxu0
        %852 = vmatprep.mubr.f32.mxu0 0.0
        %853 = vmatmul.mubr.f32.gmra.mrb[0].mxu0 %v351
        %v854 = vpop.f32.mrb[0].mxu0
        %v855 = vadd.f32 0.0, %v854
        %v856 = vpop.f32.mrb[0].mxu0
        %857 = vmatprep.mubr.f32.mxu0 0.0
        %858 = vmatmul.mubr.f32.gmra.mrb[0].mxu0 %v352
        %v859 = vpop.f32.mrb[0].mxu0
        %v860 = vadd.f32 0.0, %v859
        %v861 = vpop.f32.mrb[0].mxu0
        %862 = vmatprep.mubr.f32.mxu0 0.0
        %863 = vmatmul.mubr.f32.gmra.mrb[0].mxu0 %v353
        %v864 = vpop.f32.mrb[0].mxu0
        %v865 = vadd.f32 0.0, %v864
        %v866 = vpop.f32.mrb[0].mxu0
        %867 = vmatprep.mubr.f32.mxu0 0.0
        %868 = vmatmul.mubr.f32.gmra.mrb[0].mxu0 %v354
        %v869 = vpop.f32.mrb[0].mxu0
        %v870 = vadd.f32 0.0, %v869
        %v871 = vpop.f32.mrb[0].mxu0
        %872 = vmatprep.mubr.f32.mxu0 0.0
        %873 = vmatmul.mubr.f32.gmra.mrb[0].mxu0 %v355
        %v874 = vpop.f32.mrb[0].mxu0
        %v875 = vadd.f32 0.0, %v874
        %v876 = vpop.f32.mrb[0].mxu0
        %877 = vmatprep.mubr.f32.mxu0 0.0
        %878 = vmatmul.mubr.f32.gmra.mrb[0].mxu0 %v356
        %v879 = vpop.f32.mrb[0].mxu0
        %v880 = vadd.f32 0.0, %v879
        %v881 = vpop.f32.mrb[0].mxu0
        %882 = vmatprep.mubr.f32.mxu0 0.0
        %883 = vmatmul.mubr.f32.gmra.mrb[0].mxu0 %v357
        %v884 = vpop.f32.mrb[0].mxu0
        %v885 = vadd.f32 0.0, %v884
        %v886 = vpop.f32.mrb[0].mxu0
        %887 = vmatprep.mubr.f32.mxu0 0.0
        %888 = vmatmul.mubr.f32.gmra.mrb[0].mxu0 %v358
        %v889 = vpop.f32.mrb[0].mxu0
        %v890 = vadd.f32 0.0, %v889
        %v891 = vpop.f32.mrb[0].mxu0
        %892 = vmatprep.mubr.f32.mxu0 0.0
        %893 = vmatmul.mubr.f32.gmra.mrb[0].mxu0 %v359
        %v894 = vpop.f32.mrb[0].mxu0
        %v895 = vadd.f32 0.0, %v894
        %v896 = vpop.f32.mrb[0].mxu0
        %897 = vmatprep.mubr.f32.mxu0 0.0
        %898 = vmatmul.mubr.f32.gmra.mrb[0].mxu0 %v360
        %v899 = vpop.f32.mrb[0].mxu0
        %v900 = vadd.f32 0.0, %v899
        %v901 = vpop.f32.mrb[0].mxu0
        %902 = vmatprep.mubr.f32.mxu0 0.0
        %903 = vmatmul.mubr.f32.gmra.mrb[0].mxu0 %v361
        %v904 = vpop.f32.mrb[0].mxu0
        %v905 = vadd.f32 0.0, %v904
        %v906 = vpop.f32.mrb[0].mxu0
        %907 = vdwg.mxu0
        %v908 = vmul.f32 %v830, 0.0009765625
        %v909 = vmul.f32 %v835, 0.0009765625
        %v910 = vmul.f32 %v840, 0.0009765625
        %v911 = vmul.f32 %v845, 0.0009765625
        %v912 = vmul.f32 %v850, 0.0009765625
        %v913 = vmul.f32 %v855, 0.0009765625
        %v914 = vmul.f32 %v860, 0.0009765625
        %v915 = vmul.f32 %v865, 0.0009765625
        %v916 = vmul.f32 %v870, 0.0009765625
        %v917 = vmul.f32 %v875, 0.0009765625
        %v918 = vmul.f32 %v880, 0.0009765625
        %v919 = vmul.f32 %v885, 0.0009765625
        %v920 = vmul.f32 %v890, 0.0009765625
        %v921 = vmul.f32 %v895, 0.0009765625
        %v922 = vmul.f32 %v900, 0.0009765625
        %v923 = vmul.f32 %v905, 0.0009765625
        %v924 = vadd.f32 %v908, 1e-06
        %v925 = vadd.f32 %v909, 1e-06
        %v926 = vadd.f32 %v910, 1e-06
        %v927 = vadd.f32 %v911, 1e-06
        %v928 = vadd.f32 %v912, 1e-06
        %v929 = vadd.f32 %v913, 1e-06
        %v930 = vadd.f32 %v914, 1e-06
        %v931 = vadd.f32 %v915, 1e-06
        %v932 = vadd.f32 %v916, 1e-06
        %v933 = vadd.f32 %v917, 1e-06
        %v934 = vadd.f32 %v918, 1e-06
        %v935 = vadd.f32 %v919, 1e-06
        %v936 = vadd.f32 %v920, 1e-06
        %v937 = vadd.f32 %v921, 1e-06
        %v938 = vadd.f32 %v922, 1e-06
        %v939 = vadd.f32 %v923, 1e-06
        %v940 = vrsqrt.pop %v924
        %v941 = vrsqrt.pop %v925
        %v942 = vrsqrt.pop %v926
        %v943 = vrsqrt.pop %v927
        %v944 = vrsqrt.pop %v928
        %v945 = vrsqrt.pop %v929
        %v946 = vrsqrt.pop %v930
        %v947 = vrsqrt.pop %v931
        %v948 = vrsqrt.pop %v932
        %v949 = vrsqrt.pop %v933
        %v950 = vrsqrt.pop %v934
        %v951 = vrsqrt.pop %v935
        %v952 = vrsqrt.pop %v936
        %v953 = vrsqrt.pop %v937
        %v954 = vrsqrt.pop %v938
        %v955 = vrsqrt.pop %v939
        %957 = vset.pattern.permute.xlu0 0
        %958 = vperm.xlu0 %957, %v940
        %v959 = vpop.permute.xlu0 %958
        %962 = vset.pattern.permute.xlu0 0
        %963 = vperm.xlu0 %962, %v941
        %v964 = vpop.permute.xlu0 %963
        %967 = vset.pattern.permute.xlu0 0
        %968 = vperm.xlu0 %967, %v942
        %v969 = vpop.permute.xlu0 %968
        %972 = vset.pattern.permute.xlu0 0
        %973 = vperm.xlu0 %972, %v943
        %v974 = vpop.permute.xlu0 %973
        %977 = vset.pattern.permute.xlu0 0
        %978 = vperm.xlu0 %977, %v944
        %v979 = vpop.permute.xlu0 %978
        %982 = vset.pattern.permute.xlu0 0
        %983 = vperm.xlu0 %982, %v945
        %v984 = vpop.permute.xlu0 %983
        %987 = vset.pattern.permute.xlu0 0
        %988 = vperm.xlu0 %987, %v946
        %v989 = vpop.permute.xlu0 %988
        %992 = vset.pattern.permute.xlu0 0
        %993 = vperm.xlu0 %992, %v947
        %v994 = vpop.permute.xlu0 %993
        %997 = vset.pattern.permute.xlu0 0
        %998 = vperm.xlu0 %997, %v948
        %v999 = vpop.permute.xlu0 %998
        %1002 = vset.pattern.permute.xlu0 0
        %1003 = vperm.xlu0 %1002, %v949
        %v1004 = vpop.permute.xlu0 %1003
        %1007 = vset.pattern.permute.xlu0 0
        %1008 = vperm.xlu0 %1007, %v950
        %v1009 = vpop.permute.xlu0 %1008
        %1012 = vset.pattern.permute.xlu0 0
        %1013 = vperm.xlu0 %1012, %v951
        %v1014 = vpop.permute.xlu0 %1013
        %1017 = vset.pattern.permute.xlu0 0
        %1018 = vperm.xlu0 %1017, %v952
        %v1019 = vpop.permute.xlu0 %1018
        %1022 = vset.pattern.permute.xlu0 0
        %1023 = vperm.xlu0 %1022, %v953
        %v1024 = vpop.permute.xlu0 %1023
        %1027 = vset.pattern.permute.xlu0 0
        %1028 = vperm.xlu0 %1027, %v954
        %v1029 = vpop.permute.xlu0 %1028
        %1032 = vset.pattern.permute.xlu0 0
        %1033 = vperm.xlu0 %1032, %v955
        %v1034 = vpop.permute.xlu0 %1033
        %v1036 = vmul.f32 %v651, %v959
        %v1037 = vmul.f32 %v652, %v959
        %v1038 = vmul.f32 %v653, %v964
        %v1039 = vmul.f32 %v654, %v964
        %v1040 = vmul.f32 %v655, %v969
        %v1041 = vmul.f32 %v656, %v969
        %v1042 = vmul.f32 %v657, %v974
        %v1043 = vmul.f32 %v658, %v974
        %v1044 = vmul.f32 %v659, %v979
        %v1045 = vmul.f32 %v660, %v979
        %v1046 = vmul.f32 %v661, %v984
        %v1047 = vmul.f32 %v662, %v984
        %v1048 = vmul.f32 %v663, %v989
        %v1049 = vmul.f32 %v664, %v989
        %v1050 = vmul.f32 %v665, %v994
        %v1051 = vmul.f32 %v666, %v994
        %v1052 = vmul.f32 %v667, %v999
        %v1053 = vmul.f32 %v668, %v999
        %v1054 = vmul.f32 %v669, %v1004
        %v1055 = vmul.f32 %v670, %v1004
        %v1056 = vmul.f32 %v671, %v1009
        %v1057 = vmul.f32 %v672, %v1009
        %v1058 = vmul.f32 %v673, %v1014
        %v1059 = vmul.f32 %v674, %v1014
        %v1060 = vmul.f32 %v675, %v1019
        %v1061 = vmul.f32 %v676, %v1019
        %v1062 = vmul.f32 %v677, %v1024
        %v1063 = vmul.f32 %v678, %v1024
        %v1064 = vmul.f32 %v679, %v1029
        %v1065 = vmul.f32 %v680, %v1029
        %v1066 = vmul.f32 %v681, %v1034
        %v1067 = vmul.f32 %v682, %v1034
        %1069 = vset.pattern.permute.xlu0 0
        %1070 = vperm.xlu0 %1069, %v330
        %v1071 = vpop.permute.xlu0 %1070
        %1074 = vset.pattern.permute.xlu0 0
        %1075 = vperm.xlu0 %1074, %v331
        %v1076 = vpop.permute.xlu0 %1075
        %1079 = vset.pattern.permute.xlu0 0
        %1080 = vperm.xlu0 %1079, %v332
        %v1081 = vpop.permute.xlu0 %1080
        %1084 = vset.pattern.permute.xlu0 0
        %1085 = vperm.xlu0 %1084, %v333
        %v1086 = vpop.permute.xlu0 %1085
        %1089 = vset.pattern.permute.xlu0 0
        %1090 = vperm.xlu0 %1089, %v334
        %v1091 = vpop.permute.xlu0 %1090
        %1094 = vset.pattern.permute.xlu0 0
        %1095 = vperm.xlu0 %1094, %v335
        %v1096 = vpop.permute.xlu0 %1095
        %1099 = vset.pattern.permute.xlu0 0
        %1100 = vperm.xlu0 %1099, %v336
        %v1101 = vpop.permute.xlu0 %1100
        %1104 = vset.pattern.permute.xlu0 0
        %1105 = vperm.xlu0 %1104, %v337
        %v1106 = vpop.permute.xlu0 %1105
        %1109 = vset.pattern.permute.xlu0 0
        %1110 = vperm.xlu0 %1109, %v338
        %v1111 = vpop.permute.xlu0 %1110
        %1114 = vset.pattern.permute.xlu0 0
        %1115 = vperm.xlu0 %1114, %v339
        %v1116 = vpop.permute.xlu0 %1115
        %1119 = vset.pattern.permute.xlu0 0
        %1120 = vperm.xlu0 %1119, %v340
        %v1121 = vpop.permute.xlu0 %1120
        %1124 = vset.pattern.permute.xlu0 0
        %1125 = vperm.xlu0 %1124, %v341
        %v1126 = vpop.permute.xlu0 %1125
        %1129 = vset.pattern.permute.xlu0 0
        %1130 = vperm.xlu0 %1129, %v342
        %v1131 = vpop.permute.xlu0 %1130
        %1134 = vset.pattern.permute.xlu0 0
        %1135 = vperm.xlu0 %1134, %v343
        %v1136 = vpop.permute.xlu0 %1135
        %1139 = vset.pattern.permute.xlu0 0
        %1140 = vperm.xlu0 %1139, %v344
        %v1141 = vpop.permute.xlu0 %1140
        %1144 = vset.pattern.permute.xlu0 0
        %1145 = vperm.xlu0 %1144, %v345
        %v1146 = vpop.permute.xlu0 %1145
        %v1148 = vmul.f32 %v1036, %v1071
        %v1149 = vmul.f32 %v1037, %v1071
        %v1150 = vmul.f32 %v1038, %v1076
        %v1151 = vmul.f32 %v1039, %v1076
        %v1152 = vmul.f32 %v1040, %v1081
        %v1153 = vmul.f32 %v1041, %v1081
        %v1154 = vmul.f32 %v1042, %v1086
        %v1155 = vmul.f32 %v1043, %v1086
        %v1156 = vmul.f32 %v1044, %v1091
        %v1157 = vmul.f32 %v1045, %v1091
        %v1158 = vmul.f32 %v1046, %v1096
        %v1159 = vmul.f32 %v1047, %v1096
        %v1160 = vmul.f32 %v1048, %v1101
        %v1161 = vmul.f32 %v1049, %v1101
        %v1162 = vmul.f32 %v1050, %v1106
        %v1163 = vmul.f32 %v1051, %v1106
        %v1164 = vmul.f32 %v1052, %v1111
        %v1165 = vmul.f32 %v1053, %v1111
        %v1166 = vmul.f32 %v1054, %v1116
        %v1167 = vmul.f32 %v1055, %v1116
        %v1168 = vmul.f32 %v1056, %v1121
        %v1169 = vmul.f32 %v1057, %v1121
        %v1170 = vmul.f32 %v1058, %v1126
        %v1171 = vmul.f32 %v1059, %v1126
        %v1172 = vmul.f32 %v1060, %v1131
        %v1173 = vmul.f32 %v1061, %v1131
        %v1174 = vmul.f32 %v1062, %v1136
        %v1175 = vmul.f32 %v1063, %v1136
        %v1176 = vmul.f32 %v1064, %v1141
        %v1177 = vmul.f32 %v1065, %v1141
        %v1178 = vmul.f32 %v1066, %v1146
        %v1179 = vmul.f32 %v1067, %v1146
        %1180 = vset.pattern.permute.xlu0 1
        %1181 = vperm.xlu0 %1180, %v330
        %v1182 = vpop.permute.xlu0 %1181
        %1184 = vset.pattern.permute.xlu0 1
        %1185 = vperm.xlu0 %1184, %v331
        %v1186 = vpop.permute.xlu0 %1185
        %1188 = vset.pattern.permute.xlu0 1
        %1189 = vperm.xlu0 %1188, %v332
        %v1190 = vpop.permute.xlu0 %1189
        %1192 = vset.pattern.permute.xlu0 1
        %1193 = vperm.xlu0 %1192, %v333
        %v1194 = vpop.permute.xlu0 %1193
        %1196 = vset.pattern.permute.xlu0 1
        %1197 = vperm.xlu0 %1196, %v334
        %v1198 = vpop.permute.xlu0 %1197
        %1200 = vset.pattern.permute.xlu0 1
        %1201 = vperm.xlu0 %1200, %v335
        %v1202 = vpop.permute.xlu0 %1201
        %1204 = vset.pattern.permute.xlu0 1
        %1205 = vperm.xlu0 %1204, %v336
        %v1206 = vpop.permute.xlu0 %1205
        %1208 = vset.pattern.permute.xlu0 1
        %1209 = vperm.xlu0 %1208, %v337
        %v1210 = vpop.permute.xlu0 %1209
        %1212 = vset.pattern.permute.xlu0 1
        %1213 = vperm.xlu0 %1212, %v338
        %v1214 = vpop.permute.xlu0 %1213
        %1216 = vset.pattern.permute.xlu0 1
        %1217 = vperm.xlu0 %1216, %v339
        %v1218 = vpop.permute.xlu0 %1217
        %1220 = vset.pattern.permute.xlu0 1
        %1221 = vperm.xlu0 %1220, %v340
        %v1222 = vpop.permute.xlu0 %1221
        %1224 = vset.pattern.permute.xlu0 1
        %1225 = vperm.xlu0 %1224, %v341
        %v1226 = vpop.permute.xlu0 %1225
        %1228 = vset.pattern.permute.xlu0 1
        %1229 = vperm.xlu0 %1228, %v342
        %v1230 = vpop.permute.xlu0 %1229
        %1232 = vset.pattern.permute.xlu0 1
        %1233 = vperm.xlu0 %1232, %v343
        %v1234 = vpop.permute.xlu0 %1233
        %1236 = vset.pattern.permute.xlu0 1
        %1237 = vperm.xlu0 %1236, %v344
        %v1238 = vpop.permute.xlu0 %1237
        %1240 = vset.pattern.permute.xlu0 1
        %1241 = vperm.xlu0 %1240, %v345
        %v1242 = vpop.permute.xlu0 %1241
        %v1244 = vadd.f32 %v1148, %v1182
        %v1245 = vadd.f32 %v1149, %v1182
        %v1246 = vadd.f32 %v1150, %v1186
        %v1247 = vadd.f32 %v1151, %v1186
        %v1248 = vadd.f32 %v1152, %v1190
        %v1249 = vadd.f32 %v1153, %v1190
        %v1250 = vadd.f32 %v1154, %v1194
        %v1251 = vadd.f32 %v1155, %v1194
        %v1252 = vadd.f32 %v1156, %v1198
        %v1253 = vadd.f32 %v1157, %v1198
        %v1254 = vadd.f32 %v1158, %v1202
        %v1255 = vadd.f32 %v1159, %v1202
        %v1256 = vadd.f32 %v1160, %v1206
        %v1257 = vadd.f32 %v1161, %v1206
        %v1258 = vadd.f32 %v1162, %v1210
        %v1259 = vadd.f32 %v1163, %v1210
        %v1260 = vadd.f32 %v1164, %v1214
        %v1261 = vadd.f32 %v1165, %v1214
        %v1262 = vadd.f32 %v1166, %v1218
        %v1263 = vadd.f32 %v1167, %v1218
        %v1264 = vadd.f32 %v1168, %v1222
        %v1265 = vadd.f32 %v1169, %v1222
        %v1266 = vadd.f32 %v1170, %v1226
        %v1267 = vadd.f32 %v1171, %v1226
        %v1268 = vadd.f32 %v1172, %v1230
        %v1269 = vadd.f32 %v1173, %v1230
        %v1270 = vadd.f32 %v1174, %v1234
        %v1271 = vadd.f32 %v1175, %v1234
        %v1272 = vadd.f32 %v1176, %v1238
        %v1273 = vadd.f32 %v1177, %v1238
        %v1274 = vadd.f32 %v1178, %v1242
        %v1275 = vadd.f32 %v1179, %v1242
        %v1276 = vpack.c.bf16 %v1246, %v1244
        %v1277 = vpack.c.bf16 %v1247, %v1245
        %v1278 = vpack.c.bf16 %v1250, %v1248
        %v1279 = vpack.c.bf16 %v1251, %v1249
        %v1280 = vpack.c.bf16 %v1254, %v1252
        %v1281 = vpack.c.bf16 %v1255, %v1253
        %v1282 = vpack.c.bf16 %v1258, %v1256
        %v1283 = vpack.c.bf16 %v1259, %v1257
        %v1284 = vpack.c.bf16 %v1262, %v1260
        %v1285 = vpack.c.bf16 %v1263, %v1261
        %v1286 = vpack.c.bf16 %v1266, %v1264
        %v1287 = vpack.c.bf16 %v1267, %v1265
        %v1288 = vpack.c.bf16 %v1270, %v1268
        %v1289 = vpack.c.bf16 %v1271, %v1269
        %v1290 = vpack.c.bf16 %v1274, %v1272
        %v1291 = vpack.c.bf16 %v1275, %v1273
        %1292 = vxpose.xlu0.c.b16.start [1/8] %v1276, 128
        %1293 = vxpose.xlu0.c.b16.cont [2/8] %v1278, 128
        %1294 = vxpose.xlu0.c.b16.cont [3/8] %v1280, 128
        %1295 = vxpose.xlu0.c.b16.cont [4/8] %v1282, 128
        %1296 = vxpose.xlu0.c.b16.cont [5/8] %v1284, 128
        %1297 = vxpose.xlu0.c.b16.cont [6/8] %v1286, 128
        %1298 = vxpose.xlu0.c.b16.cont [7/8] %v1288, 128
        %1299 = vxpose.xlu0.c.b16.end [8/8] %v1290, 128
        %v1300 = vpop.trf.xlu0
        %v1301 = vpop.trf.xlu0
        %v1302 = vpop.trf.xlu0
        %v1303 = vpop.trf.xlu0
        %v1304 = vpop.trf.xlu0
        %v1305 = vpop.trf.xlu0
        %v1306 = vpop.trf.xlu0
        %v1307 = vpop.trf.xlu0
        %1308 = vxpose.xlu0.c.b16.start [1/8] %v1277, 128
        %1309 = vxpose.xlu0.c.b16.cont [2/8] %v1279, 128
        %1310 = vxpose.xlu0.c.b16.cont [3/8] %v1281, 128
        %1311 = vxpose.xlu0.c.b16.cont [4/8] %v1283, 128
        %1312 = vxpose.xlu0.c.b16.cont [5/8] %v1285, 128
        %1313 = vxpose.xlu0.c.b16.cont [6/8] %v1287, 128
        %1314 = vxpose.xlu0.c.b16.cont [7/8] %v1289, 128
        %1315 = vxpose.xlu0.c.b16.end [8/8] %v1291, 128
        %v1316 = vpop.trf.xlu0
        %v1317 = vpop.trf.xlu0
        %v1318 = vpop.trf.xlu0
        %v1319 = vpop.trf.xlu0
        %v1320 = vpop.trf.xlu0
        %v1321 = vpop.trf.xlu0
        %v1322 = vpop.trf.xlu0
        %v1323 = vpop.trf.xlu0
        %v1324 = vld [vmem:[%s3] sm:$0xff]
        %v1325 = vld [vmem:[%s3 + $0x8] sm:$0xff]
        %v1326 = vld [vmem:[%s3 + $0x10] sm:$0xff]
        %v1327 = vld [vmem:[%s3 + $0x18] sm:$0xff]
        %v1328 = vld [vmem:[%s3 + $0x20] sm:$0xff]
        %v1329 = vld [vmem:[%s3 + $0x28] sm:$0xff]
        %v1330 = vld [vmem:[%s3 + $0x30] sm:$0xff]
        %v1331 = vld [vmem:[%s3 + $0x38] sm:$0xff]
        %v1332 = vld [vmem:[%s3 + $0x40] sm:$0xff]
        %v1333 = vld [vmem:[%s3 + $0x48] sm:$0xff]
        %v1334 = vld [vmem:[%s3 + $0x50] sm:$0xff]
        %v1335 = vld [vmem:[%s3 + $0x58] sm:$0xff]
        %v1336 = vld [vmem:[%s3 + $0x60] sm:$0xff]
        %v1337 = vld [vmem:[%s3 + $0x68] sm:$0xff]
        %v1338 = vld [vmem:[%s3 + $0x70] sm:$0xff]
        %v1339 = vld [vmem:[%s3 + $0x78] sm:$0xff]
        %v1340 = vld [vmem:[%s4] sm:$0x3]
        %v1342 = vlaneseq
        %v1343 = vshrl.u32 %v1342, 7
        %v1344 = vsub.s32 0, %v1343
        %v1345 = vrot.slane %v1340, %v1344
        %v1346 = vlaneseq
        %v1347 = vshrl.u32 %v1346, 7
        %v1348 = vsub.s32 1, %v1347
        %v1349 = vrot.slane %v1340, %v1348
        %v1368 = vunpack.c.l.b16 %v1324
        %v1369 = vunpack.c.h.b16 %v1324
        %v1370 = vunpack.c.l.b16 %v1325
        %v1371 = vunpack.c.h.b16 %v1325
        %v1372 = vunpack.c.l.b16 %v1326
        %v1373 = vunpack.c.h.b16 %v1326
        %v1374 = vunpack.c.l.b16 %v1327
        %v1375 = vunpack.c.h.b16 %v1327
        %v1376 = vunpack.c.l.b16 %v1328
        %v1377 = vunpack.c.h.b16 %v1328
        %v1378 = vunpack.c.l.b16 %v1329
        %v1379 = vunpack.c.h.b16 %v1329
        %v1380 = vunpack.c.l.b16 %v1330
        %v1381 = vunpack.c.h.b16 %v1330
        %v1382 = vunpack.c.l.b16 %v1331
        %v1383 = vunpack.c.h.b16 %v1331
        %v1384 = vunpack.c.l.b16 %v1332
        %v1385 = vunpack.c.h.b16 %v1332
        %v1386 = vunpack.c.l.b16 %v1333
        %v1387 = vunpack.c.h.b16 %v1333
        %v1388 = vunpack.c.l.b16 %v1334
        %v1389 = vunpack.c.h.b16 %v1334
        %v1390 = vunpack.c.l.b16 %v1335
        %v1391 = vunpack.c.h.b16 %v1335
        %v1392 = vunpack.c.l.b16 %v1336
        %v1393 = vunpack.c.h.b16 %v1336
        %v1394 = vunpack.c.l.b16 %v1337
        %v1395 = vunpack.c.h.b16 %v1337
        %v1396 = vunpack.c.l.b16 %v1338
        %v1397 = vunpack.c.h.b16 %v1338
        %v1398 = vunpack.c.l.b16 %v1339
        %v1399 = vunpack.c.h.b16 %v1339
        %v1400 = vpack.c.b16 %v1370, %v1368
        %v1401 = vpack.c.b16 %v1371, %v1369
        %v1402 = vpack.c.b16 %v1374, %v1372
        %v1403 = vpack.c.b16 %v1375, %v1373
        %v1404 = vpack.c.b16 %v1378, %v1376
        %v1405 = vpack.c.b16 %v1379, %v1377
        %v1406 = vpack.c.b16 %v1382, %v1380
        %v1407 = vpack.c.b16 %v1383, %v1381
        %v1408 = vpack.c.b16 %v1386, %v1384
        %v1409 = vpack.c.b16 %v1387, %v1385
        %v1410 = vpack.c.b16 %v1390, %v1388
        %v1411 = vpack.c.b16 %v1391, %v1389
        %v1412 = vpack.c.b16 %v1394, %v1392
        %v1413 = vpack.c.b16 %v1395, %v1393
        %v1414 = vpack.c.b16 %v1398, %v1396
        %v1415 = vpack.c.b16 %v1399, %v1397
        %1432 = vmatprep.subr.bf16.mxu0 %v1401
        %1433 = vmatpush1.bf16.msra.mxu0 %v1400
        %1434 = vmatprep.subr.bf16.mxu0 %v1403
        %1435 = vmatpush1.bf16.msra.mxu0 %v1402
        %1436 = vmatprep.subr.bf16.mxu0 %v1405
        %1437 = vmatpush1.bf16.msra.mxu0 %v1404
        %1438 = vmatprep.subr.bf16.mxu0 %v1407
        %1439 = vmatpush1.bf16.msra.mxu0 %v1406
        %1440 = vmatprep.subr.bf16.mxu0 %v1409
        %1441 = vmatpush1.bf16.msra.mxu0 %v1408
        %1442 = vmatprep.subr.bf16.mxu0 %v1411
        %1443 = vmatpush1.bf16.msra.mxu0 %v1410
        %1444 = vmatprep.subr.bf16.mxu0 %v1413
        %1445 = vmatpush1.bf16.msra.mxu0 %v1412
        %1446 = vmatprep.subr.bf16.mxu0 %v1415
        %1447 = vmatpush1.bf16.msra.mxu0 %v1414
        %1448 = vmatprep.subr.bf16.mxu0 0
        %1449 = vmatpush1.bf16.msra.mxu0 0
        %1450 = vmatprep.subr.bf16.mxu0 0
        %1451 = vmatpush1.bf16.msra.mxu0 0
        %1452 = vmatprep.subr.bf16.mxu0 0
        %1453 = vmatpush1.bf16.msra.mxu0 0
        %1454 = vmatprep.subr.bf16.mxu0 0
        %1455 = vmatpush1.bf16.msra.mxu0 0
        %1456 = vmatprep.subr.bf16.mxu0 0
        %1457 = vmatpush1.bf16.msra.mxu0 0
        %1458 = vmatprep.subr.bf16.mxu0 0
        %1459 = vmatpush1.bf16.msra.mxu0 0
        %1460 = vmatprep.subr.bf16.mxu0 0
        %1461 = vmatpush1.bf16.msra.mxu0 0
        %1462 = vmatprep.subr.bf16.mxu0 0
        %1463 = vmatpush1.bf16.msra.mxu0 0
        %1464 = vmatprep.mubr.bf16.mxu0 0
        %1465 = vmatmul.mubr.bf16.gmra.mrb[0].mxu0 %v1300
        %v1466 = vpop.f32.mrb[0].mxu0
        %v1467 = vadd.f32 %v1345, %v1466
        %v1468 = vpop.f32.mrb[0].mxu0
        %v1469 = vadd.f32 %v1349, %v1468
        %v1470 = vpop.f32.mrb[0].mxu0
        %v1471 = vadd.f32 %v1345, %v1470
        %v1472 = vpop.f32.mrb[0].mxu0
        %v1473 = vadd.f32 %v1349, %v1472
        %1474 = vmatprep.mubr.bf16.mxu0 0
        %1475 = vmatmul.mubr.bf16.gmra.mrb[0].mxu0 %v1301
        %v1476 = vpop.f32.mrb[0].mxu0
        %v1477 = vadd.f32 %v1345, %v1476
        %v1478 = vpop.f32.mrb[0].mxu0
        %v1479 = vadd.f32 %v1349, %v1478
        %v1480 = vpop.f32.mrb[0].mxu0
        %v1481 = vadd.f32 %v1345, %v1480
        %v1482 = vpop.f32.mrb[0].mxu0
        %v1483 = vadd.f32 %v1349, %v1482
        %1484 = vmatprep.mubr.bf16.mxu0 0
        %1485 = vmatmul.mubr.bf16.gmra.mrb[0].mxu0 %v1302
        %v1486 = vpop.f32.mrb[0].mxu0
        %v1487 = vadd.f32 %v1345, %v1486
        %v1488 = vpop.f32.mrb[0].mxu0
        %v1489 = vadd.f32 %v1349, %v1488
        %v1490 = vpop.f32.mrb[0].mxu0
        %v1491 = vadd.f32 %v1345, %v1490
        %v1492 = vpop.f32.mrb[0].mxu0
        %v1493 = vadd.f32 %v1349, %v1492
        %1494 = vmatprep.mubr.bf16.mxu0 0
        %1495 = vmatmul.mubr.bf16.gmra.mrb[0].mxu0 %v1303
        %v1496 = vpop.f32.mrb[0].mxu0
        %v1497 = vadd.f32 %v1345, %v1496
        %v1498 = vpop.f32.mrb[0].mxu0
        %v1499 = vadd.f32 %v1349, %v1498
        %v1500 = vpop.f32.mrb[0].mxu0
        %v1501 = vadd.f32 %v1345, %v1500
        %v1502 = vpop.f32.mrb[0].mxu0
        %v1503 = vadd.f32 %v1349, %v1502
        %1504 = vmatprep.mubr.bf16.mxu0 0
        %1505 = vmatmul.mubr.bf16.gmra.mrb[0].mxu0 %v1304
        %v1506 = vpop.f32.mrb[0].mxu0
        %v1507 = vadd.f32 %v1345, %v1506
        %v1508 = vpop.f32.mrb[0].mxu0
        %v1509 = vadd.f32 %v1349, %v1508
        %v1510 = vpop.f32.mrb[0].mxu0
        %v1511 = vadd.f32 %v1345, %v1510
        %v1512 = vpop.f32.mrb[0].mxu0
        %v1513 = vadd.f32 %v1349, %v1512
        %1514 = vmatprep.mubr.bf16.mxu0 0
        %1515 = vmatmul.mubr.bf16.gmra.mrb[0].mxu0 %v1305
        %v1516 = vpop.f32.mrb[0].mxu0
        %v1517 = vadd.f32 %v1345, %v1516
        %v1518 = vpop.f32.mrb[0].mxu0
        %v1519 = vadd.f32 %v1349, %v1518
        %v1520 = vpop.f32.mrb[0].mxu0
        %v1521 = vadd.f32 %v1345, %v1520
        %v1522 = vpop.f32.mrb[0].mxu0
        %v1523 = vadd.f32 %v1349, %v1522
        %1524 = vmatprep.mubr.bf16.mxu0 0
        %1525 = vmatmul.mubr.bf16.gmra.mrb[0].mxu0 %v1306
        %v1526 = vpop.f32.mrb[0].mxu0
        %v1527 = vadd.f32 %v1345, %v1526
        %v1528 = vpop.f32.mrb[0].mxu0
        %v1529 = vadd.f32 %v1349, %v1528
        %v1530 = vpop.f32.mrb[0].mxu0
        %v1531 = vadd.f32 %v1345, %v1530
        %v1532 = vpop.f32.mrb[0].mxu0
        %v1533 = vadd.f32 %v1349, %v1532
        %1534 = vmatprep.mubr.bf16.mxu0 0
        %1535 = vmatmul.mubr.bf16.gmra.mrb[0].mxu0 %v1307
        %v1536 = vpop.f32.mrb[0].mxu0
        %v1537 = vadd.f32 %v1345, %v1536
        %v1538 = vpop.f32.mrb[0].mxu0
        %v1539 = vadd.f32 %v1349, %v1538
        %v1540 = vpop.f32.mrb[0].mxu0
        %v1541 = vadd.f32 %v1345, %v1540
        %v1542 = vpop.f32.mrb[0].mxu0
        %v1543 = vadd.f32 %v1349, %v1542
        %1544 = vmatprep.mubr.bf16.mxu0 0
        %1545 = vmatmul.mubr.bf16.gmra.mrb[0].mxu0 %v1316
        %v1546 = vpop.f32.mrb[0].mxu0
        %v1547 = vadd.f32 %v1345, %v1546
        %v1548 = vpop.f32.mrb[0].mxu0
        %v1549 = vadd.f32 %v1349, %v1548
        %v1550 = vpop.f32.mrb[0].mxu0
        %v1551 = vadd.f32 %v1345, %v1550
        %v1552 = vpop.f32.mrb[0].mxu0
        %v1553 = vadd.f32 %v1349, %v1552
        %1554 = vmatprep.mubr.bf16.mxu0 0
        %1555 = vmatmul.mubr.bf16.gmra.mrb[0].mxu0 %v1317
        %v1556 = vpop.f32.mrb[0].mxu0
        %v1557 = vadd.f32 %v1345, %v1556
        %v1558 = vpop.f32.mrb[0].mxu0
        %v1559 = vadd.f32 %v1349, %v1558
        %v1560 = vpop.f32.mrb[0].mxu0
        %v1561 = vadd.f32 %v1345, %v1560
        %v1562 = vpop.f32.mrb[0].mxu0
        %v1563 = vadd.f32 %v1349, %v1562
        %1564 = vmatprep.mubr.bf16.mxu0 0
        %1565 = vmatmul.mubr.bf16.gmra.mrb[0].mxu0 %v1318
        %v1566 = vpop.f32.mrb[0].mxu0
        %v1567 = vadd.f32 %v1345, %v1566
        %v1568 = vpop.f32.mrb[0].mxu0
        %v1569 = vadd.f32 %v1349, %v1568
        %v1570 = vpop.f32.mrb[0].mxu0
        %v1571 = vadd.f32 %v1345, %v1570
        %v1572 = vpop.f32.mrb[0].mxu0
        %v1573 = vadd.f32 %v1349, %v1572
        %1574 = vmatprep.mubr.bf16.mxu0 0
        %1575 = vmatmul.mubr.bf16.gmra.mrb[0].mxu0 %v1319
        %v1576 = vpop.f32.mrb[0].mxu0
        %v1577 = vadd.f32 %v1345, %v1576
        %v1578 = vpop.f32.mrb[0].mxu0
        %v1579 = vadd.f32 %v1349, %v1578
        %v1580 = vpop.f32.mrb[0].mxu0
        %v1581 = vadd.f32 %v1345, %v1580
        %v1582 = vpop.f32.mrb[0].mxu0
        %v1583 = vadd.f32 %v1349, %v1582
        %1584 = vmatprep.mubr.bf16.mxu0 0
        %1585 = vmatmul.mubr.bf16.gmra.mrb[0].mxu0 %v1320
        %v1586 = vpop.f32.mrb[0].mxu0
        %v1587 = vadd.f32 %v1345, %v1586
        %v1588 = vpop.f32.mrb[0].mxu0
        %v1589 = vadd.f32 %v1349, %v1588
        %v1590 = vpop.f32.mrb[0].mxu0
        %v1591 = vadd.f32 %v1345, %v1590
        %v1592 = vpop.f32.mrb[0].mxu0
        %v1593 = vadd.f32 %v1349, %v1592
        %1594 = vmatprep.mubr.bf16.mxu0 0
        %1595 = vmatmul.mubr.bf16.gmra.mrb[0].mxu0 %v1321
        %v1596 = vpop.f32.mrb[0].mxu0
        %v1597 = vadd.f32 %v1345, %v1596
        %v1598 = vpop.f32.mrb[0].mxu0
        %v1599 = vadd.f32 %v1349, %v1598
        %v1600 = vpop.f32.mrb[0].mxu0
        %v1601 = vadd.f32 %v1345, %v1600
        %v1602 = vpop.f32.mrb[0].mxu0
        %v1603 = vadd.f32 %v1349, %v1602
        %1604 = vmatprep.mubr.bf16.mxu0 0
        %1605 = vmatmul.mubr.bf16.gmra.mrb[0].mxu0 %v1322
        %v1606 = vpop.f32.mrb[0].mxu0
        %v1607 = vadd.f32 %v1345, %v1606
        %v1608 = vpop.f32.mrb[0].mxu0
        %v1609 = vadd.f32 %v1349, %v1608
        %v1610 = vpop.f32.mrb[0].mxu0
        %v1611 = vadd.f32 %v1345, %v1610
        %v1612 = vpop.f32.mrb[0].mxu0
        %v1613 = vadd.f32 %v1349, %v1612
        %1614 = vmatprep.mubr.bf16.mxu0 0
        %1615 = vmatmul.mubr.bf16.gmra.mrb[0].mxu0 %v1323
        %v1616 = vpop.f32.mrb[0].mxu0
        %v1617 = vadd.f32 %v1345, %v1616
        %v1618 = vpop.f32.mrb[0].mxu0
        %v1619 = vadd.f32 %v1349, %v1618
        %v1620 = vpop.f32.mrb[0].mxu0
        %v1621 = vadd.f32 %v1345, %v1620
        %v1622 = vpop.f32.mrb[0].mxu0
        %v1623 = vadd.f32 %v1349, %v1622
        %1624 = vdwg.mxu0
        %v1625 = vpack.c.bf16 %v1471, %v1467
        %v1626 = vpack.c.bf16 %v1481, %v1477
        %v1627 = vpack.c.bf16 %v1491, %v1487
        %v1628 = vpack.c.bf16 %v1501, %v1497
        %v1629 = vpack.c.bf16 %v1511, %v1507
        %v1630 = vpack.c.bf16 %v1521, %v1517
        %v1631 = vpack.c.bf16 %v1531, %v1527
        %v1632 = vpack.c.bf16 %v1541, %v1537
        %v1633 = vpack.c.bf16 %v1551, %v1547
        %v1634 = vpack.c.bf16 %v1561, %v1557
        %v1635 = vpack.c.bf16 %v1571, %v1567
        %v1636 = vpack.c.bf16 %v1581, %v1577
        %v1637 = vpack.c.bf16 %v1591, %v1587
        %v1638 = vpack.c.bf16 %v1601, %v1597
        %v1639 = vpack.c.bf16 %v1611, %v1607
        %v1640 = vpack.c.bf16 %v1621, %v1617
        %v1641 = vpack.c.bf16 %v1473, %v1469
        %v1642 = vpack.c.bf16 %v1483, %v1479
        %v1643 = vpack.c.bf16 %v1493, %v1489
        %v1644 = vpack.c.bf16 %v1503, %v1499
        %v1645 = vpack.c.bf16 %v1513, %v1509
        %v1646 = vpack.c.bf16 %v1523, %v1519
        %v1647 = vpack.c.bf16 %v1533, %v1529
        %v1648 = vpack.c.bf16 %v1543, %v1539
        %v1649 = vpack.c.bf16 %v1553, %v1549
        %v1650 = vpack.c.bf16 %v1563, %v1559
        %v1651 = vpack.c.bf16 %v1573, %v1569
        %v1652 = vpack.c.bf16 %v1583, %v1579
        %v1653 = vpack.c.bf16 %v1593, %v1589
        %v1654 = vpack.c.bf16 %v1603, %v1599
        %v1655 = vpack.c.bf16 %v1613, %v1609
        %v1656 = vpack.c.bf16 %v1623, %v1619
        %v1657 = vld [vmem:[%s5] sm:$0xf]
        %v1658 = vld [vmem:[%s5 + $0x4] sm:$0xf]
        %v1659 = vld [vmem:[%s5 + $0x8] sm:$0xf]
        %v1660 = vld [vmem:[%s5 + $0xc] sm:$0xf]
        %v1661 = vld [vmem:[%s5 + $0x10] sm:$0xf]
        %v1662 = vld [vmem:[%s5 + $0x14] sm:$0xf]
        %v1663 = vld [vmem:[%s5 + $0x18] sm:$0xf]
        %v1664 = vld [vmem:[%s5 + $0x1c] sm:$0xf]
        %v1665 = vld [vmem:[%s5 + $0x20] sm:$0xf]
        %v1666 = vld [vmem:[%s5 + $0x24] sm:$0xf]
        %v1667 = vld [vmem:[%s5 + $0x28] sm:$0xf]
        %v1668 = vld [vmem:[%s5 + $0x2c] sm:$0xf]
        %v1669 = vld [vmem:[%s5 + $0x30] sm:$0xf]
        %v1670 = vld [vmem:[%s5 + $0x34] sm:$0xf]
        %v1671 = vld [vmem:[%s5 + $0x38] sm:$0xf]
        %v1672 = vld [vmem:[%s5 + $0x3c] sm:$0xf]
        %1673 = vset.pattern.permute.xlu0 2
        %1674 = vperm.xlu0 %1673, %v330
        %v1675 = vpop.permute.xlu0 %1674
        %1677 = vset.pattern.permute.xlu0 2
        %1678 = vperm.xlu0 %1677, %v331
        %v1679 = vpop.permute.xlu0 %1678
        %1681 = vset.pattern.permute.xlu0 2
        %1682 = vperm.xlu0 %1681, %v332
        %v1683 = vpop.permute.xlu0 %1682
        %1685 = vset.pattern.permute.xlu0 2
        %1686 = vperm.xlu0 %1685, %v333
        %v1687 = vpop.permute.xlu0 %1686
        %1689 = vset.pattern.permute.xlu0 2
        %1690 = vperm.xlu0 %1689, %v334
        %v1691 = vpop.permute.xlu0 %1690
        %1693 = vset.pattern.permute.xlu0 2
        %1694 = vperm.xlu0 %1693, %v335
        %v1695 = vpop.permute.xlu0 %1694
        %1697 = vset.pattern.permute.xlu0 2
        %1698 = vperm.xlu0 %1697, %v336
        %v1699 = vpop.permute.xlu0 %1698
        %1701 = vset.pattern.permute.xlu0 2
        %1702 = vperm.xlu0 %1701, %v337
        %v1703 = vpop.permute.xlu0 %1702
        %1705 = vset.pattern.permute.xlu0 2
        %1706 = vperm.xlu0 %1705, %v338
        %v1707 = vpop.permute.xlu0 %1706
        %1709 = vset.pattern.permute.xlu0 2
        %1710 = vperm.xlu0 %1709, %v339
        %v1711 = vpop.permute.xlu0 %1710
        %1713 = vset.pattern.permute.xlu0 2
        %1714 = vperm.xlu0 %1713, %v340
        %v1715 = vpop.permute.xlu0 %1714
        %1717 = vset.pattern.permute.xlu0 2
        %1718 = vperm.xlu0 %1717, %v341
        %v1719 = vpop.permute.xlu0 %1718
        %1721 = vset.pattern.permute.xlu0 2
        %1722 = vperm.xlu0 %1721, %v342
        %v1723 = vpop.permute.xlu0 %1722
        %1725 = vset.pattern.permute.xlu0 2
        %1726 = vperm.xlu0 %1725, %v343
        %v1727 = vpop.permute.xlu0 %1726
        %1729 = vset.pattern.permute.xlu0 2
        %1730 = vperm.xlu0 %1729, %v344
        %v1731 = vpop.permute.xlu0 %1730
        %1733 = vset.pattern.permute.xlu0 2
        %1734 = vperm.xlu0 %1733, %v345
        %v1735 = vpop.permute.xlu0 %1734
        %v1753 = vunpack.c.l.b16 %v1657
        %v1754 = vunpack.c.l.b16 %v1658
        %v1755 = vunpack.c.l.b16 %v1659
        %v1756 = vunpack.c.l.b16 %v1660
        %v1757 = vunpack.c.l.b16 %v1661
        %v1758 = vunpack.c.l.b16 %v1662
        %v1759 = vunpack.c.l.b16 %v1663
        %v1760 = vunpack.c.l.b16 %v1664
        %v1761 = vunpack.c.l.b16 %v1665
        %v1762 = vunpack.c.l.b16 %v1666
        %v1763 = vunpack.c.l.b16 %v1667
        %v1764 = vunpack.c.l.b16 %v1668
        %v1765 = vunpack.c.l.b16 %v1669
        %v1766 = vunpack.c.l.b16 %v1670
        %v1767 = vunpack.c.l.b16 %v1671
        %v1768 = vunpack.c.l.b16 %v1672
        %v1769 = vpack.c.b16 %v1754, %v1753
        %v1770 = vpack.c.b16 %v1756, %v1755
        %v1771 = vpack.c.b16 %v1758, %v1757
        %v1772 = vpack.c.b16 %v1760, %v1759
        %v1773 = vpack.c.b16 %v1762, %v1761
        %v1774 = vpack.c.b16 %v1764, %v1763
        %v1775 = vpack.c.b16 %v1766, %v1765
        %v1776 = vpack.c.b16 %v1768, %v1767
        %1785 = vmatprep.subr.bf16.mxu0 %v1277
        %1786 = vmatpush1.bf16.msra.mxu0 %v1276
        %1787 = vmatprep.subr.bf16.mxu0 %v1279
        %1788 = vmatpush1.bf16.msra.mxu0 %v1278
        %1789 = vmatprep.subr.bf16.mxu0 %v1281
        %1790 = vmatpush1.bf16.msra.mxu0 %v1280
        %1791 = vmatprep.subr.bf16.mxu0 %v1283
        %1792 = vmatpush1.bf16.msra.mxu0 %v1282
        %1793 = vmatprep.subr.bf16.mxu0 %v1285
        %1794 = vmatpush1.bf16.msra.mxu0 %v1284
        %1795 = vmatprep.subr.bf16.mxu0 %v1287
        %1796 = vmatpush1.bf16.msra.mxu0 %v1286
        %1797 = vmatprep.subr.bf16.mxu0 %v1289
        %1798 = vmatpush1.bf16.msra.mxu0 %v1288
        %1799 = vmatprep.subr.bf16.mxu0 %v1291
        %1800 = vmatpush1.bf16.msra.mxu0 %v1290
        %1801 = vmatprep.subr.bf16.mxu0 0
        %1802 = vmatpush1.bf16.msra.mxu0 0
        %1803 = vmatprep.subr.bf16.mxu0 0
        %1804 = vmatpush1.bf16.msra.mxu0 0
        %1805 = vmatprep.subr.bf16.mxu0 0
        %1806 = vmatpush1.bf16.msra.mxu0 0
        %1807 = vmatprep.subr.bf16.mxu0 0
        %1808 = vmatpush1.bf16.msra.mxu0 0
        %1809 = vmatprep.subr.bf16.mxu0 0
        %1810 = vmatpush1.bf16.msra.mxu0 0
        %1811 = vmatprep.subr.bf16.mxu0 0
        %1812 = vmatpush1.bf16.msra.mxu0 0
        %1813 = vmatprep.subr.bf16.mxu0 0
        %1814 = vmatpush1.bf16.msra.mxu0 0
        %1815 = vmatprep.subr.bf16.mxu0 0
        %1816 = vmatpush1.bf16.msra.mxu0 0
        %1817 = vmatprep.mubr.bf16.mxu0 0
        %1818 = vmatmul.mubr.bf16.gmra.mrb[0].mxu0 %v1769
        %v1819 = vpop.f32.mrb[0].mxu0
        %v1820 = vadd.f32 %v1675, %v1819
        %v1821 = vpop.f32.mrb[0].mxu0
        %v1822 = vadd.f32 %v1675, %v1821
        %v1823 = vpop.f32.mrb[0].mxu0
        %v1824 = vadd.f32 %v1679, %v1823
        %v1825 = vpop.f32.mrb[0].mxu0
        %v1826 = vadd.f32 %v1679, %v1825
        %1827 = vmatprep.mubr.bf16.mxu0 0
        %1828 = vmatmul.mubr.bf16.gmra.mrb[0].mxu0 %v1770
        %v1829 = vpop.f32.mrb[0].mxu0
        %v1830 = vadd.f32 %v1683, %v1829
        %v1831 = vpop.f32.mrb[0].mxu0
        %v1832 = vadd.f32 %v1683, %v1831
        %v1833 = vpop.f32.mrb[0].mxu0
        %v1834 = vadd.f32 %v1687, %v1833
        %v1835 = vpop.f32.mrb[0].mxu0
        %v1836 = vadd.f32 %v1687, %v1835
        %1837 = vmatprep.mubr.bf16.mxu0 0
        %1838 = vmatmul.mubr.bf16.gmra.mrb[0].mxu0 %v1771
        %v1839 = vpop.f32.mrb[0].mxu0
        %v1840 = vadd.f32 %v1691, %v1839
        %v1841 = vpop.f32.mrb[0].mxu0
        %v1842 = vadd.f32 %v1691, %v1841
        %v1843 = vpop.f32.mrb[0].mxu0
        %v1844 = vadd.f32 %v1695, %v1843
        %v1845 = vpop.f32.mrb[0].mxu0
        %v1846 = vadd.f32 %v1695, %v1845
        %1847 = vmatprep.mubr.bf16.mxu0 0
        %1848 = vmatmul.mubr.bf16.gmra.mrb[0].mxu0 %v1772
        %v1849 = vpop.f32.mrb[0].mxu0
        %v1850 = vadd.f32 %v1699, %v1849
        %v1851 = vpop.f32.mrb[0].mxu0
        %v1852 = vadd.f32 %v1699, %v1851
        %v1853 = vpop.f32.mrb[0].mxu0
        %v1854 = vadd.f32 %v1703, %v1853
        %v1855 = vpop.f32.mrb[0].mxu0
        %v1856 = vadd.f32 %v1703, %v1855
        %1857 = vmatprep.mubr.bf16.mxu0 0
        %1858 = vmatmul.mubr.bf16.gmra.mrb[0].mxu0 %v1773
        %v1859 = vpop.f32.mrb[0].mxu0
        %v1860 = vadd.f32 %v1707, %v1859
        %v1861 = vpop.f32.mrb[0].mxu0
        %v1862 = vadd.f32 %v1707, %v1861
        %v1863 = vpop.f32.mrb[0].mxu0
        %v1864 = vadd.f32 %v1711, %v1863
        %v1865 = vpop.f32.mrb[0].mxu0
        %v1866 = vadd.f32 %v1711, %v1865
        %1867 = vmatprep.mubr.bf16.mxu0 0
        %1868 = vmatmul.mubr.bf16.gmra.mrb[0].mxu0 %v1774
        %v1869 = vpop.f32.mrb[0].mxu0
        %v1870 = vadd.f32 %v1715, %v1869
        %v1871 = vpop.f32.mrb[0].mxu0
        %v1872 = vadd.f32 %v1715, %v1871
        %v1873 = vpop.f32.mrb[0].mxu0
        %v1874 = vadd.f32 %v1719, %v1873
        %v1875 = vpop.f32.mrb[0].mxu0
        %v1876 = vadd.f32 %v1719, %v1875
        %1877 = vmatprep.mubr.bf16.mxu0 0
        %1878 = vmatmul.mubr.bf16.gmra.mrb[0].mxu0 %v1775
        %v1879 = vpop.f32.mrb[0].mxu0
        %v1880 = vadd.f32 %v1723, %v1879
        %v1881 = vpop.f32.mrb[0].mxu0
        %v1882 = vadd.f32 %v1723, %v1881
        %v1883 = vpop.f32.mrb[0].mxu0
        %v1884 = vadd.f32 %v1727, %v1883
        %v1885 = vpop.f32.mrb[0].mxu0
        %v1886 = vadd.f32 %v1727, %v1885
        %1887 = vmatprep.mubr.bf16.mxu0 0
        %1888 = vmatmul.mubr.bf16.gmra.mrb[0].mxu0 %v1776
        %v1889 = vpop.f32.mrb[0].mxu0
        %v1890 = vadd.f32 %v1731, %v1889
        %v1891 = vpop.f32.mrb[0].mxu0
        %v1892 = vadd.f32 %v1731, %v1891
        %v1893 = vpop.f32.mrb[0].mxu0
        %v1894 = vadd.f32 %v1735, %v1893
        %v1895 = vpop.f32.mrb[0].mxu0
        %v1896 = vadd.f32 %v1735, %v1895
        %1897 = vdwg.mxu0
        %v1898 = vpack.c.bf16 %v1824, %v1820
        %v1899 = vpack.c.bf16 %v1826, %v1822
        %v1900 = vpack.c.bf16 %v1834, %v1830
        %v1901 = vpack.c.bf16 %v1836, %v1832
        %v1902 = vpack.c.bf16 %v1844, %v1840
        %v1903 = vpack.c.bf16 %v1846, %v1842
        %v1904 = vpack.c.bf16 %v1854, %v1850
        %v1905 = vpack.c.bf16 %v1856, %v1852
        %v1906 = vpack.c.bf16 %v1864, %v1860
        %v1907 = vpack.c.bf16 %v1866, %v1862
        %v1908 = vpack.c.bf16 %v1874, %v1870
        %v1909 = vpack.c.bf16 %v1876, %v1872
        %v1910 = vpack.c.bf16 %v1884, %v1880
        %v1911 = vpack.c.bf16 %v1886, %v1882
        %v1912 = vpack.c.bf16 %v1894, %v1890
        %v1913 = vpack.c.bf16 %v1896, %v1892
        %1914 = vmatprep.subr.bf16.mxu0 %v1899
        %1915 = vmatpush1.bf16.msra.mxu0 %v1898
        %1916 = vmatprep.subr.bf16.mxu0 %v1901
        %1917 = vmatpush1.bf16.msra.mxu0 %v1900
        %1918 = vmatprep.subr.bf16.mxu0 %v1903
        %1919 = vmatpush1.bf16.msra.mxu0 %v1902
        %1920 = vmatprep.subr.bf16.mxu0 %v1905
        %1921 = vmatpush1.bf16.msra.mxu0 %v1904
        %1922 = vmatprep.subr.bf16.mxu0 %v1907
        %1923 = vmatpush1.bf16.msra.mxu0 %v1906
        %1924 = vmatprep.subr.bf16.mxu0 %v1909
        %1925 = vmatpush1.bf16.msra.mxu0 %v1908
        %1926 = vmatprep.subr.bf16.mxu0 %v1911
        %1927 = vmatpush1.bf16.msra.mxu0 %v1910
        %1928 = vmatprep.subr.bf16.mxu0 %v1913
        %1929 = vmatpush1.bf16.msra.mxu0 %v1912
        %1930 = vmatprep.subr.bf16.mxu0 0
        %1931 = vmatpush1.bf16.msra.mxu0 0
        %1932 = vmatprep.subr.bf16.mxu0 0
        %1933 = vmatpush1.bf16.msra.mxu0 0
        %1934 = vmatprep.subr.bf16.mxu0 0
        %1935 = vmatpush1.bf16.msra.mxu0 0
        %1936 = vmatprep.subr.bf16.mxu0 0
        %1937 = vmatpush1.bf16.msra.mxu0 0
        %1938 = vmatprep.subr.bf16.mxu0 0
        %1939 = vmatpush1.bf16.msra.mxu0 0
        %1940 = vmatprep.subr.bf16.mxu0 0
        %1941 = vmatpush1.bf16.msra.mxu0 0
        %1942 = vmatprep.subr.bf16.mxu0 0
        %1943 = vmatpush1.bf16.msra.mxu0 0
        %1944 = vmatprep.subr.bf16.mxu0 0
        %1945 = vmatpush1.bf16.msra.mxu0 0
        %1946 = vmatprep.mubr.bf16.mxu0 0
        %1947 = vmatmul.mubr.bf16.gmra.mrb[0].mxu0 %v1625
        %v1948 = vpop.f32.mrb[0].mxu0
        %v1949 = vadd.f32 0.0, %v1948
        %v1950 = vpop.f32.mrb[0].mxu0
        %v1951 = vadd.f32 0.0, %v1950
        %v1952 = vpop.f32.mrb[0].mxu0
        %v1953 = vadd.f32 0.0, %v1952
        %v1954 = vpop.f32.mrb[0].mxu0
        %v1955 = vadd.f32 0.0, %v1954
        %1956 = vmatprep.mubr.bf16.mxu0 0
        %1957 = vmatmul.mubr.bf16.gmra.mrb[0].mxu0 %v1626
        %v1958 = vpop.f32.mrb[0].mxu0
        %v1959 = vadd.f32 0.0, %v1958
        %v1960 = vpop.f32.mrb[0].mxu0
        %v1961 = vadd.f32 0.0, %v1960
        %v1962 = vpop.f32.mrb[0].mxu0
        %v1963 = vadd.f32 0.0, %v1962
        %v1964 = vpop.f32.mrb[0].mxu0
        %v1965 = vadd.f32 0.0, %v1964
        %1966 = vmatprep.mubr.bf16.mxu0 0
        %1967 = vmatmul.mubr.bf16.gmra.mrb[0].mxu0 %v1627
        %v1968 = vpop.f32.mrb[0].mxu0
        %v1969 = vadd.f32 0.0, %v1968
        %v1970 = vpop.f32.mrb[0].mxu0
        %v1971 = vadd.f32 0.0, %v1970
        %v1972 = vpop.f32.mrb[0].mxu0
        %v1973 = vadd.f32 0.0, %v1972
        %v1974 = vpop.f32.mrb[0].mxu0
        %v1975 = vadd.f32 0.0, %v1974
        %1976 = vmatprep.mubr.bf16.mxu0 0
        %1977 = vmatmul.mubr.bf16.gmra.mrb[0].mxu0 %v1628
        %v1978 = vpop.f32.mrb[0].mxu0
        %v1979 = vadd.f32 0.0, %v1978
        %v1980 = vpop.f32.mrb[0].mxu0
        %v1981 = vadd.f32 0.0, %v1980
        %v1982 = vpop.f32.mrb[0].mxu0
        %v1983 = vadd.f32 0.0, %v1982
        %v1984 = vpop.f32.mrb[0].mxu0
        %v1985 = vadd.f32 0.0, %v1984
        %1986 = vmatprep.mubr.bf16.mxu0 0
        %1987 = vmatmul.mubr.bf16.gmra.mrb[0].mxu0 %v1629
        %v1988 = vpop.f32.mrb[0].mxu0
        %v1989 = vadd.f32 0.0, %v1988
        %v1990 = vpop.f32.mrb[0].mxu0
        %v1991 = vadd.f32 0.0, %v1990
        %v1992 = vpop.f32.mrb[0].mxu0
        %v1993 = vadd.f32 0.0, %v1992
        %v1994 = vpop.f32.mrb[0].mxu0
        %v1995 = vadd.f32 0.0, %v1994
        %1996 = vmatprep.mubr.bf16.mxu0 0
        %1997 = vmatmul.mubr.bf16.gmra.mrb[0].mxu0 %v1630
        %v1998 = vpop.f32.mrb[0].mxu0
        %v1999 = vadd.f32 0.0, %v1998
        %v2000 = vpop.f32.mrb[0].mxu0
        %v2001 = vadd.f32 0.0, %v2000
        %v2002 = vpop.f32.mrb[0].mxu0
        %v2003 = vadd.f32 0.0, %v2002
        %v2004 = vpop.f32.mrb[0].mxu0
        %v2005 = vadd.f32 0.0, %v2004
        %2006 = vmatprep.mubr.bf16.mxu0 0
        %2007 = vmatmul.mubr.bf16.gmra.mrb[0].mxu0 %v1631
        %v2008 = vpop.f32.mrb[0].mxu0
        %v2009 = vadd.f32 0.0, %v2008
        %v2010 = vpop.f32.mrb[0].mxu0
        %v2011 = vadd.f32 0.0, %v2010
        %v2012 = vpop.f32.mrb[0].mxu0
        %v2013 = vadd.f32 0.0, %v2012
        %v2014 = vpop.f32.mrb[0].mxu0
        %v2015 = vadd.f32 0.0, %v2014
        %2016 = vmatprep.mubr.bf16.mxu0 0
        %2017 = vmatmul.mubr.bf16.gmra.mrb[0].mxu0 %v1632
        %v2018 = vpop.f32.mrb[0].mxu0
        %v2019 = vadd.f32 0.0, %v2018
        %v2020 = vpop.f32.mrb[0].mxu0
        %v2021 = vadd.f32 0.0, %v2020
        %v2022 = vpop.f32.mrb[0].mxu0
        %v2023 = vadd.f32 0.0, %v2022
        %v2024 = vpop.f32.mrb[0].mxu0
        %v2025 = vadd.f32 0.0, %v2024
        %2026 = vmatprep.mubr.bf16.mxu0 0
        %2027 = vmatmul.mubr.bf16.gmra.mrb[0].mxu0 %v1633
        %v2028 = vpop.f32.mrb[0].mxu0
        %v2029 = vadd.f32 0.0, %v2028
        %v2030 = vpop.f32.mrb[0].mxu0
        %v2031 = vadd.f32 0.0, %v2030
        %v2032 = vpop.f32.mrb[0].mxu0
        %v2033 = vadd.f32 0.0, %v2032
        %v2034 = vpop.f32.mrb[0].mxu0
        %v2035 = vadd.f32 0.0, %v2034
        %2036 = vmatprep.mubr.bf16.mxu0 0
        %2037 = vmatmul.mubr.bf16.gmra.mrb[0].mxu0 %v1634
        %v2038 = vpop.f32.mrb[0].mxu0
        %v2039 = vadd.f32 0.0, %v2038
        %v2040 = vpop.f32.mrb[0].mxu0
        %v2041 = vadd.f32 0.0, %v2040
        %v2042 = vpop.f32.mrb[0].mxu0
        %v2043 = vadd.f32 0.0, %v2042
        %v2044 = vpop.f32.mrb[0].mxu0
        %v2045 = vadd.f32 0.0, %v2044
        %2046 = vmatprep.mubr.bf16.mxu0 0
        %2047 = vmatmul.mubr.bf16.gmra.mrb[0].mxu0 %v1635
        %v2048 = vpop.f32.mrb[0].mxu0
        %v2049 = vadd.f32 0.0, %v2048
        %v2050 = vpop.f32.mrb[0].mxu0
        %v2051 = vadd.f32 0.0, %v2050
        %v2052 = vpop.f32.mrb[0].mxu0
        %v2053 = vadd.f32 0.0, %v2052
        %v2054 = vpop.f32.mrb[0].mxu0
        %v2055 = vadd.f32 0.0, %v2054
        %2056 = vmatprep.mubr.bf16.mxu0 0
        %2057 = vmatmul.mubr.bf16.gmra.mrb[0].mxu0 %v1636
        %v2058 = vpop.f32.mrb[0].mxu0
        %v2059 = vadd.f32 0.0, %v2058
        %v2060 = vpop.f32.mrb[0].mxu0
        %v2061 = vadd.f32 0.0, %v2060
        %v2062 = vpop.f32.mrb[0].mxu0
        %v2063 = vadd.f32 0.0, %v2062
        %v2064 = vpop.f32.mrb[0].mxu0
        %v2065 = vadd.f32 0.0, %v2064
        %2066 = vmatprep.mubr.bf16.mxu0 0
        %2067 = vmatmul.mubr.bf16.gmra.mrb[0].mxu0 %v1637
        %v2068 = vpop.f32.mrb[0].mxu0
        %v2069 = vadd.f32 0.0, %v2068
        %v2070 = vpop.f32.mrb[0].mxu0
        %v2071 = vadd.f32 0.0, %v2070
        %v2072 = vpop.f32.mrb[0].mxu0
        %v2073 = vadd.f32 0.0, %v2072
        %v2074 = vpop.f32.mrb[0].mxu0
        %v2075 = vadd.f32 0.0, %v2074
        %2076 = vmatprep.mubr.bf16.mxu0 0
        %2077 = vmatmul.mubr.bf16.gmra.mrb[0].mxu0 %v1638
        %v2078 = vpop.f32.mrb[0].mxu0
        %v2079 = vadd.f32 0.0, %v2078
        %v2080 = vpop.f32.mrb[0].mxu0
        %v2081 = vadd.f32 0.0, %v2080
        %v2082 = vpop.f32.mrb[0].mxu0
        %v2083 = vadd.f32 0.0, %v2082
        %v2084 = vpop.f32.mrb[0].mxu0
        %v2085 = vadd.f32 0.0, %v2084
        %2086 = vmatprep.mubr.bf16.mxu0 0
        %2087 = vmatmul.mubr.bf16.gmra.mrb[0].mxu0 %v1639
        %v2088 = vpop.f32.mrb[0].mxu0
        %v2089 = vadd.f32 0.0, %v2088
        %v2090 = vpop.f32.mrb[0].mxu0
        %v2091 = vadd.f32 0.0, %v2090
        %v2092 = vpop.f32.mrb[0].mxu0
        %v2093 = vadd.f32 0.0, %v2092
        %v2094 = vpop.f32.mrb[0].mxu0
        %v2095 = vadd.f32 0.0, %v2094
        %2096 = vmatprep.mubr.bf16.mxu0 0
        %2097 = vmatmul.mubr.bf16.gmra.mrb[0].mxu0 %v1640
        %v2098 = vpop.f32.mrb[0].mxu0
        %v2099 = vadd.f32 0.0, %v2098
        %v2100 = vpop.f32.mrb[0].mxu0
        %v2101 = vadd.f32 0.0, %v2100
        %v2102 = vpop.f32.mrb[0].mxu0
        %v2103 = vadd.f32 0.0, %v2102
        %v2104 = vpop.f32.mrb[0].mxu0
        %v2105 = vadd.f32 0.0, %v2104
        %2106 = vdwg.mxu0
        %v2107 = vmax.f32 %v1949, %v1951
        %2108 = vmax.xlane.f32.xlu0 %v2107
        %v2109 = vpop.xlane.xlu0 %2108
        %v2110 = vmax.f32 %v1953, %v1955
        %2111 = vmax.xlane.f32.xlu0 %v2110
        %v2112 = vpop.xlane.xlu0 %2111
        %v2113 = vmax.f32 %v1959, %v1961
        %2114 = vmax.xlane.f32.xlu0 %v2113
        %v2115 = vpop.xlane.xlu0 %2114
        %v2116 = vmax.f32 %v1963, %v1965
        %2117 = vmax.xlane.f32.xlu0 %v2116
        %v2118 = vpop.xlane.xlu0 %2117
        %v2119 = vmax.f32 %v1969, %v1971
        %2120 = vmax.xlane.f32.xlu0 %v2119
        %v2121 = vpop.xlane.xlu0 %2120
        %v2122 = vmax.f32 %v1973, %v1975
        %2123 = vmax.xlane.f32.xlu0 %v2122
        %v2124 = vpop.xlane.xlu0 %2123
        %v2125 = vmax.f32 %v1979, %v1981
        %2126 = vmax.xlane.f32.xlu0 %v2125
        %v2127 = vpop.xlane.xlu0 %2126
        %v2128 = vmax.f32 %v1983, %v1985
        %2129 = vmax.xlane.f32.xlu0 %v2128
        %v2130 = vpop.xlane.xlu0 %2129
        %v2131 = vmax.f32 %v1989, %v1991
        %2132 = vmax.xlane.f32.xlu0 %v2131
        %v2133 = vpop.xlane.xlu0 %2132
        %v2134 = vmax.f32 %v1993, %v1995
        %2135 = vmax.xlane.f32.xlu0 %v2134
        %v2136 = vpop.xlane.xlu0 %2135
        %v2137 = vmax.f32 %v1999, %v2001
        %2138 = vmax.xlane.f32.xlu0 %v2137
        %v2139 = vpop.xlane.xlu0 %2138
        %v2140 = vmax.f32 %v2003, %v2005
        %2141 = vmax.xlane.f32.xlu0 %v2140
        %v2142 = vpop.xlane.xlu0 %2141
        %v2143 = vmax.f32 %v2009, %v2011
        %2144 = vmax.xlane.f32.xlu0 %v2143
        %v2145 = vpop.xlane.xlu0 %2144
        %v2146 = vmax.f32 %v2013, %v2015
        %2147 = vmax.xlane.f32.xlu0 %v2146
        %v2148 = vpop.xlane.xlu0 %2147
        %v2149 = vmax.f32 %v2019, %v2021
        %2150 = vmax.xlane.f32.xlu0 %v2149
        %v2151 = vpop.xlane.xlu0 %2150
        %v2152 = vmax.f32 %v2023, %v2025
        %2153 = vmax.xlane.f32.xlu0 %v2152
        %v2154 = vpop.xlane.xlu0 %2153
        %v2155 = vmax.f32 %v2029, %v2031
        %2156 = vmax.xlane.f32.xlu0 %v2155
        %v2157 = vpop.xlane.xlu0 %2156
        %v2158 = vmax.f32 %v2033, %v2035
        %2159 = vmax.xlane.f32.xlu0 %v2158
        %v2160 = vpop.xlane.xlu0 %2159
        %v2161 = vmax.f32 %v2039, %v2041
        %2162 = vmax.xlane.f32.xlu0 %v2161
        %v2163 = vpop.xlane.xlu0 %2162
        %v2164 = vmax.f32 %v2043, %v2045
        %2165 = vmax.xlane.f32.xlu0 %v2164
        %v2166 = vpop.xlane.xlu0 %2165
        %v2167 = vmax.f32 %v2049, %v2051
        %2168 = vmax.xlane.f32.xlu0 %v2167
        %v2169 = vpop.xlane.xlu0 %2168
        %v2170 = vmax.f32 %v2053, %v2055
        %2171 = vmax.xlane.f32.xlu0 %v2170
        %v2172 = vpop.xlane.xlu0 %2171
        %v2173 = vmax.f32 %v2059, %v2061
        %2174 = vmax.xlane.f32.xlu0 %v2173
        %v2175 = vpop.xlane.xlu0 %2174
        %v2176 = vmax.f32 %v2063, %v2065
        %2177 = vmax.xlane.f32.xlu0 %v2176
        %v2178 = vpop.xlane.xlu0 %2177
        %v2179 = vmax.f32 %v2069, %v2071
        %2180 = vmax.xlane.f32.xlu0 %v2179
        %v2181 = vpop.xlane.xlu0 %2180
        %v2182 = vmax.f32 %v2073, %v2075
        %2183 = vmax.xlane.f32.xlu0 %v2182
        %v2184 = vpop.xlane.xlu0 %2183
        %v2185 = vmax.f32 %v2079, %v2081
        %2186 = vmax.xlane.f32.xlu0 %v2185
        %v2187 = vpop.xlane.xlu0 %2186
        %v2188 = vmax.f32 %v2083, %v2085
        %2189 = vmax.xlane.f32.xlu0 %v2188
        %v2190 = vpop.xlane.xlu0 %2189
        %v2191 = vmax.f32 %v2089, %v2091
        %2192 = vmax.xlane.f32.xlu0 %v2191
        %v2193 = vpop.xlane.xlu0 %2192
        %v2194 = vmax.f32 %v2093, %v2095
        %2195 = vmax.xlane.f32.xlu0 %v2194
        %v2196 = vpop.xlane.xlu0 %2195
        %v2197 = vmax.f32 %v2099, %v2101
        %2198 = vmax.xlane.f32.xlu0 %v2197
        %v2199 = vpop.xlane.xlu0 %2198
        %v2200 = vmax.f32 %v2103, %v2105
        %2201 = vmax.xlane.f32.xlu0 %v2200
        %v2202 = vpop.xlane.xlu0 %2201
        %v2203 = vsub.f32 %v1949, %v2109
        %v2204 = vsub.f32 %v1951, %v2109
        %v2205 = vsub.f32 %v1953, %v2112
        %v2206 = vsub.f32 %v1955, %v2112
        %v2207 = vsub.f32 %v1959, %v2115
        %v2208 = vsub.f32 %v1961, %v2115
        %v2209 = vsub.f32 %v1963, %v2118
        %v2210 = vsub.f32 %v1965, %v2118
        %v2211 = vsub.f32 %v1969, %v2121
        %v2212 = vsub.f32 %v1971, %v2121
        %v2213 = vsub.f32 %v1973, %v2124
        %v2214 = vsub.f32 %v1975, %v2124
        %v2215 = vsub.f32 %v1979, %v2127
        %v2216 = vsub.f32 %v1981, %v2127
        %v2217 = vsub.f32 %v1983, %v2130
        %v2218 = vsub.f32 %v1985, %v2130
        %v2219 = vsub.f32 %v1989, %v2133
        %v2220 = vsub.f32 %v1991, %v2133
        %v2221 = vsub.f32 %v1993, %v2136
        %v2222 = vsub.f32 %v1995, %v2136
        %v2223 = vsub.f32 %v1999, %v2139
        %v2224 = vsub.f32 %v2001, %v2139
        %v2225 = vsub.f32 %v2003, %v2142
        %v2226 = vsub.f32 %v2005, %v2142
        %v2227 = vsub.f32 %v2009, %v2145
        %v2228 = vsub.f32 %v2011, %v2145
        %v2229 = vsub.f32 %v2013, %v2148
        %v2230 = vsub.f32 %v2015, %v2148
        %v2231 = vsub.f32 %v2019, %v2151
        %v2232 = vsub.f32 %v2021, %v2151
        %v2233 = vsub.f32 %v2023, %v2154
        %v2234 = vsub.f32 %v2025, %v2154
        %v2235 = vsub.f32 %v2029, %v2157
        %v2236 = vsub.f32 %v2031, %v2157
        %v2237 = vsub.f32 %v2033, %v2160
        %v2238 = vsub.f32 %v2035, %v2160
        %v2239 = vsub.f32 %v2039, %v2163
        %v2240 = vsub.f32 %v2041, %v2163
        %v2241 = vsub.f32 %v2043, %v2166
        %v2242 = vsub.f32 %v2045, %v2166
        %v2243 = vsub.f32 %v2049, %v2169
        %v2244 = vsub.f32 %v2051, %v2169
        %v2245 = vsub.f32 %v2053, %v2172
        %v2246 = vsub.f32 %v2055, %v2172
        %v2247 = vsub.f32 %v2059, %v2175
        %v2248 = vsub.f32 %v2061, %v2175
        %v2249 = vsub.f32 %v2063, %v2178
        %v2250 = vsub.f32 %v2065, %v2178
        %v2251 = vsub.f32 %v2069, %v2181
        %v2252 = vsub.f32 %v2071, %v2181
        %v2253 = vsub.f32 %v2073, %v2184
        %v2254 = vsub.f32 %v2075, %v2184
        %v2255 = vsub.f32 %v2079, %v2187
        %v2256 = vsub.f32 %v2081, %v2187
        %v2257 = vsub.f32 %v2083, %v2190
        %v2258 = vsub.f32 %v2085, %v2190
        %v2259 = vsub.f32 %v2089, %v2193
        %v2260 = vsub.f32 %v2091, %v2193
        %v2261 = vsub.f32 %v2093, %v2196
        %v2262 = vsub.f32 %v2095, %v2196
        %v2263 = vsub.f32 %v2099, %v2199
        %v2264 = vsub.f32 %v2101, %v2199
        %v2265 = vsub.f32 %v2103, %v2202
        %v2266 = vsub.f32 %v2105, %v2202
        %v2267 = vmul.f32 %v2203, 1.442695
        %v2268 = vpow.pop %v2267
        %v2269 = vmul.f32 %v2204, 1.442695
        %v2270 = vpow.pop %v2269
        %v2271 = vmul.f32 %v2205, 1.442695
        %v2272 = vpow.pop %v2271
        %v2273 = vmul.f32 %v2206, 1.442695
        %v2274 = vpow.pop %v2273
        %v2275 = vmul.f32 %v2207, 1.442695
        %v2276 = vpow.pop %v2275
        %v2277 = vmul.f32 %v2208, 1.442695
        %v2278 = vpow.pop %v2277
        %v2279 = vmul.f32 %v2209, 1.442695
        %v2280 = vpow.pop %v2279
        %v2281 = vmul.f32 %v2210, 1.442695
        %v2282 = vpow.pop %v2281
        %v2283 = vmul.f32 %v2211, 1.442695
        %v2284 = vpow.pop %v2283
        %v2285 = vmul.f32 %v2212, 1.442695
        %v2286 = vpow.pop %v2285
        %v2287 = vmul.f32 %v2213, 1.442695
        %v2288 = vpow.pop %v2287
        %v2289 = vmul.f32 %v2214, 1.442695
        %v2290 = vpow.pop %v2289
        %v2291 = vmul.f32 %v2215, 1.442695
        %v2292 = vpow.pop %v2291
        %v2293 = vmul.f32 %v2216, 1.442695
        %v2294 = vpow.pop %v2293
        %v2295 = vmul.f32 %v2217, 1.442695
        %v2296 = vpow.pop %v2295
        %v2297 = vmul.f32 %v2218, 1.442695
        %v2298 = vpow.pop %v2297
        %v2299 = vmul.f32 %v2219, 1.442695
        %v2300 = vpow.pop %v2299
        %v2301 = vmul.f32 %v2220, 1.442695
        %v2302 = vpow.pop %v2301
        %v2303 = vmul.f32 %v2221, 1.442695
        %v2304 = vpow.pop %v2303
        %v2305 = vmul.f32 %v2222, 1.442695
        %v2306 = vpow.pop %v2305
        %v2307 = vmul.f32 %v2223, 1.442695
        %v2308 = vpow.pop %v2307
        %v2309 = vmul.f32 %v2224, 1.442695
        %v2310 = vpow.pop %v2309
        %v2311 = vmul.f32 %v2225, 1.442695
        %v2312 = vpow.pop %v2311
        %v2313 = vmul.f32 %v2226, 1.442695
        %v2314 = vpow.pop %v2313
        %v2315 = vmul.f32 %v2227, 1.442695
        %v2316 = vpow.pop %v2315
        %v2317 = vmul.f32 %v2228, 1.442695
        %v2318 = vpow.pop %v2317
        %v2319 = vmul.f32 %v2229, 1.442695
        %v2320 = vpow.pop %v2319
        %v2321 = vmul.f32 %v2230, 1.442695
        %v2322 = vpow.pop %v2321
        %v2323 = vmul.f32 %v2231, 1.442695
        %v2324 = vpow.pop %v2323
        %v2325 = vmul.f32 %v2232, 1.442695
        %v2326 = vpow.pop %v2325
        %v2327 = vmul.f32 %v2233, 1.442695
        %v2328 = vpow.pop %v2327
        %v2329 = vmul.f32 %v2234, 1.442695
        %v2330 = vpow.pop %v2329
        %v2331 = vmul.f32 %v2235, 1.442695
        %v2332 = vpow.pop %v2331
        %v2333 = vmul.f32 %v2236, 1.442695
        %v2334 = vpow.pop %v2333
        %v2335 = vmul.f32 %v2237, 1.442695
        %v2336 = vpow.pop %v2335
        %v2337 = vmul.f32 %v2238, 1.442695
        %v2338 = vpow.pop %v2337
        %v2339 = vmul.f32 %v2239, 1.442695
        %v2340 = vpow.pop %v2339
        %v2341 = vmul.f32 %v2240, 1.442695
        %v2342 = vpow.pop %v2341
        %v2343 = vmul.f32 %v2241, 1.442695
        %v2344 = vpow.pop %v2343
        %v2345 = vmul.f32 %v2242, 1.442695
        %v2346 = vpow.pop %v2345
        %v2347 = vmul.f32 %v2243, 1.442695
        %v2348 = vpow.pop %v2347
        %v2349 = vmul.f32 %v2244, 1.442695
        %v2350 = vpow.pop %v2349
        %v2351 = vmul.f32 %v2245, 1.442695
        %v2352 = vpow.pop %v2351
        %v2353 = vmul.f32 %v2246, 1.442695
        %v2354 = vpow.pop %v2353
        %v2355 = vmul.f32 %v2247, 1.442695
        %v2356 = vpow.pop %v2355
        %v2357 = vmul.f32 %v2248, 1.442695
        %v2358 = vpow.pop %v2357
        %v2359 = vmul.f32 %v2249, 1.442695
        %v2360 = vpow.pop %v2359
        %v2361 = vmul.f32 %v2250, 1.442695
        %v2362 = vpow.pop %v2361
        %v2363 = vmul.f32 %v2251, 1.442695
        %v2364 = vpow.pop %v2363
        %v2365 = vmul.f32 %v2252, 1.442695
        %v2366 = vpow.pop %v2365
        %v2367 = vmul.f32 %v2253, 1.442695
        %v2368 = vpow.pop %v2367
        %v2369 = vmul.f32 %v2254, 1.442695
        %v2370 = vpow.pop %v2369
        %v2371 = vmul.f32 %v2255, 1.442695
        %v2372 = vpow.pop %v2371
        %v2373 = vmul.f32 %v2256, 1.442695
        %v2374 = vpow.pop %v2373
        %v2375 = vmul.f32 %v2257, 1.442695
        %v2376 = vpow.pop %v2375
        %v2377 = vmul.f32 %v2258, 1.442695
        %v2378 = vpow.pop %v2377
        %v2379 = vmul.f32 %v2259, 1.442695
        %v2380 = vpow.pop %v2379
        %v2381 = vmul.f32 %v2260, 1.442695
        %v2382 = vpow.pop %v2381
        %v2383 = vmul.f32 %v2261, 1.442695
        %v2384 = vpow.pop %v2383
        %v2385 = vmul.f32 %v2262, 1.442695
        %v2386 = vpow.pop %v2385
        %v2387 = vmul.f32 %v2263, 1.442695
        %v2388 = vpow.pop %v2387
        %v2389 = vmul.f32 %v2264, 1.442695
        %v2390 = vpow.pop %v2389
        %v2391 = vmul.f32 %v2265, 1.442695
        %v2392 = vpow.pop %v2391
        %v2393 = vmul.f32 %v2266, 1.442695
        %v2394 = vpow.pop %v2393
        %v2395 = vadd.f32 %v2268, %v2270
        %2396 = vadd.xlane.f32.xlu0 %v2395
        %v2397 = vpop.xlane.xlu0 %2396
        %v2398 = vadd.f32 %v2272, %v2274
        %2399 = vadd.xlane.f32.xlu0 %v2398
        %v2400 = vpop.xlane.xlu0 %2399
        %v2401 = vadd.f32 %v2276, %v2278
        %2402 = vadd.xlane.f32.xlu0 %v2401
        %v2403 = vpop.xlane.xlu0 %2402
        %v2404 = vadd.f32 %v2280, %v2282
        %2405 = vadd.xlane.f32.xlu0 %v2404
        %v2406 = vpop.xlane.xlu0 %2405
        %v2407 = vadd.f32 %v2284, %v2286
        %2408 = vadd.xlane.f32.xlu0 %v2407
        %v2409 = vpop.xlane.xlu0 %2408
        %v2410 = vadd.f32 %v2288, %v2290
        %2411 = vadd.xlane.f32.xlu0 %v2410
        %v2412 = vpop.xlane.xlu0 %2411
        %v2413 = vadd.f32 %v2292, %v2294
        %2414 = vadd.xlane.f32.xlu0 %v2413
        %v2415 = vpop.xlane.xlu0 %2414
        %v2416 = vadd.f32 %v2296, %v2298
        %2417 = vadd.xlane.f32.xlu0 %v2416
        %v2418 = vpop.xlane.xlu0 %2417
        %v2419 = vadd.f32 %v2300, %v2302
        %2420 = vadd.xlane.f32.xlu0 %v2419
        %v2421 = vpop.xlane.xlu0 %2420
        %v2422 = vadd.f32 %v2304, %v2306
        %2423 = vadd.xlane.f32.xlu0 %v2422
        %v2424 = vpop.xlane.xlu0 %2423
        %v2425 = vadd.f32 %v2308, %v2310
        %2426 = vadd.xlane.f32.xlu0 %v2425
        %v2427 = vpop.xlane.xlu0 %2426
        %v2428 = vadd.f32 %v2312, %v2314
        %2429 = vadd.xlane.f32.xlu0 %v2428
        %v2430 = vpop.xlane.xlu0 %2429
        %v2431 = vadd.f32 %v2316, %v2318
        %2432 = vadd.xlane.f32.xlu0 %v2431
        %v2433 = vpop.xlane.xlu0 %2432
        %v2434 = vadd.f32 %v2320, %v2322
        %2435 = vadd.xlane.f32.xlu0 %v2434
        %v2436 = vpop.xlane.xlu0 %2435
        %v2437 = vadd.f32 %v2324, %v2326
        %2438 = vadd.xlane.f32.xlu0 %v2437
        %v2439 = vpop.xlane.xlu0 %2438
        %v2440 = vadd.f32 %v2328, %v2330
        %2441 = vadd.xlane.f32.xlu0 %v2440
        %v2442 = vpop.xlane.xlu0 %2441
        %v2443 = vadd.f32 %v2332, %v2334
        %2444 = vadd.xlane.f32.xlu0 %v2443
        %v2445 = vpop.xlane.xlu0 %2444
        %v2446 = vadd.f32 %v2336, %v2338
        %2447 = vadd.xlane.f32.xlu0 %v2446
        %v2448 = vpop.xlane.xlu0 %2447
        %v2449 = vadd.f32 %v2340, %v2342
        %2450 = vadd.xlane.f32.xlu0 %v2449
        %v2451 = vpop.xlane.xlu0 %2450
        %v2452 = vadd.f32 %v2344, %v2346
        %2453 = vadd.xlane.f32.xlu0 %v2452
        %v2454 = vpop.xlane.xlu0 %2453
        %v2455 = vadd.f32 %v2348, %v2350
        %2456 = vadd.xlane.f32.xlu0 %v2455
        %v2457 = vpop.xlane.xlu0 %2456
        %v2458 = vadd.f32 %v2352, %v2354
        %2459 = vadd.xlane.f32.xlu0 %v2458
        %v2460 = vpop.xlane.xlu0 %2459
        %v2461 = vadd.f32 %v2356, %v2358
        %2462 = vadd.xlane.f32.xlu0 %v2461
        %v2463 = vpop.xlane.xlu0 %2462
        %v2464 = vadd.f32 %v2360, %v2362
        %2465 = vadd.xlane.f32.xlu0 %v2464
        %v2466 = vpop.xlane.xlu0 %2465
        %v2467 = vadd.f32 %v2364, %v2366
        %2468 = vadd.xlane.f32.xlu0 %v2467
        %v2469 = vpop.xlane.xlu0 %2468
        %v2470 = vadd.f32 %v2368, %v2370
        %2471 = vadd.xlane.f32.xlu0 %v2470
        %v2472 = vpop.xlane.xlu0 %2471
        %v2473 = vadd.f32 %v2372, %v2374
        %2474 = vadd.xlane.f32.xlu0 %v2473
        %v2475 = vpop.xlane.xlu0 %2474
        %v2476 = vadd.f32 %v2376, %v2378
        %2477 = vadd.xlane.f32.xlu0 %v2476
        %v2478 = vpop.xlane.xlu0 %2477
        %v2479 = vadd.f32 %v2380, %v2382
        %2480 = vadd.xlane.f32.xlu0 %v2479
        %v2481 = vpop.xlane.xlu0 %2480
        %v2482 = vadd.f32 %v2384, %v2386
        %2483 = vadd.xlane.f32.xlu0 %v2482
        %v2484 = vpop.xlane.xlu0 %2483
        %v2485 = vadd.f32 %v2388, %v2390
        %2486 = vadd.xlane.f32.xlu0 %v2485
        %v2487 = vpop.xlane.xlu0 %2486
        %v2488 = vadd.f32 %v2392, %v2394
        %2489 = vadd.xlane.f32.xlu0 %v2488
        %v2490 = vpop.xlane.xlu0 %2489
        %v2491 = vpack.c.bf16 %v2272, %v2268
        %v2492 = vpack.c.bf16 %v2274, %v2270
        %v2493 = vpack.c.bf16 %v2280, %v2276
        %v2494 = vpack.c.bf16 %v2282, %v2278
        %v2495 = vpack.c.bf16 %v2288, %v2284
        %v2496 = vpack.c.bf16 %v2290, %v2286
        %v2497 = vpack.c.bf16 %v2296, %v2292
        %v2498 = vpack.c.bf16 %v2298, %v2294
        %v2499 = vpack.c.bf16 %v2304, %v2300
        %v2500 = vpack.c.bf16 %v2306, %v2302
        %v2501 = vpack.c.bf16 %v2312, %v2308
        %v2502 = vpack.c.bf16 %v2314, %v2310
        %v2503 = vpack.c.bf16 %v2320, %v2316
        %v2504 = vpack.c.bf16 %v2322, %v2318
        %v2505 = vpack.c.bf16 %v2328, %v2324
        %v2506 = vpack.c.bf16 %v2330, %v2326
        %v2507 = vpack.c.bf16 %v2336, %v2332
        %v2508 = vpack.c.bf16 %v2338, %v2334
        %v2509 = vpack.c.bf16 %v2344, %v2340
        %v2510 = vpack.c.bf16 %v2346, %v2342
        %v2511 = vpack.c.bf16 %v2352, %v2348
        %v2512 = vpack.c.bf16 %v2354, %v2350
        %v2513 = vpack.c.bf16 %v2360, %v2356
        %v2514 = vpack.c.bf16 %v2362, %v2358
        %v2515 = vpack.c.bf16 %v2368, %v2364
        %v2516 = vpack.c.bf16 %v2370, %v2366
        %v2517 = vpack.c.bf16 %v2376, %v2372
        %v2518 = vpack.c.bf16 %v2378, %v2374
        %v2519 = vpack.c.bf16 %v2384, %v2380
        %v2520 = vpack.c.bf16 %v2386, %v2382
        %v2521 = vpack.c.bf16 %v2392, %v2388
        %v2522 = vpack.c.bf16 %v2394, %v2390
        %2523 = vmatprep.subr.bf16.mxu0 0
        %2524 = vmatpush1.bf16.msra.mxu0 %v1641
        %2525 = vmatprep.subr.bf16.mxu0 0
        %2526 = vmatpush1.bf16.msra.mxu0 %v1642
        %2527 = vmatprep.subr.bf16.mxu0 0
        %2528 = vmatpush1.bf16.msra.mxu0 %v1643
        %2529 = vmatprep.subr.bf16.mxu0 0
        %2530 = vmatpush1.bf16.msra.mxu0 %v1644
        %2531 = vmatprep.subr.bf16.mxu0 0
        %2532 = vmatpush1.bf16.msra.mxu0 %v1645
        %2533 = vmatprep.subr.bf16.mxu0 0
        %2534 = vmatpush1.bf16.msra.mxu0 %v1646
        %2535 = vmatprep.subr.bf16.mxu0 0
        %2536 = vmatpush1.bf16.msra.mxu0 %v1647
        %2537 = vmatprep.subr.bf16.mxu0 0
        %2538 = vmatpush1.bf16.msra.mxu0 %v1648
        %2539 = vmatprep.subr.bf16.mxu0 0
        %2540 = vmatpush1.bf16.msra.mxu0 %v1649
        %2541 = vmatprep.subr.bf16.mxu0 0
        %2542 = vmatpush1.bf16.msra.mxu0 %v1650
        %2543 = vmatprep.subr.bf16.mxu0 0
        %2544 = vmatpush1.bf16.msra.mxu0 %v1651
        %2545 = vmatprep.subr.bf16.mxu0 0
        %2546 = vmatpush1.bf16.msra.mxu0 %v1652
        %2547 = vmatprep.subr.bf16.mxu0 0
        %2548 = vmatpush1.bf16.msra.mxu0 %v1653
        %2549 = vmatprep.subr.bf16.mxu0 0
        %2550 = vmatpush1.bf16.msra.mxu0 %v1654
        %2551 = vmatprep.subr.bf16.mxu0 0
        %2552 = vmatpush1.bf16.msra.mxu0 %v1655
        %2553 = vmatprep.subr.bf16.mxu0 0
        %2554 = vmatpush1.bf16.msra.mxu0 %v1656
        %2555 = vmatprep.mubr.bf16.mxu0 %v2492
        %2556 = vmatmul.mubr.bf16.gmra.mrb[0].mxu0 %v2491
        %v2557 = vpop.f32.mrb[0].mxu0
        %v2558 = vadd.f32 0.0, %v2557
        %v2559 = vpop.f32.mrb[0].mxu0
        %v2560 = vpop.f32.mrb[0].mxu0
        %v2561 = vadd.f32 0.0, %v2560
        %v2562 = vpop.f32.mrb[0].mxu0
        %2563 = vmatprep.mubr.bf16.mxu0 %v2494
        %2564 = vmatmul.mubr.bf16.gmra.mrb[0].mxu0 %v2493
        %v2565 = vpop.f32.mrb[0].mxu0
        %v2566 = vadd.f32 0.0, %v2565
        %v2567 = vpop.f32.mrb[0].mxu0
        %v2568 = vpop.f32.mrb[0].mxu0
        %v2569 = vadd.f32 0.0, %v2568
        %v2570 = vpop.f32.mrb[0].mxu0
        %2571 = vmatprep.mubr.bf16.mxu0 %v2496
        %2572 = vmatmul.mubr.bf16.gmra.mrb[0].mxu0 %v2495
        %v2573 = vpop.f32.mrb[0].mxu0
        %v2574 = vadd.f32 0.0, %v2573
        %v2575 = vpop.f32.mrb[0].mxu0
        %v2576 = vpop.f32.mrb[0].mxu0
        %v2577 = vadd.f32 0.0, %v2576
        %v2578 = vpop.f32.mrb[0].mxu0
        %2579 = vmatprep.mubr.bf16.mxu0 %v2498
        %2580 = vmatmul.mubr.bf16.gmra.mrb[0].mxu0 %v2497
        %v2581 = vpop.f32.mrb[0].mxu0
        %v2582 = vadd.f32 0.0, %v2581
        %v2583 = vpop.f32.mrb[0].mxu0
        %v2584 = vpop.f32.mrb[0].mxu0
        %v2585 = vadd.f32 0.0, %v2584
        %v2586 = vpop.f32.mrb[0].mxu0
        %2587 = vmatprep.mubr.bf16.mxu0 %v2500
        %2588 = vmatmul.mubr.bf16.gmra.mrb[0].mxu0 %v2499
        %v2589 = vpop.f32.mrb[0].mxu0
        %v2590 = vadd.f32 0.0, %v2589
        %v2591 = vpop.f32.mrb[0].mxu0
        %v2592 = vpop.f32.mrb[0].mxu0
        %v2593 = vadd.f32 0.0, %v2592
        %v2594 = vpop.f32.mrb[0].mxu0
        %2595 = vmatprep.mubr.bf16.mxu0 %v2502
        %2596 = vmatmul.mubr.bf16.gmra.mrb[0].mxu0 %v2501
        %v2597 = vpop.f32.mrb[0].mxu0
        %v2598 = vadd.f32 0.0, %v2597
        %v2599 = vpop.f32.mrb[0].mxu0
        %v2600 = vpop.f32.mrb[0].mxu0
        %v2601 = vadd.f32 0.0, %v2600
        %v2602 = vpop.f32.mrb[0].mxu0
        %2603 = vmatprep.mubr.bf16.mxu0 %v2504
        %2604 = vmatmul.mubr.bf16.gmra.mrb[0].mxu0 %v2503
        %v2605 = vpop.f32.mrb[0].mxu0
        %v2606 = vadd.f32 0.0, %v2605
        %v2607 = vpop.f32.mrb[0].mxu0
        %v2608 = vpop.f32.mrb[0].mxu0
        %v2609 = vadd.f32 0.0, %v2608
        %v2610 = vpop.f32.mrb[0].mxu0
        %2611 = vmatprep.mubr.bf16.mxu0 %v2506
        %2612 = vmatmul.mubr.bf16.gmra.mrb[0].mxu0 %v2505
        %v2613 = vpop.f32.mrb[0].mxu0
        %v2614 = vadd.f32 0.0, %v2613
        %v2615 = vpop.f32.mrb[0].mxu0
        %v2616 = vpop.f32.mrb[0].mxu0
        %v2617 = vadd.f32 0.0, %v2616
        %v2618 = vpop.f32.mrb[0].mxu0
        %2619 = vmatprep.mubr.bf16.mxu0 %v2508
        %2620 = vmatmul.mubr.bf16.gmra.mrb[0].mxu0 %v2507
        %v2621 = vpop.f32.mrb[0].mxu0
        %v2622 = vadd.f32 0.0, %v2621
        %v2623 = vpop.f32.mrb[0].mxu0
        %v2624 = vpop.f32.mrb[0].mxu0
        %v2625 = vadd.f32 0.0, %v2624
        %v2626 = vpop.f32.mrb[0].mxu0
        %2627 = vmatprep.mubr.bf16.mxu0 %v2510
        %2628 = vmatmul.mubr.bf16.gmra.mrb[0].mxu0 %v2509
        %v2629 = vpop.f32.mrb[0].mxu0
        %v2630 = vadd.f32 0.0, %v2629
        %v2631 = vpop.f32.mrb[0].mxu0
        %v2632 = vpop.f32.mrb[0].mxu0
        %v2633 = vadd.f32 0.0, %v2632
        %v2634 = vpop.f32.mrb[0].mxu0
        %2635 = vmatprep.mubr.bf16.mxu0 %v2512
        %2636 = vmatmul.mubr.bf16.gmra.mrb[0].mxu0 %v2511
        %v2637 = vpop.f32.mrb[0].mxu0
        %v2638 = vadd.f32 0.0, %v2637
        %v2639 = vpop.f32.mrb[0].mxu0
        %v2640 = vpop.f32.mrb[0].mxu0
        %v2641 = vadd.f32 0.0, %v2640
        %v2642 = vpop.f32.mrb[0].mxu0
        %2643 = vmatprep.mubr.bf16.mxu0 %v2514
        %2644 = vmatmul.mubr.bf16.gmra.mrb[0].mxu0 %v2513
        %v2645 = vpop.f32.mrb[0].mxu0
        %v2646 = vadd.f32 0.0, %v2645
        %v2647 = vpop.f32.mrb[0].mxu0
        %v2648 = vpop.f32.mrb[0].mxu0
        %v2649 = vadd.f32 0.0, %v2648
        %v2650 = vpop.f32.mrb[0].mxu0
        %2651 = vmatprep.mubr.bf16.mxu0 %v2516
        %2652 = vmatmul.mubr.bf16.gmra.mrb[0].mxu0 %v2515
        %v2653 = vpop.f32.mrb[0].mxu0
        %v2654 = vadd.f32 0.0, %v2653
        %v2655 = vpop.f32.mrb[0].mxu0
        %v2656 = vpop.f32.mrb[0].mxu0
        %v2657 = vadd.f32 0.0, %v2656
        %v2658 = vpop.f32.mrb[0].mxu0
        %2659 = vmatprep.mubr.bf16.mxu0 %v2518
        %2660 = vmatmul.mubr.bf16.gmra.mrb[0].mxu0 %v2517
        %v2661 = vpop.f32.mrb[0].mxu0
        %v2662 = vadd.f32 0.0, %v2661
        %v2663 = vpop.f32.mrb[0].mxu0
        %v2664 = vpop.f32.mrb[0].mxu0
        %v2665 = vadd.f32 0.0, %v2664
        %v2666 = vpop.f32.mrb[0].mxu0
        %2667 = vmatprep.mubr.bf16.mxu0 %v2520
        %2668 = vmatmul.mubr.bf16.gmra.mrb[0].mxu0 %v2519
        %v2669 = vpop.f32.mrb[0].mxu0
        %v2670 = vadd.f32 0.0, %v2669
        %v2671 = vpop.f32.mrb[0].mxu0
        %v2672 = vpop.f32.mrb[0].mxu0
        %v2673 = vadd.f32 0.0, %v2672
        %v2674 = vpop.f32.mrb[0].mxu0
        %2675 = vmatprep.mubr.bf16.mxu0 %v2522
        %2676 = vmatmul.mubr.bf16.gmra.mrb[0].mxu0 %v2521
        %v2677 = vpop.f32.mrb[0].mxu0
        %v2678 = vadd.f32 0.0, %v2677
        %v2679 = vpop.f32.mrb[0].mxu0
        %v2680 = vpop.f32.mrb[0].mxu0
        %v2681 = vadd.f32 0.0, %v2680
        %v2682 = vpop.f32.mrb[0].mxu0
        %2683 = vdwg.mxu0
        %v2684 = vrcp.pop %v2397
        %v2685 = vrcp.pop %v2400
        %v2686 = vrcp.pop %v2403
        %v2687 = vrcp.pop %v2406
        %v2688 = vrcp.pop %v2409
        %v2689 = vrcp.pop %v2412
        %v2690 = vrcp.pop %v2415
        %v2691 = vrcp.pop %v2418
        %v2692 = vrcp.pop %v2421
        %v2693 = vrcp.pop %v2424
        %v2694 = vrcp.pop %v2427
        %v2695 = vrcp.pop %v2430
        %v2696 = vrcp.pop %v2433
        %v2697 = vrcp.pop %v2436
        %v2698 = vrcp.pop %v2439
        %v2699 = vrcp.pop %v2442
        %v2700 = vrcp.pop %v2445
        %v2701 = vrcp.pop %v2448
        %v2702 = vrcp.pop %v2451
        %v2703 = vrcp.pop %v2454
        %v2704 = vrcp.pop %v2457
        %v2705 = vrcp.pop %v2460
        %v2706 = vrcp.pop %v2463
        %v2707 = vrcp.pop %v2466
        %v2708 = vrcp.pop %v2469
        %v2709 = vrcp.pop %v2472
        %v2710 = vrcp.pop %v2475
        %v2711 = vrcp.pop %v2478
        %v2712 = vrcp.pop %v2481
        %v2713 = vrcp.pop %v2484
        %v2714 = vrcp.pop %v2487
        %v2715 = vrcp.pop %v2490
        %v2716 = vmul.f32 %v2558, %v2684
        %v2717 = vmul.f32 %v2561, %v2685
        %v2718 = vmul.f32 %v2566, %v2686
        %v2719 = vmul.f32 %v2569, %v2687
        %v2720 = vmul.f32 %v2574, %v2688
        %v2721 = vmul.f32 %v2577, %v2689
        %v2722 = vmul.f32 %v2582, %v2690
        %v2723 = vmul.f32 %v2585, %v2691
        %v2724 = vmul.f32 %v2590, %v2692
        %v2725 = vmul.f32 %v2593, %v2693
        %v2726 = vmul.f32 %v2598, %v2694
        %v2727 = vmul.f32 %v2601, %v2695
        %v2728 = vmul.f32 %v2606, %v2696
        %v2729 = vmul.f32 %v2609, %v2697
        %v2730 = vmul.f32 %v2614, %v2698
        %v2731 = vmul.f32 %v2617, %v2699
        %v2732 = vmul.f32 %v2622, %v2700
        %v2733 = vmul.f32 %v2625, %v2701
        %v2734 = vmul.f32 %v2630, %v2702
        %v2735 = vmul.f32 %v2633, %v2703
        %v2736 = vmul.f32 %v2638, %v2704
        %v2737 = vmul.f32 %v2641, %v2705
        %v2738 = vmul.f32 %v2646, %v2706
        %v2739 = vmul.f32 %v2649, %v2707
        %v2740 = vmul.f32 %v2654, %v2708
        %v2741 = vmul.f32 %v2657, %v2709
        %v2742 = vmul.f32 %v2662, %v2710
        %v2743 = vmul.f32 %v2665, %v2711
        %v2744 = vmul.f32 %v2670, %v2712
        %v2745 = vmul.f32 %v2673, %v2713
        %v2746 = vmul.f32 %v2678, %v2714
        %v2747 = vmul.f32 %v2681, %v2715
        %v2748 = vpack.c.bf16 %v2717, %v2716
        %v2749 = vpack.c.bf16 %v2719, %v2718
        %v2750 = vpack.c.bf16 %v2721, %v2720
        %v2751 = vpack.c.bf16 %v2723, %v2722
        %v2752 = vpack.c.bf16 %v2725, %v2724
        %v2753 = vpack.c.bf16 %v2727, %v2726
        %v2754 = vpack.c.bf16 %v2729, %v2728
        %v2755 = vpack.c.bf16 %v2731, %v2730
        %v2756 = vpack.c.bf16 %v2733, %v2732
        %v2757 = vpack.c.bf16 %v2735, %v2734
        %v2758 = vpack.c.bf16 %v2737, %v2736
        %v2759 = vpack.c.bf16 %v2739, %v2738
        %v2760 = vpack.c.bf16 %v2741, %v2740
        %v2761 = vpack.c.bf16 %v2743, %v2742
        %v2762 = vpack.c.bf16 %v2745, %v2744
        %v2763 = vpack.c.bf16 %v2747, %v2746
        %v2764 = vld [vmem:[%s6] sm:$0xf]
        %v2765 = vld [vmem:[%s6 + $0x4] sm:$0xf]
        %v2766 = vld [vmem:[%s6 + $0x8] sm:$0xf]
        %v2767 = vld [vmem:[%s6 + $0xc] sm:$0xf]
        %v2768 = vld [vmem:[%s6 + $0x10] sm:$0xf]
        %v2769 = vld [vmem:[%s6 + $0x14] sm:$0xf]
        %v2770 = vld [vmem:[%s6 + $0x18] sm:$0xf]
        %v2771 = vld [vmem:[%s6 + $0x1c] sm:$0xf]
        %v2772 = vld [vmem:[%s6 + $0x20] sm:$0xf]
        %v2773 = vld [vmem:[%s6 + $0x24] sm:$0xf]
        %v2774 = vld [vmem:[%s6 + $0x28] sm:$0xf]
        %v2775 = vld [vmem:[%s6 + $0x2c] sm:$0xf]
        %v2776 = vld [vmem:[%s6 + $0x30] sm:$0xf]
        %v2777 = vld [vmem:[%s6 + $0x34] sm:$0xf]
        %v2778 = vld [vmem:[%s6 + $0x38] sm:$0xf]
        %v2779 = vld [vmem:[%s6 + $0x3c] sm:$0xf]
        %2780 = vset.pattern.permute.xlu0 3
        %2781 = vperm.xlu0 %2780, %v330
        %v2782 = vpop.permute.xlu0 %2781
        %2784 = vset.pattern.permute.xlu0 3
        %2785 = vperm.xlu0 %2784, %v331
        %v2786 = vpop.permute.xlu0 %2785
        %2788 = vset.pattern.permute.xlu0 3
        %2789 = vperm.xlu0 %2788, %v332
        %v2790 = vpop.permute.xlu0 %2789
        %2792 = vset.pattern.permute.xlu0 3
        %2793 = vperm.xlu0 %2792, %v333
        %v2794 = vpop.permute.xlu0 %2793
        %2796 = vset.pattern.permute.xlu0 3
        %2797 = vperm.xlu0 %2796, %v334
        %v2798 = vpop.permute.xlu0 %2797
        %2800 = vset.pattern.permute.xlu0 3
        %2801 = vperm.xlu0 %2800, %v335
        %v2802 = vpop.permute.xlu0 %2801
        %2804 = vset.pattern.permute.xlu0 3
        %2805 = vperm.xlu0 %2804, %v336
        %v2806 = vpop.permute.xlu0 %2805
        %2808 = vset.pattern.permute.xlu0 3
        %2809 = vperm.xlu0 %2808, %v337
        %v2810 = vpop.permute.xlu0 %2809
        %2812 = vset.pattern.permute.xlu0 3
        %2813 = vperm.xlu0 %2812, %v338
        %v2814 = vpop.permute.xlu0 %2813
        %2816 = vset.pattern.permute.xlu0 3
        %2817 = vperm.xlu0 %2816, %v339
        %v2818 = vpop.permute.xlu0 %2817
        %2820 = vset.pattern.permute.xlu0 3
        %2821 = vperm.xlu0 %2820, %v340
        %v2822 = vpop.permute.xlu0 %2821
        %2824 = vset.pattern.permute.xlu0 3
        %2825 = vperm.xlu0 %2824, %v341
        %v2826 = vpop.permute.xlu0 %2825
        %2828 = vset.pattern.permute.xlu0 3
        %2829 = vperm.xlu0 %2828, %v342
        %v2830 = vpop.permute.xlu0 %2829
        %2832 = vset.pattern.permute.xlu0 3
        %2833 = vperm.xlu0 %2832, %v343
        %v2834 = vpop.permute.xlu0 %2833
        %2836 = vset.pattern.permute.xlu0 3
        %2837 = vperm.xlu0 %2836, %v344
        %v2838 = vpop.permute.xlu0 %2837
        %2840 = vset.pattern.permute.xlu0 3
        %2841 = vperm.xlu0 %2840, %v345
        %v2842 = vpop.permute.xlu0 %2841
        %v2860 = vunpack.c.l.b16 %v2764
        %v2861 = vunpack.c.l.b16 %v2765
        %v2862 = vunpack.c.l.b16 %v2766
        %v2863 = vunpack.c.l.b16 %v2767
        %v2864 = vunpack.c.l.b16 %v2768
        %v2865 = vunpack.c.l.b16 %v2769
        %v2866 = vunpack.c.l.b16 %v2770
        %v2867 = vunpack.c.l.b16 %v2771
        %v2868 = vunpack.c.l.b16 %v2772
        %v2869 = vunpack.c.l.b16 %v2773
        %v2870 = vunpack.c.l.b16 %v2774
        %v2871 = vunpack.c.l.b16 %v2775
        %v2872 = vunpack.c.l.b16 %v2776
        %v2873 = vunpack.c.l.b16 %v2777
        %v2874 = vunpack.c.l.b16 %v2778
        %v2875 = vunpack.c.l.b16 %v2779
        %v2876 = vpack.c.b16 %v2861, %v2860
        %v2877 = vpack.c.b16 %v2863, %v2862
        %v2878 = vpack.c.b16 %v2865, %v2864
        %v2879 = vpack.c.b16 %v2867, %v2866
        %v2880 = vpack.c.b16 %v2869, %v2868
        %v2881 = vpack.c.b16 %v2871, %v2870
        %v2882 = vpack.c.b16 %v2873, %v2872
        %v2883 = vpack.c.b16 %v2875, %v2874
        %2892 = vmatprep.subr.bf16.mxu0 0
        %2893 = vmatpush1.bf16.xpose.msra.mxu0 %v2748
        %2894 = vmatprep.subr.bf16.mxu0 0
        %2895 = vmatpush1.bf16.xpose.msra.mxu0 %v2749
        %2896 = vmatprep.subr.bf16.mxu0 0
        %2897 = vmatpush1.bf16.xpose.msra.mxu0 %v2750
        %2898 = vmatprep.subr.bf16.mxu0 0
        %2899 = vmatpush1.bf16.xpose.msra.mxu0 %v2751
        %2900 = vmatprep.subr.bf16.mxu0 0
        %2901 = vmatpush1.bf16.xpose.msra.mxu0 %v2752
        %2902 = vmatprep.subr.bf16.mxu0 0
        %2903 = vmatpush1.bf16.xpose.msra.mxu0 %v2753
        %2904 = vmatprep.subr.bf16.mxu0 0
        %2905 = vmatpush1.bf16.xpose.msra.mxu0 %v2754
        %2906 = vmatprep.subr.bf16.mxu0 0
        %2907 = vmatpush1.bf16.xpose.msra.mxu0 %v2755
        %2908 = vmatprep.subr.bf16.mxu0 0
        %2909 = vmatpush1.bf16.xpose.msra.mxu0 %v2756
        %2910 = vmatprep.subr.bf16.mxu0 0
        %2911 = vmatpush1.bf16.xpose.msra.mxu0 %v2757
        %2912 = vmatprep.subr.bf16.mxu0 0
        %2913 = vmatpush1.bf16.xpose.msra.mxu0 %v2758
        %2914 = vmatprep.subr.bf16.mxu0 0
        %2915 = vmatpush1.bf16.xpose.msra.mxu0 %v2759
        %2916 = vmatprep.subr.bf16.mxu0 0
        %2917 = vmatpush1.bf16.xpose.msra.mxu0 %v2760
        %2918 = vmatprep.subr.bf16.mxu0 0
        %2919 = vmatpush1.bf16.xpose.msra.mxu0 %v2761
        %2920 = vmatprep.subr.bf16.mxu0 0
        %2921 = vmatpush1.bf16.xpose.msra.mxu0 %v2762
        %2922 = vmatprep.subr.bf16.mxu0 0
        %2923 = vmatpush1.bf16.xpose.msra.mxu0 %v2763
        %2924 = vmatprep.mubr.bf16.mxu0 0
        %2925 = vmatmul.mubr.bf16.gmra.mrb[0].mxu0 %v2876
        %v2926 = vpop.f32.mrb[0].mxu0
        %v2927 = vadd.f32 %v2782, %v2926
        %v2928 = vpop.f32.mrb[0].mxu0
        %v2929 = vadd.f32 %v2782, %v2928
        %v2930 = vpop.f32.mrb[0].mxu0
        %v2931 = vadd.f32 %v2786, %v2930
        %v2932 = vpop.f32.mrb[0].mxu0
        %v2933 = vadd.f32 %v2786, %v2932
        %2934 = vmatprep.mubr.bf16.mxu0 0
        %2935 = vmatmul.mubr.bf16.gmra.mrb[0].mxu0 %v2877
        %v2936 = vpop.f32.mrb[0].mxu0
        %v2937 = vadd.f32 %v2790, %v2936
        %v2938 = vpop.f32.mrb[0].mxu0
        %v2939 = vadd.f32 %v2790, %v2938
        %v2940 = vpop.f32.mrb[0].mxu0
        %v2941 = vadd.f32 %v2794, %v2940
        %v2942 = vpop.f32.mrb[0].mxu0
        %v2943 = vadd.f32 %v2794, %v2942
        %2944 = vmatprep.mubr.bf16.mxu0 0
        %2945 = vmatmul.mubr.bf16.gmra.mrb[0].mxu0 %v2878
        %v2946 = vpop.f32.mrb[0].mxu0
        %v2947 = vadd.f32 %v2798, %v2946
        %v2948 = vpop.f32.mrb[0].mxu0
        %v2949 = vadd.f32 %v2798, %v2948
        %v2950 = vpop.f32.mrb[0].mxu0
        %v2951 = vadd.f32 %v2802, %v2950
        %v2952 = vpop.f32.mrb[0].mxu0
        %v2953 = vadd.f32 %v2802, %v2952
        %2954 = vmatprep.mubr.bf16.mxu0 0
        %2955 = vmatmul.mubr.bf16.gmra.mrb[0].mxu0 %v2879
        %v2956 = vpop.f32.mrb[0].mxu0
        %v2957 = vadd.f32 %v2806, %v2956
        %v2958 = vpop.f32.mrb[0].mxu0
        %v2959 = vadd.f32 %v2806, %v2958
        %v2960 = vpop.f32.mrb[0].mxu0
        %v2961 = vadd.f32 %v2810, %v2960
        %v2962 = vpop.f32.mrb[0].mxu0
        %v2963 = vadd.f32 %v2810, %v2962
        %2964 = vmatprep.mubr.bf16.mxu0 0
        %2965 = vmatmul.mubr.bf16.gmra.mrb[0].mxu0 %v2880
        %v2966 = vpop.f32.mrb[0].mxu0
        %v2967 = vadd.f32 %v2814, %v2966
        %v2968 = vpop.f32.mrb[0].mxu0
        %v2969 = vadd.f32 %v2814, %v2968
        %v2970 = vpop.f32.mrb[0].mxu0
        %v2971 = vadd.f32 %v2818, %v2970
        %v2972 = vpop.f32.mrb[0].mxu0
        %v2973 = vadd.f32 %v2818, %v2972
        %2974 = vmatprep.mubr.bf16.mxu0 0
        %2975 = vmatmul.mubr.bf16.gmra.mrb[0].mxu0 %v2881
        %v2976 = vpop.f32.mrb[0].mxu0
        %v2977 = vadd.f32 %v2822, %v2976
        %v2978 = vpop.f32.mrb[0].mxu0
        %v2979 = vadd.f32 %v2822, %v2978
        %v2980 = vpop.f32.mrb[0].mxu0
        %v2981 = vadd.f32 %v2826, %v2980
        %v2982 = vpop.f32.mrb[0].mxu0
        %v2983 = vadd.f32 %v2826, %v2982
        %2984 = vmatprep.mubr.bf16.mxu0 0
        %2985 = vmatmul.mubr.bf16.gmra.mrb[0].mxu0 %v2882
        %v2986 = vpop.f32.mrb[0].mxu0
        %v2987 = vadd.f32 %v2830, %v2986
        %v2988 = vpop.f32.mrb[0].mxu0
        %v2989 = vadd.f32 %v2830, %v2988
        %v2990 = vpop.f32.mrb[0].mxu0
        %v2991 = vadd.f32 %v2834, %v2990
        %v2992 = vpop.f32.mrb[0].mxu0
        %v2993 = vadd.f32 %v2834, %v2992
        %2994 = vmatprep.mubr.bf16.mxu0 0
        %2995 = vmatmul.mubr.bf16.gmra.mrb[0].mxu0 %v2883
        %v2996 = vpop.f32.mrb[0].mxu0
        %v2997 = vadd.f32 %v2838, %v2996
        %v2998 = vpop.f32.mrb[0].mxu0
        %v2999 = vadd.f32 %v2838, %v2998
        %v3000 = vpop.f32.mrb[0].mxu0
        %v3001 = vadd.f32 %v2842, %v3000
        %v3002 = vpop.f32.mrb[0].mxu0
        %v3003 = vadd.f32 %v2842, %v3002
        %3004 = vdwg.mxu0
        %v3005 = vadd.f32 %v298, %v2927
        %v3006 = vadd.f32 %v299, %v2929
        %v3007 = vadd.f32 %v300, %v2931
        %v3008 = vadd.f32 %v301, %v2933
        %v3009 = vadd.f32 %v302, %v2937
        %v3010 = vadd.f32 %v303, %v2939
        %v3011 = vadd.f32 %v304, %v2941
        %v3012 = vadd.f32 %v305, %v2943
        %v3013 = vadd.f32 %v306, %v2947
        %v3014 = vadd.f32 %v307, %v2949
        %v3015 = vadd.f32 %v308, %v2951
        %v3016 = vadd.f32 %v309, %v2953
        %v3017 = vadd.f32 %v310, %v2957
        %v3018 = vadd.f32 %v311, %v2959
        %v3019 = vadd.f32 %v312, %v2961
        %v3020 = vadd.f32 %v313, %v2963
        %v3021 = vadd.f32 %v314, %v2967
        %v3022 = vadd.f32 %v315, %v2969
        %v3023 = vadd.f32 %v316, %v2971
        %v3024 = vadd.f32 %v317, %v2973
        %v3025 = vadd.f32 %v318, %v2977
        %v3026 = vadd.f32 %v319, %v2979
        %v3027 = vadd.f32 %v320, %v2981
        %v3028 = vadd.f32 %v321, %v2983
        %v3029 = vadd.f32 %v322, %v2987
        %v3030 = vadd.f32 %v323, %v2989
        %v3031 = vadd.f32 %v324, %v2991
        %v3032 = vadd.f32 %v325, %v2993
        %v3033 = vadd.f32 %v326, %v2997
        %v3034 = vadd.f32 %v327, %v2999
        %v3035 = vadd.f32 %v328, %v3001
        %v3036 = vadd.f32 %v329, %v3003
        %3037 = vst [vmem:[%s296] sm:$0xff] %v3005
        %3038 = vst [vmem:[%s296 + $0x8] sm:$0xff] %v3006
        %3039 = vst [vmem:[%s296 + $0x10] sm:$0xff] %v3007
        %3040 = vst [vmem:[%s296 + $0x18] sm:$0xff] %v3008
        %3041 = vst [vmem:[%s296 + $0x20] sm:$0xff] %v3009
        %3042 = vst [vmem:[%s296 + $0x28] sm:$0xff] %v3010
        %3043 = vst [vmem:[%s296 + $0x30] sm:$0xff] %v3011
        %3044 = vst [vmem:[%s296 + $0x38] sm:$0xff] %v3012
        %3045 = vst [vmem:[%s296 + $0x40] sm:$0xff] %v3013
        %3046 = vst [vmem:[%s296 + $0x48] sm:$0xff] %v3014
        %3047 = vst [vmem:[%s296 + $0x50] sm:$0xff] %v3015
        %3048 = vst [vmem:[%s296 + $0x58] sm:$0xff] %v3016
        %3049 = vst [vmem:[%s296 + $0x60] sm:$0xff] %v3017
        %3050 = vst [vmem:[%s296 + $0x68] sm:$0xff] %v3018
        %3051 = vst [vmem:[%s296 + $0x70] sm:$0xff] %v3019
        %3052 = vst [vmem:[%s296 + $0x78] sm:$0xff] %v3020
        %3053 = vst [vmem:[%s296 + $0x80] sm:$0xff] %v3021
        %3054 = vst [vmem:[%s296 + $0x88] sm:$0xff] %v3022
        %3055 = vst [vmem:[%s296 + $0x90] sm:$0xff] %v3023
        %3056 = vst [vmem:[%s296 + $0x98] sm:$0xff] %v3024
        %3057 = vst [vmem:[%s296 + $0xa0] sm:$0xff] %v3025
        %3058 = vst [vmem:[%s296 + $0xa8] sm:$0xff] %v3026
        %3059 = vst [vmem:[%s296 + $0xb0] sm:$0xff] %v3027
        %3060 = vst [vmem:[%s296 + $0xb8] sm:$0xff] %v3028
        %3061 = vst [vmem:[%s296 + $0xc0] sm:$0xff] %v3029
        %3062 = vst [vmem:[%s296 + $0xc8] sm:$0xff] %v3030
        %3063 = vst [vmem:[%s296 + $0xd0] sm:$0xff] %v3031
        %3064 = vst [vmem:[%s296 + $0xd8] sm:$0xff] %v3032
        %3065 = vst [vmem:[%s296 + $0xe0] sm:$0xff] %v3033
        %3066 = vst [vmem:[%s296 + $0xe8] sm:$0xff] %v3034
        %3067 = vst [vmem:[%s296 + $0xf0] sm:$0xff] %v3035
        %3068 = vst [vmem:[%s296 + $0xf8] sm:$0xff] %v3036
        %s3069 = sand.u32 %s184, 1
        %s3070 = scalar_lea.sflag [#allocation4], %s3069
        %s3071 = sand.u32 %s184, 1
        %s3072 = smul.addr %s3071, 256
        %s3073 = scalar_lea.vmem [#allocation5], %s3072
        // Predicated region
        $region53: #{tpu_custom_call.1} parent=47 // pred_check
          %p3074 = pneg %p194
        $region54: #{tpu_custom_call.1} parent=47 // pred_check_branch
          %3076 = sbr.rel (%p3074) target = $region56
        $region55: #{tpu_custom_call.1} parent=47 // pred_region
          %s3078 = ssub.s32 4096, 4096
          %3079 = vsyncadd %s3070, %s3078
          %s3080 = smul.addr %s24, 32
          %s3081 = smul.addr %s3080, 128
          %s3082 = scalar_lea.hbm %s7, %s3081
          %s3083 = sshll.u32 %s3073, 4
          %s3084 = int_to_ptr.vmem [resolvable:$true] %s3083
          %3089 = dma.vmem_to_hbm [thread:$0]  %s3084, 4096, %s3082, %s3070, 256, 256, 16
        $region56: #{tpu_custom_call.1} parent=47 // pred_fallthru
          _
      $region48: #{tpu_custom_call.1} parent=5 // pred_fallthru
        _
      %p3090 = scmp.le.s32.totalorder 2, %s19
      // Predicated region
      $region57: #{tpu_custom_call.1} parent=5 // pred_check
        %p3091 = pneg %p3090
      $region58: #{tpu_custom_call.1} parent=5 // pred_check_branch
        %3093 = sbr.rel (%p3091) target = $region60
      $region59: #{tpu_custom_call.1} parent=5 // pred_region
        %s3094 = ssub.s32 %s19, 2
        // Predicated region
        $region61: #{tpu_custom_call.1} parent=59 // pred_check
          %p3095 = pneg %p200
        $region62: #{tpu_custom_call.1} parent=59 // pred_check_branch
          %3097 = sbr.rel (%p3095) target = $region64
        $region63: #{tpu_custom_call.1} parent=59 // pred_region
          %s3098 = sand.u32 %s185, 1
          %s3099 = scalar_lea.sflag [#allocation4], %s3098
          %s3100 = sand.u32 %s185, 1
          %s3101 = smul.addr %s3100, 256
          %s3102 = scalar_lea.vmem [#allocation5], %s3101
          %3103 = dma.done %s3099, 4096
        $region64: #{tpu_custom_call.1} parent=59 // pred_fallthru
          _
      $region60: #{tpu_custom_call.1} parent=5 // pred_fallthru
        _
    $region6: #{tpu_custom_call.1} parent=1 // loop_footer
      %s23 = sadd.s32 1, %s19
    $region7: #{tpu_custom_call.1} parent=1 // loop_footer_branch
      %18 = sbr.rel target = $region3
    $region8: #{tpu_custom_call.1} parent=1 // loop_exit
      _
    %3104 = vsyncpa [#allocation3], 1
    %s3105 = scalar_lea.sflag [#allocation3], 1
    %3106 = vsyncpa %s3105, 1
    %3107 = vsyncpa [#allocation4], 1
    %s3108 = scalar_lea.sflag [#allocation4], 1
    %3109 = vsyncpa %s3108, 1

// kernel: tpu_custom_call.1
$region0: #{tpu_custom_call.1}
  #allocation0 [shape = 'u32[]', space=smem, size = 0x4, offset = 0x4, fixed_abs, tag = 'smem constant byte address 0x4 - core index']
  #allocation1 [shape = 'u32[144,128]{1,0:T(1,128)}', space=vmem, size = 0x12000, scoped, tag = 'internal scratch']
  %s0 = inlined_call_operand.hbm [shape: f32[2,128,256], index: 0, kind: input, shape index: {}, may-alias: {0,7}]
  %s1 = inlined_call_operand.vmem [shape: f32[128,128], index: 1, kind: input, shape index: {}]
  %s2 = inlined_call_operand.vmem [shape: f32[128,4], index: 2, kind: input, shape index: {}]
  %s3 = inlined_call_operand.vmem [shape: bf16[128,256], index: 3, kind: input, shape index: {}]
  %s4 = inlined_call_operand.vmem [shape: f32[1,256], index: 4, kind: input, shape index: {}]
  %s5 = inlined_call_operand.vmem [shape: bf16[128,128], index: 5, kind: input, shape index: {}]
  %s6 = inlined_call_operand.vmem [shape: bf16[128,128], index: 6, kind: input, shape index: {}]
  %s7 = inlined_call_operand.hbm [shape: f32[2,128,256], index: 7, kind: output, shape index: {}, may-alias: {0,7}]
  %s8 = sld [smem:[#allocation0]]
  $region65: #{tpu_custom_call.1} parent=0
    _
  %s10 = ssub.s32 1, %s8
  %s11 = scalar_select 0, %s10, %s8
  $region1: #{tpu_custom_call.1} parent=0
    #allocation2 [shape = 'u8[262144]{0}', space=vmem, size = 0x40000, scoped, tag = 'input window, operand 0']
    #allocation3 [shape = 's32[2]{0}', space=sflag, size = 0x8, scoped, tag = 'scoped memory for tpu_custom_call.1']
    #allocation4 [shape = 's32[2]{0}', space=sflag, size = 0x8, scoped, tag = 'scoped memory for tpu_custom_call.1']
    #allocation5 [shape = 'u8[262144]{0}', space=vmem, size = 0x40000, scoped, tag = 'output window, operand 0']
    %12 = vsyncpa [#allocation3], 0
    %s13 = scalar_lea.sflag [#allocation3], 1
    %14 = vsyncpa %s13, 0
    %15 = vsyncpa [#allocation4], 0
    %s16 = scalar_lea.sflag [#allocation4], 1
    %17 = vsyncpa %s16, 0
    loop: start=0, step=1, limit=4
    $region2: #{tpu_custom_call.1} parent=1 // loop_pre_header
      _
    $region3: #{tpu_custom_call.1} parent=1 // loop_header
      %s19 = sphi 0, %s23
      %p20 = scmp.ge.s32.totalorder %s19, 4
      %s29 = sphi 0, %s31
      %s32 = sphi 0, %s29
      %s33 = sphi 0, %s32
      %s49 = sphi 0, %s33
      %s53 = sphi 0, %s53
      %s55 = sphi 0, %s53
      %s56 = sphi 0, %s55
      %s70 = sphi 0, %s56
      %s74 = sphi 0, %s74
      %s76 = sphi 0, %s74
      %s77 = sphi 0, %s76
      %s91 = sphi 0, %s77
      %s95 = sphi 0, %s95
      %s97 = sphi 0, %s95
      %s98 = sphi 0, %s97
      %s112 = sphi 0, %s98
      %s116 = sphi 0, %s116
      %s118 = sphi 0, %s116
      %s119 = sphi 0, %s118
      %s133 = sphi 0, %s119
      %s137 = sphi 0, %s137
      %s139 = sphi 0, %s137
      %s140 = sphi 0, %s139
      %s154 = sphi 0, %s140
      %s158 = sphi 0, %s158
      %s160 = sphi 0, %s158
      %s161 = sphi 0, %s160
      %s175 = sphi 0, %s161
      %s181 = sphi 0, %s183
      %s184 = sphi 0, %s181
      %s185 = sphi 0, %s184
      %s201 = sphi 0, %s185
    $region4: #{tpu_custom_call.1} parent=1 // loop_header_branch
      %22 = sbr.rel (%p20) target = $region8
    $region5: #{tpu_custom_call.1} parent=1 // loop_body
      %s24 = ssub.s32 %s19, 1
      %s25 = ssub.s32 %s19, 2
      %s26 = sadd.s32 %s19, 1
      %s27 = ssub.s32 %s19, %s26
      %p28 = scmp.eq.s32.totalorder %s27, 0
      %s30 = sadd.s32 %s29, 1
      %s31 = scalar_select %p28, %s29, %s30
      %p34 = pneg %p28
      %p35 = scmp.eq.s32.totalorder %s19, 1
      %p36 = por %p34, %p35
      %p37 = scmp.ne.s32.totalorder %s29, %s32
      %p38 = scmp.eq.s32.totalorder %s19, 0
      %p39 = por %p37, %p38
      %p40 = scmp.ne.s32.totalorder %s29, %s32
      %p41 = scmp.eq.s32.totalorder %s24, 1
      %p42 = por %p40, %p41
      %p43 = scmp.ne.s32.totalorder %s32, %s33
      %p44 = scmp.eq.s32.totalorder %s24, 0
      %p45 = por %p43, %p44
      %p46 = scmp.ne.s32.totalorder %s32, %s33
      %p47 = scmp.eq.s32.totalorder %s25, 1
      %p48 = por %p46, %p47
      %p50 = scmp.ne.s32.totalorder %s33, %s49
      %p51 = scmp.eq.s32.totalorder %s25, 0
      %p52 = por %p50, %p51
      %s54 = sadd.s32 %s53, 1
      %p57 = scmp.eq.s32.totalorder %s19, 1
      %p58 = scmp.ne.s32.totalorder %s53, %s55
      %p59 = scmp.eq.s32.totalorder %s19, 0
      %p60 = por %p58, %p59
      %p61 = scmp.ne.s32.totalorder %s53, %s55
      %p62 = scmp.eq.s32.totalorder %s24, 1
      %p63 = por %p61, %p62
      %p64 = scmp.ne.s32.totalorder %s55, %s56
      %p65 = scmp.eq.s32.totalorder %s24, 0
      %p66 = por %p64, %p65
      %p67 = scmp.ne.s32.totalorder %s55, %s56
      %p68 = scmp.eq.s32.totalorder %s25, 1
      %p69 = por %p67, %p68
      %p71 = scmp.ne.s32.totalorder %s56, %s70
      %p72 = scmp.eq.s32.totalorder %s25, 0
      %p73 = por %p71, %p72
      %s75 = sadd.s32 %s74, 1
      %p78 = scmp.eq.s32.totalorder %s19, 1
      %p79 = scmp.ne.s32.totalorder %s74, %s76
      %p80 = scmp.eq.s32.totalorder %s19, 0
      %p81 = por %p79, %p80
      %p82 = scmp.ne.s32.totalorder %s74, %s76
      %p83 = scmp.eq.s32.totalorder %s24, 1
      %p84 = por %p82, %p83
      %p85 = scmp.ne.s32.totalorder %s76, %s77
      %p86 = scmp.eq.s32.totalorder %s24, 0
      %p87 = por %p85, %p86
      %p88 = scmp.ne.s32.totalorder %s76, %s77
      %p89 = scmp.eq.s32.totalorder %s25, 1
      %p90 = por %p88, %p89
      %p92 = scmp.ne.s32.totalorder %s77, %s91
      %p93 = scmp.eq.s32.totalorder %s25, 0
      %p94 = por %p92, %p93
      %s96 = sadd.s32 %s95, 1
      %p99 = scmp.eq.s32.totalorder %s19, 1
      %p100 = scmp.ne.s32.totalorder %s95, %s97
      %p101 = scmp.eq.s32.totalorder %s19, 0
      %p102 = por %p100, %p101
      %p103 = scmp.ne.s32.totalorder %s95, %s97
      %p104 = scmp.eq.s32.totalorder %s24, 1
      %p105 = por %p103, %p104
      %p106 = scmp.ne.s32.totalorder %s97, %s98
      %p107 = scmp.eq.s32.totalorder %s24, 0
      %p108 = por %p106, %p107
      %p109 = scmp.ne.s32.totalorder %s97, %s98
      %p110 = scmp.eq.s32.totalorder %s25, 1
      %p111 = por %p109, %p110
      %p113 = scmp.ne.s32.totalorder %s98, %s112
      %p114 = scmp.eq.s32.totalorder %s25, 0
      %p115 = por %p113, %p114
      %s117 = sadd.s32 %s116, 1
      %p120 = scmp.eq.s32.totalorder %s19, 1
      %p121 = scmp.ne.s32.totalorder %s116, %s118
      %p122 = scmp.eq.s32.totalorder %s19, 0
      %p123 = por %p121, %p122
      %p124 = scmp.ne.s32.totalorder %s116, %s118
      %p125 = scmp.eq.s32.totalorder %s24, 1
      %p126 = por %p124, %p125
      %p127 = scmp.ne.s32.totalorder %s118, %s119
      %p128 = scmp.eq.s32.totalorder %s24, 0
      %p129 = por %p127, %p128
      %p130 = scmp.ne.s32.totalorder %s118, %s119
      %p131 = scmp.eq.s32.totalorder %s25, 1
      %p132 = por %p130, %p131
      %p134 = scmp.ne.s32.totalorder %s119, %s133
      %p135 = scmp.eq.s32.totalorder %s25, 0
      %p136 = por %p134, %p135
      %s138 = sadd.s32 %s137, 1
      %p141 = scmp.eq.s32.totalorder %s19, 1
      %p142 = scmp.ne.s32.totalorder %s137, %s139
      %p143 = scmp.eq.s32.totalorder %s19, 0
      %p144 = por %p142, %p143
      %p145 = scmp.ne.s32.totalorder %s137, %s139
      %p146 = scmp.eq.s32.totalorder %s24, 1
      %p147 = por %p145, %p146
      %p148 = scmp.ne.s32.totalorder %s139, %s140
      %p149 = scmp.eq.s32.totalorder %s24, 0
      %p150 = por %p148, %p149
      %p151 = scmp.ne.s32.totalorder %s139, %s140
      %p152 = scmp.eq.s32.totalorder %s25, 1
      %p153 = por %p151, %p152
      %p155 = scmp.ne.s32.totalorder %s140, %s154
      %p156 = scmp.eq.s32.totalorder %s25, 0
      %p157 = por %p155, %p156
      %s159 = sadd.s32 %s158, 1
      %p162 = scmp.eq.s32.totalorder %s19, 1
      %p163 = scmp.ne.s32.totalorder %s158, %s160
      %p164 = scmp.eq.s32.totalorder %s19, 0
      %p165 = por %p163, %p164
      %p166 = scmp.ne.s32.totalorder %s158, %s160
      %p167 = scmp.eq.s32.totalorder %s24, 1
      %p168 = por %p166, %p167
      %p169 = scmp.ne.s32.totalorder %s160, %s161
      %p170 = scmp.eq.s32.totalorder %s24, 0
      %p171 = por %p169, %p170
      %p172 = scmp.ne.s32.totalorder %s160, %s161
      %p173 = scmp.eq.s32.totalorder %s25, 1
      %p174 = por %p172, %p173
      %p176 = scmp.ne.s32.totalorder %s161, %s175
      %p177 = scmp.eq.s32.totalorder %s25, 0
      %p178 = por %p176, %p177
      %s179 = ssub.s32 %s19, %s26
      %p180 = scmp.eq.s32.totalorder %s179, 0
      %s182 = sadd.s32 %s181, 1
      %s183 = scalar_select %p180, %s181, %s182
      %p186 = pneg %p180
      %p187 = scmp.eq.s32.totalorder %s19, 1
      %p188 = por %p186, %p187
      %p189 = scmp.ne.s32.totalorder %s181, %s184
      %p190 = scmp.eq.s32.totalorder %s19, 0
      %p191 = por %p189, %p190
      %p192 = scmp.ne.s32.totalorder %s181, %s184
      %p193 = scmp.eq.s32.totalorder %s24, 1
      %p194 = por %p192, %p193
      %p195 = scmp.ne.s32.totalorder %s184, %s185
      %p196 = scmp.eq.s32.totalorder %s24, 0
      %p197 = por %p195, %p196
      %p198 = scmp.ne.s32.totalorder %s184, %s185
      %p199 = scmp.eq.s32.totalorder %s25, 1
      %p200 = por %p198, %p199
      %p202 = scmp.ne.s32.totalorder %s185, %s201
      %p203 = scmp.eq.s32.totalorder %s25, 0
      %p204 = por %p202, %p203
      %p205 = scmp.le.s32.totalorder 1, %s19
      %p206 = scmp.lt.s32.totalorder %s19, 3
      %p207 = pnand %p205, %p206
      %p208 = pneg %p207
      // Predicated region
      $region9: #{tpu_custom_call.1} parent=5 // pred_check
        _
      $region10: #{tpu_custom_call.1} parent=5 // pred_check_branch
        %210 = sbr.rel (%p207) target = $region12
      $region11: #{tpu_custom_call.1} parent=5 // pred_region
        %s211 = ssub.s32 %s19, 1
        // Predicated region
        $region13: #{tpu_custom_call.1} parent=11 // pred_check
          %p212 = pneg %p66
        $region14: #{tpu_custom_call.1} parent=11 // pred_check_branch
          %214 = sbr.rel (%p212) target = $region16
        $region15: #{tpu_custom_call.1} parent=11 // pred_region
          _
        $region16: #{tpu_custom_call.1} parent=11 // pred_fallthru
          _
        // Predicated region
        $region17: #{tpu_custom_call.1} parent=11 // pred_check
          %p215 = pneg %p87
        $region18: #{tpu_custom_call.1} parent=11 // pred_check_branch
          %217 = sbr.rel (%p215) target = $region20
        $region19: #{tpu_custom_call.1} parent=11 // pred_region
          _
        $region20: #{tpu_custom_call.1} parent=11 // pred_fallthru
          _
        // Predicated region
        $region21: #{tpu_custom_call.1} parent=11 // pred_check
          %p218 = pneg %p108
        $region22: #{tpu_custom_call.1} parent=11 // pred_check_branch
          %220 = sbr.rel (%p218) target = $region24
        $region23: #{tpu_custom_call.1} parent=11 // pred_region
          _
        $region24: #{tpu_custom_call.1} parent=11 // pred_fallthru
          _
        // Predicated region
        $region25: #{tpu_custom_call.1} parent=11 // pred_check
          %p221 = pneg %p129
        $region26: #{tpu_custom_call.1} parent=11 // pred_check_branch
          %223 = sbr.rel (%p221) target = $region28
        $region27: #{tpu_custom_call.1} parent=11 // pred_region
          _
        $region28: #{tpu_custom_call.1} parent=11 // pred_fallthru
          _
        // Predicated region
        $region29: #{tpu_custom_call.1} parent=11 // pred_check
          %p224 = pneg %p150
        $region30: #{tpu_custom_call.1} parent=11 // pred_check_branch
          %226 = sbr.rel (%p224) target = $region32
        $region31: #{tpu_custom_call.1} parent=11 // pred_region
          _
        $region32: #{tpu_custom_call.1} parent=11 // pred_fallthru
          _
        // Predicated region
        $region33: #{tpu_custom_call.1} parent=11 // pred_check
          %p227 = pneg %p171
        $region34: #{tpu_custom_call.1} parent=11 // pred_check_branch
          %229 = sbr.rel (%p227) target = $region36
        $region35: #{tpu_custom_call.1} parent=11 // pred_region
          _
        $region36: #{tpu_custom_call.1} parent=11 // pred_fallthru
          _
      $region12: #{tpu_custom_call.1} parent=5 // pred_fallthru
        _
      %p230 = scmp.lt.s32.totalorder %s19, 2
      // Predicated region
      $region37: #{tpu_custom_call.1} parent=5 // pred_check
        %p231 = pneg %p230
      $region38: #{tpu_custom_call.1} parent=5 // pred_check_branch
        %233 = sbr.rel (%p231) target = $region40
      $region39: #{tpu_custom_call.1} parent=5 // pred_region
        // Predicated region
        $region41: #{tpu_custom_call.1} parent=39 // pred_check
          %p234 = pneg %p39
        $region42: #{tpu_custom_call.1} parent=39 // pred_check_branch
          %236 = sbr.rel (%p234) target = $region44
        $region43: #{tpu_custom_call.1} parent=39 // pred_region
          %s237 = sand.u32 %s29, 1
          %s238 = scalar_lea.sflag [#allocation3], %s237
          %s239 = sand.u32 %s29, 1
          %s240 = smul.addr %s239, 256
          %s241 = scalar_lea.vmem [#allocation2], %s240
          %s243 = ssub.s32 4096, 4096
          %244 = vsyncadd %s238, %s243
          %s245 = smul.addr %s19, 32
          %s246 = smul.addr %s245, 128
          %s247 = scalar_lea.hbm %s0, %s246
          %s248 = sshll.u32 %s241, 4
          %s249 = int_to_ptr.vmem [resolvable:$true] %s248
          %254 = dma.hbm_to_vmem [thread:$0]  %s247, 4096, %s249, %s238, 256, 256, 16
        $region44: #{tpu_custom_call.1} parent=39 // pred_fallthru
          _
      $region40: #{tpu_custom_call.1} parent=5 // pred_fallthru
        _
      %p255 = scmp.le.s32.totalorder 1, %s19
      %p256 = scmp.lt.s32.totalorder %s19, 3
      %p257 = pnand %p255, %p256
      %p258 = pneg %p257
      // Predicated region
      $region45: #{tpu_custom_call.1} parent=5 // pred_check
        _
      $region46: #{tpu_custom_call.1} parent=5 // pred_check_branch
        %260 = sbr.rel (%p257) target = $region48
      $region47: #{tpu_custom_call.1} parent=5 // pred_region
        %s261 = ssub.s32 %s19, 1
        %s262 = sand.u32 %s32, 1
        %s263 = scalar_lea.sflag [#allocation3], %s262
        %s264 = sand.u32 %s32, 1
        %s265 = smul.addr %s264, 256
        %s266 = scalar_lea.vmem [#allocation2], %s265
        // Predicated region
        $region49: #{tpu_custom_call.1} parent=47 // pred_check
          %p267 = pneg %p45
        $region50: #{tpu_custom_call.1} parent=47 // pred_check_branch
          %269 = sbr.rel (%p267) target = $region52
        $region51: #{tpu_custom_call.1} parent=47 // pred_region
          %270 = dma.done %s263, 4096
        $region52: #{tpu_custom_call.1} parent=47 // pred_fallthru
          _
        %s271 = sand.u32 %s32, 1
        %s272 = scalar_lea.sflag [#allocation3], %s271
        %s273 = sand.u32 %s32, 1
        %s274 = smul.addr %s273, 256
        %s275 = scalar_lea.vmem [#allocation2], %s274
        %p276 = pneg %p45
        %p277 = pneg %p42
        %p278 = pneg %p66
        %p279 = pneg %p63
        %p280 = pneg %p87
        %p281 = pneg %p84
        %p282 = pneg %p108
        %p283 = pneg %p105
        %p284 = pneg %p129
        %p285 = pneg %p126
        %p286 = pneg %p150
        %p287 = pneg %p147
        %p288 = pneg %p171
        %p289 = pneg %p168
        %p290 = pneg %p197
        %p291 = pneg %p194
        %s292 = sand.u32 %s184, 1
        %s293 = scalar_lea.sflag [#allocation4], %s292
        %s294 = sand.u32 %s184, 1
        %s295 = smul.addr %s294, 256
        %s296 = scalar_lea.vmem [#allocation5], %s295
        %v298 = vld [vmem:[%s266] sm:$0xff]
        %v299 = vld [vmem:[%s266 + $0x8] sm:$0xff]
        %v300 = vld [vmem:[%s266 + $0x10] sm:$0xff]
        %v301 = vld [vmem:[%s266 + $0x18] sm:$0xff]
        %v302 = vld [vmem:[%s266 + $0x20] sm:$0xff]
        %v303 = vld [vmem:[%s266 + $0x28] sm:$0xff]
        %v304 = vld [vmem:[%s266 + $0x30] sm:$0xff]
        %v305 = vld [vmem:[%s266 + $0x38] sm:$0xff]
        %v306 = vld [vmem:[%s266 + $0x40] sm:$0xff]
        %v307 = vld [vmem:[%s266 + $0x48] sm:$0xff]
        %v308 = vld [vmem:[%s266 + $0x50] sm:$0xff]
        %v309 = vld [vmem:[%s266 + $0x58] sm:$0xff]
        %v310 = vld [vmem:[%s266 + $0x60] sm:$0xff]
        %v311 = vld [vmem:[%s266 + $0x68] sm:$0xff]
        %v312 = vld [vmem:[%s266 + $0x70] sm:$0xff]
        %v313 = vld [vmem:[%s266 + $0x78] sm:$0xff]
        %v314 = vld [vmem:[%s266 + $0x80] sm:$0xff]
        %v315 = vld [vmem:[%s266 + $0x88] sm:$0xff]
        %v316 = vld [vmem:[%s266 + $0x90] sm:$0xff]
        %v317 = vld [vmem:[%s266 + $0x98] sm:$0xff]
        %v318 = vld [vmem:[%s266 + $0xa0] sm:$0xff]
        %v319 = vld [vmem:[%s266 + $0xa8] sm:$0xff]
        %v320 = vld [vmem:[%s266 + $0xb0] sm:$0xff]
        %v321 = vld [vmem:[%s266 + $0xb8] sm:$0xff]
        %v322 = vld [vmem:[%s266 + $0xc0] sm:$0xff]
        %v323 = vld [vmem:[%s266 + $0xc8] sm:$0xff]
        %v324 = vld [vmem:[%s266 + $0xd0] sm:$0xff]
        %v325 = vld [vmem:[%s266 + $0xd8] sm:$0xff]
        %v326 = vld [vmem:[%s266 + $0xe0] sm:$0xff]
        %v327 = vld [vmem:[%s266 + $0xe8] sm:$0xff]
        %v328 = vld [vmem:[%s266 + $0xf0] sm:$0xff]
        %v329 = vld [vmem:[%s266 + $0xf8] sm:$0xff]
        %v330 = vld [vmem:[%s2] sm:$0xff]
        %v331 = vld [vmem:[%s2 + $0x8] sm:$0xff]
        %v332 = vld [vmem:[%s2 + $0x10] sm:$0xff]
        %v333 = vld [vmem:[%s2 + $0x18] sm:$0xff]
        %v334 = vld [vmem:[%s2 + $0x20] sm:$0xff]
        %v335 = vld [vmem:[%s2 + $0x28] sm:$0xff]
        %v336 = vld [vmem:[%s2 + $0x30] sm:$0xff]
        %v337 = vld [vmem:[%s2 + $0x38] sm:$0xff]
        %v338 = vld [vmem:[%s2 + $0x40] sm:$0xff]
        %v339 = vld [vmem:[%s2 + $0x48] sm:$0xff]
        %v340 = vld [vmem:[%s2 + $0x50] sm:$0xff]
        %v341 = vld [vmem:[%s2 + $0x58] sm:$0xff]
        %v342 = vld [vmem:[%s2 + $0x60] sm:$0xff]
        %v343 = vld [vmem:[%s2 + $0x68] sm:$0xff]
        %v344 = vld [vmem:[%s2 + $0x70] sm:$0xff]
        %v345 = vld [vmem:[%s2 + $0x78] sm:$0xff]
        %v346 = vld [vmem:[%s1] sm:$0xff]
        %v347 = vld [vmem:[%s1 + $0x8] sm:$0xff]
        %v348 = vld [vmem:[%s1 + $0x10] sm:$0xff]
        %v349 = vld [vmem:[%s1 + $0x18] sm:$0xff]
        %v350 = vld [vmem:[%s1 + $0x20] sm:$0xff]
        %v351 = vld [vmem:[%s1 + $0x28] sm:$0xff]
        %v352 = vld [vmem:[%s1 + $0x30] sm:$0xff]
        %v353 = vld [vmem:[%s1 + $0x38] sm:$0xff]
        %v354 = vld [vmem:[%s1 + $0x40] sm:$0xff]
        %v355 = vld [vmem:[%s1 + $0x48] sm:$0xff]
        %v356 = vld [vmem:[%s1 + $0x50] sm:$0xff]
        %v357 = vld [vmem:[%s1 + $0x58] sm:$0xff]
        %v358 = vld [vmem:[%s1 + $0x60] sm:$0xff]
        %v359 = vld [vmem:[%s1 + $0x68] sm:$0xff]
        %v360 = vld [vmem:[%s1 + $0x70] sm:$0xff]
        %v361 = vld [vmem:[%s1 + $0x78] sm:$0xff]
        %v362 = vadd.f32 %v298, %v299
        %363 = vadd.xlane.f32.xlu0 %v362
        %v364 = vpop.xlane.xlu0 %363
        %v365 = vadd.f32 %v300, %v301
        %366 = vadd.xlane.f32.xlu0 %v365
        %v367 = vpop.xlane.xlu0 %366
        %v368 = vadd.f32 %v302, %v303
        %369 = vadd.xlane.f32.xlu0 %v368
        %v370 = vpop.xlane.xlu0 %369
        %v371 = vadd.f32 %v304, %v305
        %372 = vadd.xlane.f32.xlu0 %v371
        %v373 = vpop.xlane.xlu0 %372
        %v374 = vadd.f32 %v306, %v307
        %375 = vadd.xlane.f32.xlu0 %v374
        %v376 = vpop.xlane.xlu0 %375
        %v377 = vadd.f32 %v308, %v309
        %378 = vadd.xlane.f32.xlu0 %v377
        %v379 = vpop.xlane.xlu0 %378
        %v380 = vadd.f32 %v310, %v311
        %381 = vadd.xlane.f32.xlu0 %v380
        %v382 = vpop.xlane.xlu0 %381
        %v383 = vadd.f32 %v312, %v313
        %384 = vadd.xlane.f32.xlu0 %v383
        %v385 = vpop.xlane.xlu0 %384
        %v386 = vadd.f32 %v314, %v315
        %387 = vadd.xlane.f32.xlu0 %v386
        %v388 = vpop.xlane.xlu0 %387
        %v389 = vadd.f32 %v316, %v317
        %390 = vadd.xlane.f32.xlu0 %v389
        %v391 = vpop.xlane.xlu0 %390
        %v392 = vadd.f32 %v318, %v319
        %393 = vadd.xlane.f32.xlu0 %v392
        %v394 = vpop.xlane.xlu0 %393
        %v395 = vadd.f32 %v320, %v321
        %396 = vadd.xlane.f32.xlu0 %v395
        %v397 = vpop.xlane.xlu0 %396
        %v398 = vadd.f32 %v322, %v323
        %399 = vadd.xlane.f32.xlu0 %v398
        %v400 = vpop.xlane.xlu0 %399
        %v401 = vadd.f32 %v324, %v325
        %402 = vadd.xlane.f32.xlu0 %v401
        %v403 = vpop.xlane.xlu0 %402
        %v404 = vadd.f32 %v326, %v327
        %405 = vadd.xlane.f32.xlu0 %v404
        %v406 = vpop.xlane.xlu0 %405
        %v407 = vadd.f32 %v328, %v329
        %408 = vadd.xlane.f32.xlu0 %v407
        %v409 = vpop.xlane.xlu0 %408
        %410 = vmatprep.subr.mxu0 0.0
        %411 = vmatpush1.msra.mxu0 %v364
        %412 = vmatprep.subr.mxu0 0.0
        %413 = vmatpush1.msra.mxu0 %v367
        %414 = vmatprep.subr.mxu0 0.0
        %415 = vmatpush1.msra.mxu0 %v370
        %416 = vmatprep.subr.mxu0 0.0
        %417 = vmatpush1.msra.mxu0 %v373
        %418 = vmatprep.subr.mxu0 0.0
        %419 = vmatpush1.msra.mxu0 %v376
        %420 = vmatprep.subr.mxu0 0.0
        %421 = vmatpush1.msra.mxu0 %v379
        %422 = vmatprep.subr.mxu0 0.0
        %423 = vmatpush1.msra.mxu0 %v382
        %424 = vmatprep.subr.mxu0 0.0
        %425 = vmatpush1.msra.mxu0 %v385
        %426 = vmatprep.subr.mxu0 0.0
        %427 = vmatpush1.msra.mxu0 %v388
        %428 = vmatprep.subr.mxu0 0.0
        %429 = vmatpush1.msra.mxu0 %v391
        %430 = vmatprep.subr.mxu0 0.0
        %431 = vmatpush1.msra.mxu0 %v394
        %432 = vmatprep.subr.mxu0 0.0
        %433 = vmatpush1.msra.mxu0 %v397
        %434 = vmatprep.subr.mxu0 0.0
        %435 = vmatpush1.msra.mxu0 %v400
        %436 = vmatprep.subr.mxu0 0.0
        %437 = vmatpush1.msra.mxu0 %v403
        %438 = vmatprep.subr.mxu0 0.0
        %439 = vmatpush1.msra.mxu0 %v406
        %440 = vmatprep.subr.mxu0 0.0
        %441 = vmatpush1.msra.mxu0 %v409
        %442 = vmatprep.subr.mxu0 0.0
        %443 = vmatpush1.msra.mxu0 0.0
        %444 = vmatprep.subr.mxu0 0.0
        %445 = vmatpush1.msra.mxu0 0.0
        %446 = vmatprep.subr.mxu0 0.0
        %447 = vmatpush1.msra.mxu0 0.0
        %448 = vmatprep.subr.mxu0 0.0
        %449 = vmatpush1.msra.mxu0 0.0
        %450 = vmatprep.subr.mxu0 0.0
        %451 = vmatpush1.msra.mxu0 0.0
        %452 = vmatprep.subr.mxu0 0.0
        %453 = vmatpush1.msra.mxu0 0.0
        %454 = vmatprep.subr.mxu0 0.0
        %455 = vmatpush1.msra.mxu0 0.0
        %456 = vmatprep.subr.mxu0 0.0
        %457 = vmatpush1.msra.mxu0 0.0
        %458 = vmatprep.subr.mxu0 0.0
        %459 = vmatpush1.msra.mxu0 0.0
        %460 = vmatprep.subr.mxu0 0.0
        %461 = vmatpush1.msra.mxu0 0.0
        %462 = vmatprep.subr.mxu0 0.0
        %463 = vmatpush1.msra.mxu0 0.0
        %464 = vmatprep.subr.mxu0 0.0
        %465 = vmatpush1.msra.mxu0 0.0
        %466 = vmatprep.subr.mxu0 0.0
        %467 = vmatpush1.msra.mxu0 0.0
        %468 = vmatprep.subr.mxu0 0.0
        %469 = vmatpush1.msra.mxu0 0.0
        %470 = vmatprep.subr.mxu0 0.0
        %471 = vmatpush1.msra.mxu0 0.0
        %472 = vmatprep.subr.mxu0 0.0
        %473 = vmatpush1.msra.mxu0 0.0
        %474 = vmatprep.mubr.f32.mxu0 0.0
        %475 = vmatmul.mubr.f32.gmra.mrb[0].mxu0 %v346
        %v476 = vpop.f32.mrb[0].mxu0
        %v477 = vadd.f32 0.0, %v476
        %v478 = vpop.f32.mrb[0].mxu0
        %479 = vmatprep.mubr.f32.mxu0 0.0
        %480 = vmatmul.mubr.f32.gmra.mrb[0].mxu0 %v347
        %v481 = vpop.f32.mrb[0].mxu0
        %v482 = vadd.f32 0.0, %v481
        %v483 = vpop.f32.mrb[0].mxu0
        %484 = vmatprep.mubr.f32.mxu0 0.0
        %485 = vmatmul.mubr.f32.gmra.mrb[0].mxu0 %v348
        %v486 = vpop.f32.mrb[0].mxu0
        %v487 = vadd.f32 0.0, %v486
        %v488 = vpop.f32.mrb[0].mxu0
        %489 = vmatprep.mubr.f32.mxu0 0.0
        %490 = vmatmul.mubr.f32.gmra.mrb[0].mxu0 %v349
        %v491 = vpop.f32.mrb[0].mxu0
        %v492 = vadd.f32 0.0, %v491
        %v493 = vpop.f32.mrb[0].mxu0
        %494 = vmatprep.mubr.f32.mxu0 0.0
        %495 = vmatmul.mubr.f32.gmra.mrb[0].mxu0 %v350
        %v496 = vpop.f32.mrb[0].mxu0
        %v497 = vadd.f32 0.0, %v496
        %v498 = vpop.f32.mrb[0].mxu0
        %499 = vmatprep.mubr.f32.mxu0 0.0
        %500 = vmatmul.mubr.f32.gmra.mrb[0].mxu0 %v351
        %v501 = vpop.f32.mrb[0].mxu0
        %v502 = vadd.f32 0.0, %v501
        %v503 = vpop.f32.mrb[0].mxu0
        %504 = vmatprep.mubr.f32.mxu0 0.0
        %505 = vmatmul.mubr.f32.gmra.mrb[0].mxu0 %v352
        %v506 = vpop.f32.mrb[0].mxu0
        %v507 = vadd.f32 0.0, %v506
        %v508 = vpop.f32.mrb[0].mxu0
        %509 = vmatprep.mubr.f32.mxu0 0.0
        %510 = vmatmul.mubr.f32.gmra.mrb[0].mxu0 %v353
        %v511 = vpop.f32.mrb[0].mxu0
        %v512 = vadd.f32 0.0, %v511
        %v513 = vpop.f32.mrb[0].mxu0
        %514 = vmatprep.mubr.f32.mxu0 0.0
        %515 = vmatmul.mubr.f32.gmra.mrb[0].mxu0 %v354
        %v516 = vpop.f32.mrb[0].mxu0
        %v517 = vadd.f32 0.0, %v516
        %v518 = vpop.f32.mrb[0].mxu0
        %519 = vmatprep.mubr.f32.mxu0 0.0
        %520 = vmatmul.mubr.f32.gmra.mrb[0].mxu0 %v355
        %v521 = vpop.f32.mrb[0].mxu0
        %v522 = vadd.f32 0.0, %v521
        %v523 = vpop.f32.mrb[0].mxu0
        %524 = vmatprep.mubr.f32.mxu0 0.0
        %525 = vmatmul.mubr.f32.gmra.mrb[0].mxu0 %v356
        %v526 = vpop.f32.mrb[0].mxu0
        %v527 = vadd.f32 0.0, %v526
        %v528 = vpop.f32.mrb[0].mxu0
        %529 = vmatprep.mubr.f32.mxu0 0.0
        %530 = vmatmul.mubr.f32.gmra.mrb[0].mxu0 %v357
        %v531 = vpop.f32.mrb[0].mxu0
        %v532 = vadd.f32 0.0, %v531
        %v533 = vpop.f32.mrb[0].mxu0
        %534 = vmatprep.mubr.f32.mxu0 0.0
        %535 = vmatmul.mubr.f32.gmra.mrb[0].mxu0 %v358
        %v536 = vpop.f32.mrb[0].mxu0
        %v537 = vadd.f32 0.0, %v536
        %v538 = vpop.f32.mrb[0].mxu0
        %539 = vmatprep.mubr.f32.mxu0 0.0
        %540 = vmatmul.mubr.f32.gmra.mrb[0].mxu0 %v359
        %v541 = vpop.f32.mrb[0].mxu0
        %v542 = vadd.f32 0.0, %v541
        %v543 = vpop.f32.mrb[0].mxu0
        %544 = vmatprep.mubr.f32.mxu0 0.0
        %545 = vmatmul.mubr.f32.gmra.mrb[0].mxu0 %v360
        %v546 = vpop.f32.mrb[0].mxu0
        %v547 = vadd.f32 0.0, %v546
        %v548 = vpop.f32.mrb[0].mxu0
        %549 = vmatprep.mubr.f32.mxu0 0.0
        %550 = vmatmul.mubr.f32.gmra.mrb[0].mxu0 %v361
        %v551 = vpop.f32.mrb[0].mxu0
        %v552 = vadd.f32 0.0, %v551
        %v553 = vpop.f32.mrb[0].mxu0
        %554 = vdwg.mxu0
        %v555 = vmul.f32 %v477, 0.0009765625
        %v556 = vmul.f32 %v482, 0.0009765625
        %v557 = vmul.f32 %v487, 0.0009765625
        %v558 = vmul.f32 %v492, 0.0009765625
        %v559 = vmul.f32 %v497, 0.0009765625
        %v560 = vmul.f32 %v502, 0.0009765625
        %v561 = vmul.f32 %v507, 0.0009765625
        %v562 = vmul.f32 %v512, 0.0009765625
        %v563 = vmul.f32 %v517, 0.0009765625
        %v564 = vmul.f32 %v522, 0.0009765625
        %v565 = vmul.f32 %v527, 0.0009765625
        %v566 = vmul.f32 %v532, 0.0009765625
        %v567 = vmul.f32 %v537, 0.0009765625
        %v568 = vmul.f32 %v542, 0.0009765625
        %v569 = vmul.f32 %v547, 0.0009765625
        %v570 = vmul.f32 %v552, 0.0009765625
        %572 = vset.pattern.permute.xlu0 0
        %573 = vperm.xlu0 %572, %v555
        %v574 = vpop.permute.xlu0 %573
        %577 = vset.pattern.permute.xlu0 0
        %578 = vperm.xlu0 %577, %v556
        %v579 = vpop.permute.xlu0 %578
        %582 = vset.pattern.permute.xlu0 0
        %583 = vperm.xlu0 %582, %v557
        %v584 = vpop.permute.xlu0 %583
        %587 = vset.pattern.permute.xlu0 0
        %588 = vperm.xlu0 %587, %v558
        %v589 = vpop.permute.xlu0 %588
        %592 = vset.pattern.permute.xlu0 0
        %593 = vperm.xlu0 %592, %v559
        %v594 = vpop.permute.xlu0 %593
        %597 = vset.pattern.permute.xlu0 0
        %598 = vperm.xlu0 %597, %v560
        %v599 = vpop.permute.xlu0 %598
        %602 = vset.pattern.permute.xlu0 0
        %603 = vperm.xlu0 %602, %v561
        %v604 = vpop.permute.xlu0 %603
        %607 = vset.pattern.permute.xlu0 0
        %608 = vperm.xlu0 %607, %v562
        %v609 = vpop.permute.xlu0 %608
        %612 = vset.pattern.permute.xlu0 0
        %613 = vperm.xlu0 %612, %v563
        %v614 = vpop.permute.xlu0 %613
        %617 = vset.pattern.permute.xlu0 0
        %618 = vperm.xlu0 %617, %v564
        %v619 = vpop.permute.xlu0 %618
        %622 = vset.pattern.permute.xlu0 0
        %623 = vperm.xlu0 %622, %v565
        %v624 = vpop.permute.xlu0 %623
        %627 = vset.pattern.permute.xlu0 0
        %628 = vperm.xlu0 %627, %v566
        %v629 = vpop.permute.xlu0 %628
        %632 = vset.pattern.permute.xlu0 0
        %633 = vperm.xlu0 %632, %v567
        %v634 = vpop.permute.xlu0 %633
        %637 = vset.pattern.permute.xlu0 0
        %638 = vperm.xlu0 %637, %v568
        %v639 = vpop.permute.xlu0 %638
        %642 = vset.pattern.permute.xlu0 0
        %643 = vperm.xlu0 %642, %v569
        %v644 = vpop.permute.xlu0 %643
        %647 = vset.pattern.permute.xlu0 0
        %648 = vperm.xlu0 %647, %v570
        %v649 = vpop.permute.xlu0 %648
        %v651 = vsub.f32 %v298, %v574
        %v652 = vsub.f32 %v299, %v574
        %v653 = vsub.f32 %v300, %v579
        %v654 = vsub.f32 %v301, %v579
        %v655 = vsub.f32 %v302, %v584
        %v656 = vsub.f32 %v303, %v584
        %v657 = vsub.f32 %v304, %v589
        %v658 = vsub.f32 %v305, %v589
        %v659 = vsub.f32 %v306, %v594
        %v660 = vsub.f32 %v307, %v594
        %v661 = vsub.f32 %v308, %v599
        %v662 = vsub.f32 %v309, %v599
        %v663 = vsub.f32 %v310, %v604
        %v664 = vsub.f32 %v311, %v604
        %v665 = vsub.f32 %v312, %v609
        %v666 = vsub.f32 %v313, %v609
        %v667 = vsub.f32 %v314, %v614
        %v668 = vsub.f32 %v315, %v614
        %v669 = vsub.f32 %v316, %v619
        %v670 = vsub.f32 %v317, %v619
        %v671 = vsub.f32 %v318, %v624
        %v672 = vsub.f32 %v319, %v624
        %v673 = vsub.f32 %v320, %v629
        %v674 = vsub.f32 %v321, %v629
        %v675 = vsub.f32 %v322, %v634
        %v676 = vsub.f32 %v323, %v634
        %v677 = vsub.f32 %v324, %v639
        %v678 = vsub.f32 %v325, %v639
        %v679 = vsub.f32 %v326, %v644
        %v680 = vsub.f32 %v327, %v644
        %v681 = vsub.f32 %v328, %v649
        %v682 = vsub.f32 %v329, %v649
        %v683 = vmul.f32 %v651, %v651
        %v684 = vmul.f32 %v652, %v652
        %v685 = vmul.f32 %v653, %v653
        %v686 = vmul.f32 %v654, %v654
        %v687 = vmul.f32 %v655, %v655
        %v688 = vmul.f32 %v656, %v656
        %v689 = vmul.f32 %v657, %v657
        %v690 = vmul.f32 %v658, %v658
        %v691 = vmul.f32 %v659, %v659
        %v692 = vmul.f32 %v660, %v660
        %v693 = vmul.f32 %v661, %v661
        %v694 = vmul.f32 %v662, %v662
        %v695 = vmul.f32 %v663, %v663
        %v696 = vmul.f32 %v664, %v664
        %v697 = vmul.f32 %v665, %v665
        %v698 = vmul.f32 %v666, %v666
        %v699 = vmul.f32 %v667, %v667
        %v700 = vmul.f32 %v668, %v668
        %v701 = vmul.f32 %v669, %v669
        %v702 = vmul.f32 %v670, %v670
        %v703 = vmul.f32 %v671, %v671
        %v704 = vmul.f32 %v672, %v672
        %v705 = vmul.f32 %v673, %v673
        %v706 = vmul.f32 %v674, %v674
        %v707 = vmul.f32 %v675, %v675
        %v708 = vmul.f32 %v676, %v676
        %v709 = vmul.f32 %v677, %v677
        %v710 = vmul.f32 %v678, %v678
        %v711 = vmul.f32 %v679, %v679
        %v712 = vmul.f32 %v680, %v680
        %v713 = vmul.f32 %v681, %v681
        %v714 = vmul.f32 %v682, %v682
        %v715 = vadd.f32 %v683, %v684
        %716 = vadd.xlane.f32.xlu0 %v715
        %v717 = vpop.xlane.xlu0 %716
        %v718 = vadd.f32 %v685, %v686
        %719 = vadd.xlane.f32.xlu0 %v718
        %v720 = vpop.xlane.xlu0 %719
        %v721 = vadd.f32 %v687, %v688
        %722 = vadd.xlane.f32.xlu0 %v721
        %v723 = vpop.xlane.xlu0 %722
        %v724 = vadd.f32 %v689, %v690
        %725 = vadd.xlane.f32.xlu0 %v724
        %v726 = vpop.xlane.xlu0 %725
        %v727 = vadd.f32 %v691, %v692
        %728 = vadd.xlane.f32.xlu0 %v727
        %v729 = vpop.xlane.xlu0 %728
        %v730 = vadd.f32 %v693, %v694
        %731 = vadd.xlane.f32.xlu0 %v730
        %v732 = vpop.xlane.xlu0 %731
        %v733 = vadd.f32 %v695, %v696
        %734 = vadd.xlane.f32.xlu0 %v733
        %v735 = vpop.xlane.xlu0 %734
        %v736 = vadd.f32 %v697, %v698
        %737 = vadd.xlane.f32.xlu0 %v736
        %v738 = vpop.xlane.xlu0 %737
        %v739 = vadd.f32 %v699, %v700
        %740 = vadd.xlane.f32.xlu0 %v739
        %v741 = vpop.xlane.xlu0 %740
        %v742 = vadd.f32 %v701, %v702
        %743 = vadd.xlane.f32.xlu0 %v742
        %v744 = vpop.xlane.xlu0 %743
        %v745 = vadd.f32 %v703, %v704
        %746 = vadd.xlane.f32.xlu0 %v745
        %v747 = vpop.xlane.xlu0 %746
        %v748 = vadd.f32 %v705, %v706
        %749 = vadd.xlane.f32.xlu0 %v748
        %v750 = vpop.xlane.xlu0 %749
        %v751 = vadd.f32 %v707, %v708
        %752 = vadd.xlane.f32.xlu0 %v751
        %v753 = vpop.xlane.xlu0 %752
        %v754 = vadd.f32 %v709, %v710
        %755 = vadd.xlane.f32.xlu0 %v754
        %v756 = vpop.xlane.xlu0 %755
        %v757 = vadd.f32 %v711, %v712
        %758 = vadd.xlane.f32.xlu0 %v757
        %v759 = vpop.xlane.xlu0 %758
        %v760 = vadd.f32 %v713, %v714
        %761 = vadd.xlane.f32.xlu0 %v760
        %v762 = vpop.xlane.xlu0 %761
        %763 = vmatprep.subr.mxu0 0.0
        %764 = vmatpush1.msra.mxu0 %v717
        %765 = vmatprep.subr.mxu0 0.0
        %766 = vmatpush1.msra.mxu0 %v720
        %767 = vmatprep.subr.mxu0 0.0
        %768 = vmatpush1.msra.mxu0 %v723
        %769 = vmatprep.subr.mxu0 0.0
        %770 = vmatpush1.msra.mxu0 %v726
        %771 = vmatprep.subr.mxu0 0.0
        %772 = vmatpush1.msra.mxu0 %v729
        %773 = vmatprep.subr.mxu0 0.0
        %774 = vmatpush1.msra.mxu0 %v732
        %775 = vmatprep.subr.mxu0 0.0
        %776 = vmatpush1.msra.mxu0 %v735
        %777 = vmatprep.subr.mxu0 0.0
        %778 = vmatpush1.msra.mxu0 %v738
        %779 = vmatprep.subr.mxu0 0.0
        %780 = vmatpush1.msra.mxu0 %v741
        %781 = vmatprep.subr.mxu0 0.0
        %782 = vmatpush1.msra.mxu0 %v744
        %783 = vmatprep.subr.mxu0 0.0
        %784 = vmatpush1.msra.mxu0 %v747
        %785 = vmatprep.subr.mxu0 0.0
        %786 = vmatpush1.msra.mxu0 %v750
        %787 = vmatprep.subr.mxu0 0.0
        %788 = vmatpush1.msra.mxu0 %v753
        %789 = vmatprep.subr.mxu0 0.0
        %790 = vmatpush1.msra.mxu0 %v756
        %791 = vmatprep.subr.mxu0 0.0
        %792 = vmatpush1.msra.mxu0 %v759
        %793 = vmatprep.subr.mxu0 0.0
        %794 = vmatpush1.msra.mxu0 %v762
        %795 = vmatprep.subr.mxu0 0.0
        %796 = vmatpush1.msra.mxu0 0.0
        %797 = vmatprep.subr.mxu0 0.0
        %798 = vmatpush1.msra.mxu0 0.0
        %799 = vmatprep.subr.mxu0 0.0
        %800 = vmatpush1.msra.mxu0 0.0
        %801 = vmatprep.subr.mxu0 0.0
        %802 = vmatpush1.msra.mxu0 0.0
        %803 = vmatprep.subr.mxu0 0.0
        %804 = vmatpush1.msra.mxu0 0.0
        %805 = vmatprep.subr.mxu0 0.0
        %806 = vmatpush1.msra.mxu0 0.0
        %807 = vmatprep.subr.mxu0 0.0
        %808 = vmatpush1.msra.mxu0 0.0
        %809 = vmatprep.subr.mxu0 0.0
        %810 = vmatpush1.msra.mxu0 0.0
        %811 = vmatprep.subr.mxu0 0.0
        %812 = vmatpush1.msra.mxu0 0.0
        %813 = vmatprep.subr.mxu0 0.0
        %814 = vmatpush1.msra.mxu0 0.0
        %815 = vmatprep.subr.mxu0 0.0
        %816 = vmatpush1.msra.mxu0 0.0
        %817 = vmatprep.subr.mxu0 0.0
        %818 = vmatpush1.msra.mxu0 0.0
        %819 = vmatprep.subr.mxu0 0.0
        %820 = vmatpush1.msra.mxu0 0.0
        %821 = vmatprep.subr.mxu0 0.0
        %822 = vmatpush1.msra.mxu0 0.0
        %823 = vmatprep.subr.mxu0 0.0
        %824 = vmatpush1.msra.mxu0 0.0
        %825 = vmatprep.subr.mxu0 0.0
        %826 = vmatpush1.msra.mxu0 0.0
        %827 = vmatprep.mubr.f32.mxu0 0.0
        %828 = vmatmul.mubr.f32.gmra.mrb[0].mxu0 %v346
        %v829 = vpop.f32.mrb[0].mxu0
        %v830 = vadd.f32 0.0, %v829
        %v831 = vpop.f32.mrb[0].mxu0
        %832 = vmatprep.mubr.f32.mxu0 0.0
        %833 = vmatmul.mubr.f32.gmra.mrb[0].mxu0 %v347
        %v834 = vpop.f32.mrb[0].mxu0
        %v835 = vadd.f32 0.0, %v834
        %v836 = vpop.f32.mrb[0].mxu0
        %837 = vmatprep.mubr.f32.mxu0 0.0
        %838 = vmatmul.mubr.f32.gmra.mrb[0].mxu0 %v348
        %v839 = vpop.f32.mrb[0].mxu0
        %v840 = vadd.f32 0.0, %v839
        %v841 = vpop.f32.mrb[0].mxu0
        %842 = vmatprep.mubr.f32.mxu0 0.0
        %843 = vmatmul.mubr.f32.gmra.mrb[0].mxu0 %v349
        %v844 = vpop.f32.mrb[0].mxu0
        %v845 = vadd.f32 0.0, %v844
        %v846 = vpop.f32.mrb[0].mxu0
        %847 = vmatprep.mubr.f32.mxu0 0.0
        %848 = vmatmul.mubr.f32.gmra.mrb[0].mxu0 %v350
        %v849 = vpop.f32.mrb[0].mxu0
        %v850 = vadd.f32 0.0, %v849
        %v851 = vpop.f32.mrb[0].mxu0
        %852 = vmatprep.mubr.f32.mxu0 0.0
        %853 = vmatmul.mubr.f32.gmra.mrb[0].mxu0 %v351
        %v854 = vpop.f32.mrb[0].mxu0
        %v855 = vadd.f32 0.0, %v854
        %v856 = vpop.f32.mrb[0].mxu0
        %857 = vmatprep.mubr.f32.mxu0 0.0
        %858 = vmatmul.mubr.f32.gmra.mrb[0].mxu0 %v352
        %v859 = vpop.f32.mrb[0].mxu0
        %v860 = vadd.f32 0.0, %v859
        %v861 = vpop.f32.mrb[0].mxu0
        %862 = vmatprep.mubr.f32.mxu0 0.0
        %863 = vmatmul.mubr.f32.gmra.mrb[0].mxu0 %v353
        %v864 = vpop.f32.mrb[0].mxu0
        %v865 = vadd.f32 0.0, %v864
        %v866 = vpop.f32.mrb[0].mxu0
        %867 = vmatprep.mubr.f32.mxu0 0.0
        %868 = vmatmul.mubr.f32.gmra.mrb[0].mxu0 %v354
        %v869 = vpop.f32.mrb[0].mxu0
        %v870 = vadd.f32 0.0, %v869
        %v871 = vpop.f32.mrb[0].mxu0
        %872 = vmatprep.mubr.f32.mxu0 0.0
        %873 = vmatmul.mubr.f32.gmra.mrb[0].mxu0 %v355
        %v874 = vpop.f32.mrb[0].mxu0
        %v875 = vadd.f32 0.0, %v874
        %v876 = vpop.f32.mrb[0].mxu0
        %877 = vmatprep.mubr.f32.mxu0 0.0
        %878 = vmatmul.mubr.f32.gmra.mrb[0].mxu0 %v356
        %v879 = vpop.f32.mrb[0].mxu0
        %v880 = vadd.f32 0.0, %v879
        %v881 = vpop.f32.mrb[0].mxu0
        %882 = vmatprep.mubr.f32.mxu0 0.0
        %883 = vmatmul.mubr.f32.gmra.mrb[0].mxu0 %v357
        %v884 = vpop.f32.mrb[0].mxu0
        %v885 = vadd.f32 0.0, %v884
        %v886 = vpop.f32.mrb[0].mxu0
        %887 = vmatprep.mubr.f32.mxu0 0.0
        %888 = vmatmul.mubr.f32.gmra.mrb[0].mxu0 %v358
        %v889 = vpop.f32.mrb[0].mxu0
        %v890 = vadd.f32 0.0, %v889
        %v891 = vpop.f32.mrb[0].mxu0
        %892 = vmatprep.mubr.f32.mxu0 0.0
        %893 = vmatmul.mubr.f32.gmra.mrb[0].mxu0 %v359
        %v894 = vpop.f32.mrb[0].mxu0
        %v895 = vadd.f32 0.0, %v894
        %v896 = vpop.f32.mrb[0].mxu0
        %897 = vmatprep.mubr.f32.mxu0 0.0
        %898 = vmatmul.mubr.f32.gmra.mrb[0].mxu0 %v360
        %v899 = vpop.f32.mrb[0].mxu0
        %v900 = vadd.f32 0.0, %v899
        %v901 = vpop.f32.mrb[0].mxu0
        %902 = vmatprep.mubr.f32.mxu0 0.0
        %903 = vmatmul.mubr.f32.gmra.mrb[0].mxu0 %v361
        %v904 = vpop.f32.mrb[0].mxu0
        %v905 = vadd.f32 0.0, %v904
        %v906 = vpop.f32.mrb[0].mxu0
        %907 = vdwg.mxu0
        %v908 = vmul.f32 %v830, 0.0009765625
        %v909 = vmul.f32 %v835, 0.0009765625
        %v910 = vmul.f32 %v840, 0.0009765625
        %v911 = vmul.f32 %v845, 0.0009765625
        %v912 = vmul.f32 %v850, 0.0009765625
        %v913 = vmul.f32 %v855, 0.0009765625
        %v914 = vmul.f32 %v860, 0.0009765625
        %v915 = vmul.f32 %v865, 0.0009765625
        %v916 = vmul.f32 %v870, 0.0009765625
        %v917 = vmul.f32 %v875, 0.0009765625
        %v918 = vmul.f32 %v880, 0.0009765625
        %v919 = vmul.f32 %v885, 0.0009765625
        %v920 = vmul.f32 %v890, 0.0009765625
        %v921 = vmul.f32 %v895, 0.0009765625
        %v922 = vmul.f32 %v900, 0.0009765625
        %v923 = vmul.f32 %v905, 0.0009765625
        %v924 = vadd.f32 %v908, 1e-06
        %v925 = vadd.f32 %v909, 1e-06
        %v926 = vadd.f32 %v910, 1e-06
        %v927 = vadd.f32 %v911, 1e-06
        %v928 = vadd.f32 %v912, 1e-06
        %v929 = vadd.f32 %v913, 1e-06
        %v930 = vadd.f32 %v914, 1e-06
        %v931 = vadd.f32 %v915, 1e-06
        %v932 = vadd.f32 %v916, 1e-06
        %v933 = vadd.f32 %v917, 1e-06
        %v934 = vadd.f32 %v918, 1e-06
        %v935 = vadd.f32 %v919, 1e-06
        %v936 = vadd.f32 %v920, 1e-06
        %v937 = vadd.f32 %v921, 1e-06
        %v938 = vadd.f32 %v922, 1e-06
        %v939 = vadd.f32 %v923, 1e-06
        %v940 = vrsqrt.pop %v924
        %v941 = vrsqrt.pop %v925
        %v942 = vrsqrt.pop %v926
        %v943 = vrsqrt.pop %v927
        %v944 = vrsqrt.pop %v928
        %v945 = vrsqrt.pop %v929
        %v946 = vrsqrt.pop %v930
        %v947 = vrsqrt.pop %v931
        %v948 = vrsqrt.pop %v932
        %v949 = vrsqrt.pop %v933
        %v950 = vrsqrt.pop %v934
        %v951 = vrsqrt.pop %v935
        %v952 = vrsqrt.pop %v936
        %v953 = vrsqrt.pop %v937
        %v954 = vrsqrt.pop %v938
        %v955 = vrsqrt.pop %v939
        %957 = vset.pattern.permute.xlu0 0
        %958 = vperm.xlu0 %957, %v940
        %v959 = vpop.permute.xlu0 %958
        %962 = vset.pattern.permute.xlu0 0
        %963 = vperm.xlu0 %962, %v941
        %v964 = vpop.permute.xlu0 %963
        %967 = vset.pattern.permute.xlu0 0
        %968 = vperm.xlu0 %967, %v942
        %v969 = vpop.permute.xlu0 %968
        %972 = vset.pattern.permute.xlu0 0
        %973 = vperm.xlu0 %972, %v943
        %v974 = vpop.permute.xlu0 %973
        %977 = vset.pattern.permute.xlu0 0
        %978 = vperm.xlu0 %977, %v944
        %v979 = vpop.permute.xlu0 %978
        %982 = vset.pattern.permute.xlu0 0
        %983 = vperm.xlu0 %982, %v945
        %v984 = vpop.permute.xlu0 %983
        %987 = vset.pattern.permute.xlu0 0
        %988 = vperm.xlu0 %987, %v946
        %v989 = vpop.permute.xlu0 %988
        %992 = vset.pattern.permute.xlu0 0
        %993 = vperm.xlu0 %992, %v947
        %v994 = vpop.permute.xlu0 %993
        %997 = vset.pattern.permute.xlu0 0
        %998 = vperm.xlu0 %997, %v948
        %v999 = vpop.permute.xlu0 %998
        %1002 = vset.pattern.permute.xlu0 0
        %1003 = vperm.xlu0 %1002, %v949
        %v1004 = vpop.permute.xlu0 %1003
        %1007 = vset.pattern.permute.xlu0 0
        %1008 = vperm.xlu0 %1007, %v950
        %v1009 = vpop.permute.xlu0 %1008
        %1012 = vset.pattern.permute.xlu0 0
        %1013 = vperm.xlu0 %1012, %v951
        %v1014 = vpop.permute.xlu0 %1013
        %1017 = vset.pattern.permute.xlu0 0
        %1018 = vperm.xlu0 %1017, %v952
        %v1019 = vpop.permute.xlu0 %1018
        %1022 = vset.pattern.permute.xlu0 0
        %1023 = vperm.xlu0 %1022, %v953
        %v1024 = vpop.permute.xlu0 %1023
        %1027 = vset.pattern.permute.xlu0 0
        %1028 = vperm.xlu0 %1027, %v954
        %v1029 = vpop.permute.xlu0 %1028
        %1032 = vset.pattern.permute.xlu0 0
        %1033 = vperm.xlu0 %1032, %v955
        %v1034 = vpop.permute.xlu0 %1033
        %v1036 = vmul.f32 %v651, %v959
        %v1037 = vmul.f32 %v652, %v959
        %v1038 = vmul.f32 %v653, %v964
        %v1039 = vmul.f32 %v654, %v964
        %v1040 = vmul.f32 %v655, %v969
        %v1041 = vmul.f32 %v656, %v969
        %v1042 = vmul.f32 %v657, %v974
        %v1043 = vmul.f32 %v658, %v974
        %v1044 = vmul.f32 %v659, %v979
        %v1045 = vmul.f32 %v660, %v979
        %v1046 = vmul.f32 %v661, %v984
        %v1047 = vmul.f32 %v662, %v984
        %v1048 = vmul.f32 %v663, %v989
        %v1049 = vmul.f32 %v664, %v989
        %v1050 = vmul.f32 %v665, %v994
        %v1051 = vmul.f32 %v666, %v994
        %v1052 = vmul.f32 %v667, %v999
        %v1053 = vmul.f32 %v668, %v999
        %v1054 = vmul.f32 %v669, %v1004
        %v1055 = vmul.f32 %v670, %v1004
        %v1056 = vmul.f32 %v671, %v1009
        %v1057 = vmul.f32 %v672, %v1009
        %v1058 = vmul.f32 %v673, %v1014
        %v1059 = vmul.f32 %v674, %v1014
        %v1060 = vmul.f32 %v675, %v1019
        %v1061 = vmul.f32 %v676, %v1019
        %v1062 = vmul.f32 %v677, %v1024
        %v1063 = vmul.f32 %v678, %v1024
        %v1064 = vmul.f32 %v679, %v1029
        %v1065 = vmul.f32 %v680, %v1029
        %v1066 = vmul.f32 %v681, %v1034
        %v1067 = vmul.f32 %v682, %v1034
        %1069 = vset.pattern.permute.xlu0 0
        %1070 = vperm.xlu0 %1069, %v330
        %v1071 = vpop.permute.xlu0 %1070
        %1074 = vset.pattern.permute.xlu0 0
        %1075 = vperm.xlu0 %1074, %v331
        %v1076 = vpop.permute.xlu0 %1075
        %1079 = vset.pattern.permute.xlu0 0
        %1080 = vperm.xlu0 %1079, %v332
        %v1081 = vpop.permute.xlu0 %1080
        %1084 = vset.pattern.permute.xlu0 0
        %1085 = vperm.xlu0 %1084, %v333
        %v1086 = vpop.permute.xlu0 %1085
        %1089 = vset.pattern.permute.xlu0 0
        %1090 = vperm.xlu0 %1089, %v334
        %v1091 = vpop.permute.xlu0 %1090
        %1094 = vset.pattern.permute.xlu0 0
        %1095 = vperm.xlu0 %1094, %v335
        %v1096 = vpop.permute.xlu0 %1095
        %1099 = vset.pattern.permute.xlu0 0
        %1100 = vperm.xlu0 %1099, %v336
        %v1101 = vpop.permute.xlu0 %1100
        %1104 = vset.pattern.permute.xlu0 0
        %1105 = vperm.xlu0 %1104, %v337
        %v1106 = vpop.permute.xlu0 %1105
        %1109 = vset.pattern.permute.xlu0 0
        %1110 = vperm.xlu0 %1109, %v338
        %v1111 = vpop.permute.xlu0 %1110
        %1114 = vset.pattern.permute.xlu0 0
        %1115 = vperm.xlu0 %1114, %v339
        %v1116 = vpop.permute.xlu0 %1115
        %1119 = vset.pattern.permute.xlu0 0
        %1120 = vperm.xlu0 %1119, %v340
        %v1121 = vpop.permute.xlu0 %1120
        %1124 = vset.pattern.permute.xlu0 0
        %1125 = vperm.xlu0 %1124, %v341
        %v1126 = vpop.permute.xlu0 %1125
        %1129 = vset.pattern.permute.xlu0 0
        %1130 = vperm.xlu0 %1129, %v342
        %v1131 = vpop.permute.xlu0 %1130
        %1134 = vset.pattern.permute.xlu0 0
        %1135 = vperm.xlu0 %1134, %v343
        %v1136 = vpop.permute.xlu0 %1135
        %1139 = vset.pattern.permute.xlu0 0
        %1140 = vperm.xlu0 %1139, %v344
        %v1141 = vpop.permute.xlu0 %1140
        %1144 = vset.pattern.permute.xlu0 0
        %1145 = vperm.xlu0 %1144, %v345
        %v1146 = vpop.permute.xlu0 %1145
        %v1148 = vmul.f32 %v1036, %v1071
        %v1149 = vmul.f32 %v1037, %v1071
        %v1150 = vmul.f32 %v1038, %v1076
        %v1151 = vmul.f32 %v1039, %v1076
        %v1152 = vmul.f32 %v1040, %v1081
        %v1153 = vmul.f32 %v1041, %v1081
        %v1154 = vmul.f32 %v1042, %v1086
        %v1155 = vmul.f32 %v1043, %v1086
        %v1156 = vmul.f32 %v1044, %v1091
        %v1157 = vmul.f32 %v1045, %v1091
        %v1158 = vmul.f32 %v1046, %v1096
        %v1159 = vmul.f32 %v1047, %v1096
        %v1160 = vmul.f32 %v1048, %v1101
        %v1161 = vmul.f32 %v1049, %v1101
        %v1162 = vmul.f32 %v1050, %v1106
        %v1163 = vmul.f32 %v1051, %v1106
        %v1164 = vmul.f32 %v1052, %v1111
        %v1165 = vmul.f32 %v1053, %v1111
        %v1166 = vmul.f32 %v1054, %v1116
        %v1167 = vmul.f32 %v1055, %v1116
        %v1168 = vmul.f32 %v1056, %v1121
        %v1169 = vmul.f32 %v1057, %v1121
        %v1170 = vmul.f32 %v1058, %v1126
        %v1171 = vmul.f32 %v1059, %v1126
        %v1172 = vmul.f32 %v1060, %v1131
        %v1173 = vmul.f32 %v1061, %v1131
        %v1174 = vmul.f32 %v1062, %v1136
        %v1175 = vmul.f32 %v1063, %v1136
        %v1176 = vmul.f32 %v1064, %v1141
        %v1177 = vmul.f32 %v1065, %v1141
        %v1178 = vmul.f32 %v1066, %v1146
        %v1179 = vmul.f32 %v1067, %v1146
        %1180 = vset.pattern.permute.xlu0 1
        %1181 = vperm.xlu0 %1180, %v330
        %v1182 = vpop.permute.xlu0 %1181
        %1184 = vset.pattern.permute.xlu0 1
        %1185 = vperm.xlu0 %1184, %v331
        %v1186 = vpop.permute.xlu0 %1185
        %1188 = vset.pattern.permute.xlu0 1
        %1189 = vperm.xlu0 %1188, %v332
        %v1190 = vpop.permute.xlu0 %1189
        %1192 = vset.pattern.permute.xlu0 1
        %1193 = vperm.xlu0 %1192, %v333
        %v1194 = vpop.permute.xlu0 %1193
        %1196 = vset.pattern.permute.xlu0 1
        %1197 = vperm.xlu0 %1196, %v334
        %v1198 = vpop.permute.xlu0 %1197
        %1200 = vset.pattern.permute.xlu0 1
        %1201 = vperm.xlu0 %1200, %v335
        %v1202 = vpop.permute.xlu0 %1201
        %1204 = vset.pattern.permute.xlu0 1
        %1205 = vperm.xlu0 %1204, %v336
        %v1206 = vpop.permute.xlu0 %1205
        %1208 = vset.pattern.permute.xlu0 1
        %1209 = vperm.xlu0 %1208, %v337
        %v1210 = vpop.permute.xlu0 %1209
        %1212 = vset.pattern.permute.xlu0 1
        %1213 = vperm.xlu0 %1212, %v338
        %v1214 = vpop.permute.xlu0 %1213
        %1216 = vset.pattern.permute.xlu0 1
        %1217 = vperm.xlu0 %1216, %v339
        %v1218 = vpop.permute.xlu0 %1217
        %1220 = vset.pattern.permute.xlu0 1
        %1221 = vperm.xlu0 %1220, %v340
        %v1222 = vpop.permute.xlu0 %1221
        %1224 = vset.pattern.permute.xlu0 1
        %1225 = vperm.xlu0 %1224, %v341
        %v1226 = vpop.permute.xlu0 %1225
        %1228 = vset.pattern.permute.xlu0 1
        %1229 = vperm.xlu0 %1228, %v342
        %v1230 = vpop.permute.xlu0 %1229
        %1232 = vset.pattern.permute.xlu0 1
        %1233 = vperm.xlu0 %1232, %v343
        %v1234 = vpop.permute.xlu0 %1233
        %1236 = vset.pattern.permute.xlu0 1
        %1237 = vperm.xlu0 %1236, %v344
        %v1238 = vpop.permute.xlu0 %1237
        %1240 = vset.pattern.permute.xlu0 1
        %1241 = vperm.xlu0 %1240, %v345
        %v1242 = vpop.permute.xlu0 %1241
        %v1244 = vadd.f32 %v1148, %v1182
        %v1245 = vadd.f32 %v1149, %v1182
        %v1246 = vadd.f32 %v1150, %v1186
        %v1247 = vadd.f32 %v1151, %v1186
        %v1248 = vadd.f32 %v1152, %v1190
        %v1249 = vadd.f32 %v1153, %v1190
        %v1250 = vadd.f32 %v1154, %v1194
        %v1251 = vadd.f32 %v1155, %v1194
        %v1252 = vadd.f32 %v1156, %v1198
        %v1253 = vadd.f32 %v1157, %v1198
        %v1254 = vadd.f32 %v1158, %v1202
        %v1255 = vadd.f32 %v1159, %v1202
        %v1256 = vadd.f32 %v1160, %v1206
        %v1257 = vadd.f32 %v1161, %v1206
        %v1258 = vadd.f32 %v1162, %v1210
        %v1259 = vadd.f32 %v1163, %v1210
        %v1260 = vadd.f32 %v1164, %v1214
        %v1261 = vadd.f32 %v1165, %v1214
        %v1262 = vadd.f32 %v1166, %v1218
        %v1263 = vadd.f32 %v1167, %v1218
        %v1264 = vadd.f32 %v1168, %v1222
        %v1265 = vadd.f32 %v1169, %v1222
        %v1266 = vadd.f32 %v1170, %v1226
        %v1267 = vadd.f32 %v1171, %v1226
        %v1268 = vadd.f32 %v1172, %v1230
        %v1269 = vadd.f32 %v1173, %v1230
        %v1270 = vadd.f32 %v1174, %v1234
        %v1271 = vadd.f32 %v1175, %v1234
        %v1272 = vadd.f32 %v1176, %v1238
        %v1273 = vadd.f32 %v1177, %v1238
        %v1274 = vadd.f32 %v1178, %v1242
        %v1275 = vadd.f32 %v1179, %v1242
        %v1276 = vpack.c.bf16 %v1246, %v1244
        %v1277 = vpack.c.bf16 %v1247, %v1245
        %v1278 = vpack.c.bf16 %v1250, %v1248
        %v1279 = vpack.c.bf16 %v1251, %v1249
        %v1280 = vpack.c.bf16 %v1254, %v1252
        %v1281 = vpack.c.bf16 %v1255, %v1253
        %v1282 = vpack.c.bf16 %v1258, %v1256
        %v1283 = vpack.c.bf16 %v1259, %v1257
        %v1284 = vpack.c.bf16 %v1262, %v1260
        %v1285 = vpack.c.bf16 %v1263, %v1261
        %v1286 = vpack.c.bf16 %v1266, %v1264
        %v1287 = vpack.c.bf16 %v1267, %v1265
        %v1288 = vpack.c.bf16 %v1270, %v1268
        %v1289 = vpack.c.bf16 %v1271, %v1269
        %v1290 = vpack.c.bf16 %v1274, %v1272
        %v1291 = vpack.c.bf16 %v1275, %v1273
        %1292 = vxpose.xlu0.c.b16.start [1/8] %v1276, 128
        %1293 = vxpose.xlu0.c.b16.cont [2/8] %v1278, 128
        %1294 = vxpose.xlu0.c.b16.cont [3/8] %v1280, 128
        %1295 = vxpose.xlu0.c.b16.cont [4/8] %v1282, 128
        %1296 = vxpose.xlu0.c.b16.cont [5/8] %v1284, 128
        %1297 = vxpose.xlu0.c.b16.cont [6/8] %v1286, 128
        %1298 = vxpose.xlu0.c.b16.cont [7/8] %v1288, 128
        %1299 = vxpose.xlu0.c.b16.end [8/8] %v1290, 128
        %v1300 = vpop.trf.xlu0
        %v1301 = vpop.trf.xlu0
        %v1302 = vpop.trf.xlu0
        %v1303 = vpop.trf.xlu0
        %v1304 = vpop.trf.xlu0
        %v1305 = vpop.trf.xlu0
        %v1306 = vpop.trf.xlu0
        %v1307 = vpop.trf.xlu0
        %1308 = vxpose.xlu0.c.b16.start [1/8] %v1277, 128
        %1309 = vxpose.xlu0.c.b16.cont [2/8] %v1279, 128
        %1310 = vxpose.xlu0.c.b16.cont [3/8] %v1281, 128
        %1311 = vxpose.xlu0.c.b16.cont [4/8] %v1283, 128
        %1312 = vxpose.xlu0.c.b16.cont [5/8] %v1285, 128
        %1313 = vxpose.xlu0.c.b16.cont [6/8] %v1287, 128
        %1314 = vxpose.xlu0.c.b16.cont [7/8] %v1289, 128
        %1315 = vxpose.xlu0.c.b16.end [8/8] %v1291, 128
        %v1316 = vpop.trf.xlu0
        %v1317 = vpop.trf.xlu0
        %v1318 = vpop.trf.xlu0
        %v1319 = vpop.trf.xlu0
        %v1320 = vpop.trf.xlu0
        %v1321 = vpop.trf.xlu0
        %v1322 = vpop.trf.xlu0
        %v1323 = vpop.trf.xlu0
        %v1324 = vld [vmem:[%s3] sm:$0xff]
        %v1325 = vld [vmem:[%s3 + $0x8] sm:$0xff]
        %v1326 = vld [vmem:[%s3 + $0x10] sm:$0xff]
        %v1327 = vld [vmem:[%s3 + $0x18] sm:$0xff]
        %v1328 = vld [vmem:[%s3 + $0x20] sm:$0xff]
        %v1329 = vld [vmem:[%s3 + $0x28] sm:$0xff]
        %v1330 = vld [vmem:[%s3 + $0x30] sm:$0xff]
        %v1331 = vld [vmem:[%s3 + $0x38] sm:$0xff]
        %v1332 = vld [vmem:[%s3 + $0x40] sm:$0xff]
        %v1333 = vld [vmem:[%s3 + $0x48] sm:$0xff]
        %v1334 = vld [vmem:[%s3 + $0x50] sm:$0xff]
        %v1335 = vld [vmem:[%s3 + $0x58] sm:$0xff]
        %v1336 = vld [vmem:[%s3 + $0x60] sm:$0xff]
        %v1337 = vld [vmem:[%s3 + $0x68] sm:$0xff]
        %v1338 = vld [vmem:[%s3 + $0x70] sm:$0xff]
        %v1339 = vld [vmem:[%s3 + $0x78] sm:$0xff]
        %v1340 = vld [vmem:[%s4] sm:$0x3]
        %v1342 = vlaneseq
        %v1343 = vshrl.u32 %v1342, 7
        %v1344 = vsub.s32 0, %v1343
        %v1345 = vrot.slane %v1340, %v1344
        %v1346 = vlaneseq
        %v1347 = vshrl.u32 %v1346, 7
        %v1348 = vsub.s32 1, %v1347
        %v1349 = vrot.slane %v1340, %v1348
        %v1368 = vunpack.c.l.b16 %v1324
        %v1369 = vunpack.c.h.b16 %v1324
        %v1370 = vunpack.c.l.b16 %v1325
        %v1371 = vunpack.c.h.b16 %v1325
        %v1372 = vunpack.c.l.b16 %v1326
        %v1373 = vunpack.c.h.b16 %v1326
        %v1374 = vunpack.c.l.b16 %v1327
        %v1375 = vunpack.c.h.b16 %v1327
        %v1376 = vunpack.c.l.b16 %v1328
        %v1377 = vunpack.c.h.b16 %v1328
        %v1378 = vunpack.c.l.b16 %v1329
        %v1379 = vunpack.c.h.b16 %v1329
        %v1380 = vunpack.c.l.b16 %v1330
        %v1381 = vunpack.c.h.b16 %v1330
        %v1382 = vunpack.c.l.b16 %v1331
        %v1383 = vunpack.c.h.b16 %v1331
        %v1384 = vunpack.c.l.b16 %v1332
        %v1385 = vunpack.c.h.b16 %v1332
        %v1386 = vunpack.c.l.b16 %v1333
        %v1387 = vunpack.c.h.b16 %v1333
        %v1388 = vunpack.c.l.b16 %v1334
        %v1389 = vunpack.c.h.b16 %v1334
        %v1390 = vunpack.c.l.b16 %v1335
        %v1391 = vunpack.c.h.b16 %v1335
        %v1392 = vunpack.c.l.b16 %v1336
        %v1393 = vunpack.c.h.b16 %v1336
        %v1394 = vunpack.c.l.b16 %v1337
        %v1395 = vunpack.c.h.b16 %v1337
        %v1396 = vunpack.c.l.b16 %v1338
        %v1397 = vunpack.c.h.b16 %v1338
        %v1398 = vunpack.c.l.b16 %v1339
        %v1399 = vunpack.c.h.b16 %v1339
        %v1400 = vpack.c.b16 %v1370, %v1368
        %v1401 = vpack.c.b16 %v1371, %v1369
        %v1402 = vpack.c.b16 %v1374, %v1372
        %v1403 = vpack.c.b16 %v1375, %v1373
        %v1404 = vpack.c.b16 %v1378, %v1376
        %v1405 = vpack.c.b16 %v1379, %v1377
        %v1406 = vpack.c.b16 %v1382, %v1380
        %v1407 = vpack.c.b16 %v1383, %v1381
        %v1408 = vpack.c.b16 %v1386, %v1384
        %v1409 = vpack.c.b16 %v1387, %v1385
        %v1410 = vpack.c.b16 %v1390, %v1388
        %v1411 = vpack.c.b16 %v1391, %v1389
        %v1412 = vpack.c.b16 %v1394, %v1392
        %v1413 = vpack.c.b16 %v1395, %v1393
        %v1414 = vpack.c.b16 %v1398, %v1396
        %v1415 = vpack.c.b16 %v1399, %v1397
        %1432 = vmatprep.subr.bf16.mxu0 %v1401
        %1433 = vmatpush1.bf16.msra.mxu0 %v1400
        %1434 = vmatprep.subr.bf16.mxu0 %v1403
        %1435 = vmatpush1.bf16.msra.mxu0 %v1402
        %1436 = vmatprep.subr.bf16.mxu0 %v1405
        %1437 = vmatpush1.bf16.msra.mxu0 %v1404
        %1438 = vmatprep.subr.bf16.mxu0 %v1407
        %1439 = vmatpush1.bf16.msra.mxu0 %v1406
        %1440 = vmatprep.subr.bf16.mxu0 %v1409
        %1441 = vmatpush1.bf16.msra.mxu0 %v1408
        %1442 = vmatprep.subr.bf16.mxu0 %v1411
        %1443 = vmatpush1.bf16.msra.mxu0 %v1410
        %1444 = vmatprep.subr.bf16.mxu0 %v1413
        %1445 = vmatpush1.bf16.msra.mxu0 %v1412
        %1446 = vmatprep.subr.bf16.mxu0 %v1415
        %1447 = vmatpush1.bf16.msra.mxu0 %v1414
        %1448 = vmatprep.subr.bf16.mxu0 0
        %1449 = vmatpush1.bf16.msra.mxu0 0
        %1450 = vmatprep.subr.bf16.mxu0 0
        %1451 = vmatpush1.bf16.msra.mxu0 0
        %1452 = vmatprep.subr.bf16.mxu0 0
        %1453 = vmatpush1.bf16.msra.mxu0 0
        %1454 = vmatprep.subr.bf16.mxu0 0
        %1455 = vmatpush1.bf16.msra.mxu0 0
        %1456 = vmatprep.subr.bf16.mxu0 0
        %1457 = vmatpush1.bf16.msra.mxu0 0
        %1458 = vmatprep.subr.bf16.mxu0 0
        %1459 = vmatpush1.bf16.msra.mxu0 0
        %1460 = vmatprep.subr.bf16.mxu0 0
        %1461 = vmatpush1.bf16.msra.mxu0 0
        %1462 = vmatprep.subr.bf16.mxu0 0
        %1463 = vmatpush1.bf16.msra.mxu0 0
        %1464 = vmatprep.mubr.bf16.mxu0 0
        %1465 = vmatmul.mubr.bf16.gmra.mrb[0].mxu0 %v1300
        %v1466 = vpop.f32.mrb[0].mxu0
        %v1467 = vadd.f32 %v1345, %v1466
        %v1468 = vpop.f32.mrb[0].mxu0
        %v1469 = vadd.f32 %v1349, %v1468
        %v1470 = vpop.f32.mrb[0].mxu0
        %v1471 = vadd.f32 %v1345, %v1470
        %v1472 = vpop.f32.mrb[0].mxu0
        %v1473 = vadd.f32 %v1349, %v1472
        %1474 = vmatprep.mubr.bf16.mxu0 0
        %1475 = vmatmul.mubr.bf16.gmra.mrb[0].mxu0 %v1301
        %v1476 = vpop.f32.mrb[0].mxu0
        %v1477 = vadd.f32 %v1345, %v1476
        %v1478 = vpop.f32.mrb[0].mxu0
        %v1479 = vadd.f32 %v1349, %v1478
        %v1480 = vpop.f32.mrb[0].mxu0
        %v1481 = vadd.f32 %v1345, %v1480
        %v1482 = vpop.f32.mrb[0].mxu0
        %v1483 = vadd.f32 %v1349, %v1482
        %1484 = vmatprep.mubr.bf16.mxu0 0
        %1485 = vmatmul.mubr.bf16.gmra.mrb[0].mxu0 %v1302
        %v1486 = vpop.f32.mrb[0].mxu0
        %v1487 = vadd.f32 %v1345, %v1486
        %v1488 = vpop.f32.mrb[0].mxu0
        %v1489 = vadd.f32 %v1349, %v1488
        %v1490 = vpop.f32.mrb[0].mxu0
        %v1491 = vadd.f32 %v1345, %v1490
        %v1492 = vpop.f32.mrb[0].mxu0
        %v1493 = vadd.f32 %v1349, %v1492
        %1494 = vmatprep.mubr.bf16.mxu0 0
        %1495 = vmatmul.mubr.bf16.gmra.mrb[0].mxu0 %v1303
        %v1496 = vpop.f32.mrb[0].mxu0
        %v1497 = vadd.f32 %v1345, %v1496
        %v1498 = vpop.f32.mrb[0].mxu0
        %v1499 = vadd.f32 %v1349, %v1498
        %v1500 = vpop.f32.mrb[0].mxu0
        %v1501 = vadd.f32 %v1345, %v1500
        %v1502 = vpop.f32.mrb[0].mxu0
        %v1503 = vadd.f32 %v1349, %v1502
        %1504 = vmatprep.mubr.bf16.mxu0 0
        %1505 = vmatmul.mubr.bf16.gmra.mrb[0].mxu0 %v1304
        %v1506 = vpop.f32.mrb[0].mxu0
        %v1507 = vadd.f32 %v1345, %v1506
        %v1508 = vpop.f32.mrb[0].mxu0
        %v1509 = vadd.f32 %v1349, %v1508
        %v1510 = vpop.f32.mrb[0].mxu0
        %v1511 = vadd.f32 %v1345, %v1510
        %v1512 = vpop.f32.mrb[0].mxu0
        %v1513 = vadd.f32 %v1349, %v1512
        %1514 = vmatprep.mubr.bf16.mxu0 0
        %1515 = vmatmul.mubr.bf16.gmra.mrb[0].mxu0 %v1305
        %v1516 = vpop.f32.mrb[0].mxu0
        %v1517 = vadd.f32 %v1345, %v1516
        %v1518 = vpop.f32.mrb[0].mxu0
        %v1519 = vadd.f32 %v1349, %v1518
        %v1520 = vpop.f32.mrb[0].mxu0
        %v1521 = vadd.f32 %v1345, %v1520
        %v1522 = vpop.f32.mrb[0].mxu0
        %v1523 = vadd.f32 %v1349, %v1522
        %1524 = vmatprep.mubr.bf16.mxu0 0
        %1525 = vmatmul.mubr.bf16.gmra.mrb[0].mxu0 %v1306
        %v1526 = vpop.f32.mrb[0].mxu0
        %v1527 = vadd.f32 %v1345, %v1526
        %v1528 = vpop.f32.mrb[0].mxu0
        %v1529 = vadd.f32 %v1349, %v1528
        %v1530 = vpop.f32.mrb[0].mxu0
        %v1531 = vadd.f32 %v1345, %v1530
        %v1532 = vpop.f32.mrb[0].mxu0
        %v1533 = vadd.f32 %v1349, %v1532
        %1534 = vmatprep.mubr.bf16.mxu0 0
        %1535 = vmatmul.mubr.bf16.gmra.mrb[0].mxu0 %v1307
        %v1536 = vpop.f32.mrb[0].mxu0
        %v1537 = vadd.f32 %v1345, %v1536
        %v1538 = vpop.f32.mrb[0].mxu0
        %v1539 = vadd.f32 %v1349, %v1538
        %v1540 = vpop.f32.mrb[0].mxu0
        %v1541 = vadd.f32 %v1345, %v1540
        %v1542 = vpop.f32.mrb[0].mxu0
        %v1543 = vadd.f32 %v1349, %v1542
        %1544 = vmatprep.mubr.bf16.mxu0 0
        %1545 = vmatmul.mubr.bf16.gmra.mrb[0].mxu0 %v1316
        %v1546 = vpop.f32.mrb[0].mxu0
        %v1547 = vadd.f32 %v1345, %v1546
        %v1548 = vpop.f32.mrb[0].mxu0
        %v1549 = vadd.f32 %v1349, %v1548
        %v1550 = vpop.f32.mrb[0].mxu0
        %v1551 = vadd.f32 %v1345, %v1550
        %v1552 = vpop.f32.mrb[0].mxu0
        %v1553 = vadd.f32 %v1349, %v1552
        %1554 = vmatprep.mubr.bf16.mxu0 0
        %1555 = vmatmul.mubr.bf16.gmra.mrb[0].mxu0 %v1317
        %v1556 = vpop.f32.mrb[0].mxu0
        %v1557 = vadd.f32 %v1345, %v1556
        %v1558 = vpop.f32.mrb[0].mxu0
        %v1559 = vadd.f32 %v1349, %v1558
        %v1560 = vpop.f32.mrb[0].mxu0
        %v1561 = vadd.f32 %v1345, %v1560
        %v1562 = vpop.f32.mrb[0].mxu0
        %v1563 = vadd.f32 %v1349, %v1562
        %1564 = vmatprep.mubr.bf16.mxu0 0
        %1565 = vmatmul.mubr.bf16.gmra.mrb[0].mxu0 %v1318
        %v1566 = vpop.f32.mrb[0].mxu0
        %v1567 = vadd.f32 %v1345, %v1566
        %v1568 = vpop.f32.mrb[0].mxu0
        %v1569 = vadd.f32 %v1349, %v1568
        %v1570 = vpop.f32.mrb[0].mxu0
        %v1571 = vadd.f32 %v1345, %v1570
        %v1572 = vpop.f32.mrb[0].mxu0
        %v1573 = vadd.f32 %v1349, %v1572
        %1574 = vmatprep.mubr.bf16.mxu0 0
        %1575 = vmatmul.mubr.bf16.gmra.mrb[0].mxu0 %v1319
        %v1576 = vpop.f32.mrb[0].mxu0
        %v1577 = vadd.f32 %v1345, %v1576
        %v1578 = vpop.f32.mrb[0].mxu0
        %v1579 = vadd.f32 %v1349, %v1578
        %v1580 = vpop.f32.mrb[0].mxu0
        %v1581 = vadd.f32 %v1345, %v1580
        %v1582 = vpop.f32.mrb[0].mxu0
        %v1583 = vadd.f32 %v1349, %v1582
        %1584 = vmatprep.mubr.bf16.mxu0 0
        %1585 = vmatmul.mubr.bf16.gmra.mrb[0].mxu0 %v1320
        %v1586 = vpop.f32.mrb[0].mxu0
        %v1587 = vadd.f32 %v1345, %v1586
        %v1588 = vpop.f32.mrb[0].mxu0
        %v1589 = vadd.f32 %v1349, %v1588
        %v1590 = vpop.f32.mrb[0].mxu0
        %v1591 = vadd.f32 %v1345, %v1590
        %v1592 = vpop.f32.mrb[0].mxu0
        %v1593 = vadd.f32 %v1349, %v1592
        %1594 = vmatprep.mubr.bf16.mxu0 0
        %1595 = vmatmul.mubr.bf16.gmra.mrb[0].mxu0 %v1321
        %v1596 = vpop.f32.mrb[0].mxu0
        %v1597 = vadd.f32 %v1345, %v1596
        %v1598 = vpop.f32.mrb[0].mxu0
        %v1599 = vadd.f32 %v1349, %v1598
        %v1600 = vpop.f32.mrb[0].mxu0
        %v1601 = vadd.f32 %v1345, %v1600
        %v1602 = vpop.f32.mrb[0].mxu0
        %v1603 = vadd.f32 %v1349, %v1602
        %1604 = vmatprep.mubr.bf16.mxu0 0
        %1605 = vmatmul.mubr.bf16.gmra.mrb[0].mxu0 %v1322
        %v1606 = vpop.f32.mrb[0].mxu0
        %v1607 = vadd.f32 %v1345, %v1606
        %v1608 = vpop.f32.mrb[0].mxu0
        %v1609 = vadd.f32 %v1349, %v1608
        %v1610 = vpop.f32.mrb[0].mxu0
        %v1611 = vadd.f32 %v1345, %v1610
        %v1612 = vpop.f32.mrb[0].mxu0
        %v1613 = vadd.f32 %v1349, %v1612
        %1614 = vmatprep.mubr.bf16.mxu0 0
        %1615 = vmatmul.mubr.bf16.gmra.mrb[0].mxu0 %v1323
        %v1616 = vpop.f32.mrb[0].mxu0
        %v1617 = vadd.f32 %v1345, %v1616
        %v1618 = vpop.f32.mrb[0].mxu0
        %v1619 = vadd.f32 %v1349, %v1618
        %v1620 = vpop.f32.mrb[0].mxu0
        %v1621 = vadd.f32 %v1345, %v1620
        %v1622 = vpop.f32.mrb[0].mxu0
        %v1623 = vadd.f32 %v1349, %v1622
        %1624 = vdwg.mxu0
        %v1625 = vpack.c.bf16 %v1471, %v1467
        %v1626 = vpack.c.bf16 %v1481, %v1477
        %v1627 = vpack.c.bf16 %v1491, %v1487
        %v1628 = vpack.c.bf16 %v1501, %v1497
        %v1629 = vpack.c.bf16 %v1511, %v1507
        %v1630 = vpack.c.bf16 %v1521, %v1517
        %v1631 = vpack.c.bf16 %v1531, %v1527
        %v1632 = vpack.c.bf16 %v1541, %v1537
        %v1633 = vpack.c.bf16 %v1551, %v1547
        %v1634 = vpack.c.bf16 %v1561, %v1557
        %v1635 = vpack.c.bf16 %v1571, %v1567
        %v1636 = vpack.c.bf16 %v1581, %v1577
        %v1637 = vpack.c.bf16 %v1591, %v1587
        %v1638 = vpack.c.bf16 %v1601, %v1597
        %v1639 = vpack.c.bf16 %v1611, %v1607
        %v1640 = vpack.c.bf16 %v1621, %v1617
        %v1641 = vpack.c.bf16 %v1473, %v1469
        %v1642 = vpack.c.bf16 %v1483, %v1479
        %v1643 = vpack.c.bf16 %v1493, %v1489
        %v1644 = vpack.c.bf16 %v1503, %v1499
        %v1645 = vpack.c.bf16 %v1513, %v1509
        %v1646 = vpack.c.bf16 %v1523, %v1519
        %v1647 = vpack.c.bf16 %v1533, %v1529
        %v1648 = vpack.c.bf16 %v1543, %v1539
        %v1649 = vpack.c.bf16 %v1553, %v1549
        %v1650 = vpack.c.bf16 %v1563, %v1559
        %v1651 = vpack.c.bf16 %v1573, %v1569
        %v1652 = vpack.c.bf16 %v1583, %v1579
        %v1653 = vpack.c.bf16 %v1593, %v1589
        %v1654 = vpack.c.bf16 %v1603, %v1599
        %v1655 = vpack.c.bf16 %v1613, %v1609
        %v1656 = vpack.c.bf16 %v1623, %v1619
        %v1657 = vld [vmem:[%s5] sm:$0xf]
        %v1658 = vld [vmem:[%s5 + $0x4] sm:$0xf]
        %v1659 = vld [vmem:[%s5 + $0x8] sm:$0xf]
        %v1660 = vld [vmem:[%s5 + $0xc] sm:$0xf]
        %v1661 = vld [vmem:[%s5 + $0x10] sm:$0xf]
        %v1662 = vld [vmem:[%s5 + $0x14] sm:$0xf]
        %v1663 = vld [vmem:[%s5 + $0x18] sm:$0xf]
        %v1664 = vld [vmem:[%s5 + $0x1c] sm:$0xf]
        %v1665 = vld [vmem:[%s5 + $0x20] sm:$0xf]
        %v1666 = vld [vmem:[%s5 + $0x24] sm:$0xf]
        %v1667 = vld [vmem:[%s5 + $0x28] sm:$0xf]
        %v1668 = vld [vmem:[%s5 + $0x2c] sm:$0xf]
        %v1669 = vld [vmem:[%s5 + $0x30] sm:$0xf]
        %v1670 = vld [vmem:[%s5 + $0x34] sm:$0xf]
        %v1671 = vld [vmem:[%s5 + $0x38] sm:$0xf]
        %v1672 = vld [vmem:[%s5 + $0x3c] sm:$0xf]
        %1673 = vset.pattern.permute.xlu0 2
        %1674 = vperm.xlu0 %1673, %v330
        %v1675 = vpop.permute.xlu0 %1674
        %1677 = vset.pattern.permute.xlu0 2
        %1678 = vperm.xlu0 %1677, %v331
        %v1679 = vpop.permute.xlu0 %1678
        %1681 = vset.pattern.permute.xlu0 2
        %1682 = vperm.xlu0 %1681, %v332
        %v1683 = vpop.permute.xlu0 %1682
        %1685 = vset.pattern.permute.xlu0 2
        %1686 = vperm.xlu0 %1685, %v333
        %v1687 = vpop.permute.xlu0 %1686
        %1689 = vset.pattern.permute.xlu0 2
        %1690 = vperm.xlu0 %1689, %v334
        %v1691 = vpop.permute.xlu0 %1690
        %1693 = vset.pattern.permute.xlu0 2
        %1694 = vperm.xlu0 %1693, %v335
        %v1695 = vpop.permute.xlu0 %1694
        %1697 = vset.pattern.permute.xlu0 2
        %1698 = vperm.xlu0 %1697, %v336
        %v1699 = vpop.permute.xlu0 %1698
        %1701 = vset.pattern.permute.xlu0 2
        %1702 = vperm.xlu0 %1701, %v337
        %v1703 = vpop.permute.xlu0 %1702
        %1705 = vset.pattern.permute.xlu0 2
        %1706 = vperm.xlu0 %1705, %v338
        %v1707 = vpop.permute.xlu0 %1706
        %1709 = vset.pattern.permute.xlu0 2
        %1710 = vperm.xlu0 %1709, %v339
        %v1711 = vpop.permute.xlu0 %1710
        %1713 = vset.pattern.permute.xlu0 2
        %1714 = vperm.xlu0 %1713, %v340
        %v1715 = vpop.permute.xlu0 %1714
        %1717 = vset.pattern.permute.xlu0 2
        %1718 = vperm.xlu0 %1717, %v341
        %v1719 = vpop.permute.xlu0 %1718
        %1721 = vset.pattern.permute.xlu0 2
        %1722 = vperm.xlu0 %1721, %v342
        %v1723 = vpop.permute.xlu0 %1722
        %1725 = vset.pattern.permute.xlu0 2
        %1726 = vperm.xlu0 %1725, %v343
        %v1727 = vpop.permute.xlu0 %1726
        %1729 = vset.pattern.permute.xlu0 2
        %1730 = vperm.xlu0 %1729, %v344
        %v1731 = vpop.permute.xlu0 %1730
        %1733 = vset.pattern.permute.xlu0 2
        %1734 = vperm.xlu0 %1733, %v345
        %v1735 = vpop.permute.xlu0 %1734
        %v1753 = vunpack.c.l.b16 %v1657
        %v1754 = vunpack.c.l.b16 %v1658
        %v1755 = vunpack.c.l.b16 %v1659
        %v1756 = vunpack.c.l.b16 %v1660
        %v1757 = vunpack.c.l.b16 %v1661
        %v1758 = vunpack.c.l.b16 %v1662
        %v1759 = vunpack.c.l.b16 %v1663
        %v1760 = vunpack.c.l.b16 %v1664
        %v1761 = vunpack.c.l.b16 %v1665
        %v1762 = vunpack.c.l.b16 %v1666
        %v1763 = vunpack.c.l.b16 %v1667
        %v1764 = vunpack.c.l.b16 %v1668
        %v1765 = vunpack.c.l.b16 %v1669
        %v1766 = vunpack.c.l.b16 %v1670
        %v1767 = vunpack.c.l.b16 %v1671
        %v1768 = vunpack.c.l.b16 %v1672
        %v1769 = vpack.c.b16 %v1754, %v1753
        %v1770 = vpack.c.b16 %v1756, %v1755
        %v1771 = vpack.c.b16 %v1758, %v1757
        %v1772 = vpack.c.b16 %v1760, %v1759
        %v1773 = vpack.c.b16 %v1762, %v1761
        %v1774 = vpack.c.b16 %v1764, %v1763
        %v1775 = vpack.c.b16 %v1766, %v1765
        %v1776 = vpack.c.b16 %v1768, %v1767
        %1785 = vmatprep.subr.bf16.mxu0 %v1277
        %1786 = vmatpush1.bf16.msra.mxu0 %v1276
        %1787 = vmatprep.subr.bf16.mxu0 %v1279
        %1788 = vmatpush1.bf16.msra.mxu0 %v1278
        %1789 = vmatprep.subr.bf16.mxu0 %v1281
        %1790 = vmatpush1.bf16.msra.mxu0 %v1280
        %1791 = vmatprep.subr.bf16.mxu0 %v1283
        %1792 = vmatpush1.bf16.msra.mxu0 %v1282
        %1793 = vmatprep.subr.bf16.mxu0 %v1285
        %1794 = vmatpush1.bf16.msra.mxu0 %v1284
        %1795 = vmatprep.subr.bf16.mxu0 %v1287
        %1796 = vmatpush1.bf16.msra.mxu0 %v1286
        %1797 = vmatprep.subr.bf16.mxu0 %v1289
        %1798 = vmatpush1.bf16.msra.mxu0 %v1288
        %1799 = vmatprep.subr.bf16.mxu0 %v1291
        %1800 = vmatpush1.bf16.msra.mxu0 %v1290
        %1801 = vmatprep.subr.bf16.mxu0 0
        %1802 = vmatpush1.bf16.msra.mxu0 0
        %1803 = vmatprep.subr.bf16.mxu0 0
        %1804 = vmatpush1.bf16.msra.mxu0 0
        %1805 = vmatprep.subr.bf16.mxu0 0
        %1806 = vmatpush1.bf16.msra.mxu0 0
        %1807 = vmatprep.subr.bf16.mxu0 0
        %1808 = vmatpush1.bf16.msra.mxu0 0
        %1809 = vmatprep.subr.bf16.mxu0 0
        %1810 = vmatpush1.bf16.msra.mxu0 0
        %1811 = vmatprep.subr.bf16.mxu0 0
        %1812 = vmatpush1.bf16.msra.mxu0 0
        %1813 = vmatprep.subr.bf16.mxu0 0
        %1814 = vmatpush1.bf16.msra.mxu0 0
        %1815 = vmatprep.subr.bf16.mxu0 0
        %1816 = vmatpush1.bf16.msra.mxu0 0
        %1817 = vmatprep.mubr.bf16.mxu0 0
        %1818 = vmatmul.mubr.bf16.gmra.mrb[0].mxu0 %v1769
        %v1819 = vpop.f32.mrb[0].mxu0
        %v1820 = vadd.f32 %v1675, %v1819
        %v1821 = vpop.f32.mrb[0].mxu0
        %v1822 = vadd.f32 %v1675, %v1821
        %v1823 = vpop.f32.mrb[0].mxu0
        %v1824 = vadd.f32 %v1679, %v1823
        %v1825 = vpop.f32.mrb[0].mxu0
        %v1826 = vadd.f32 %v1679, %v1825
        %1827 = vmatprep.mubr.bf16.mxu0 0
        %1828 = vmatmul.mubr.bf16.gmra.mrb[0].mxu0 %v1770
        %v1829 = vpop.f32.mrb[0].mxu0
        %v1830 = vadd.f32 %v1683, %v1829
        %v1831 = vpop.f32.mrb[0].mxu0
        %v1832 = vadd.f32 %v1683, %v1831
        %v1833 = vpop.f32.mrb[0].mxu0
        %v1834 = vadd.f32 %v1687, %v1833
        %v1835 = vpop.f32.mrb[0].mxu0
        %v1836 = vadd.f32 %v1687, %v1835
        %1837 = vmatprep.mubr.bf16.mxu0 0
        %1838 = vmatmul.mubr.bf16.gmra.mrb[0].mxu0 %v1771
        %v1839 = vpop.f32.mrb[0].mxu0
        %v1840 = vadd.f32 %v1691, %v1839
        %v1841 = vpop.f32.mrb[0].mxu0
        %v1842 = vadd.f32 %v1691, %v1841
        %v1843 = vpop.f32.mrb[0].mxu0
        %v1844 = vadd.f32 %v1695, %v1843
        %v1845 = vpop.f32.mrb[0].mxu0
        %v1846 = vadd.f32 %v1695, %v1845
        %1847 = vmatprep.mubr.bf16.mxu0 0
        %1848 = vmatmul.mubr.bf16.gmra.mrb[0].mxu0 %v1772
        %v1849 = vpop.f32.mrb[0].mxu0
        %v1850 = vadd.f32 %v1699, %v1849
        %v1851 = vpop.f32.mrb[0].mxu0
        %v1852 = vadd.f32 %v1699, %v1851
        %v1853 = vpop.f32.mrb[0].mxu0
        %v1854 = vadd.f32 %v1703, %v1853
        %v1855 = vpop.f32.mrb[0].mxu0
        %v1856 = vadd.f32 %v1703, %v1855
        %1857 = vmatprep.mubr.bf16.mxu0 0
        %1858 = vmatmul.mubr.bf16.gmra.mrb[0].mxu0 %v1773
        %v1859 = vpop.f32.mrb[0].mxu0
        %v1860 = vadd.f32 %v1707, %v1859
        %v1861 = vpop.f32.mrb[0].mxu0
        %v1862 = vadd.f32 %v1707, %v1861
        %v1863 = vpop.f32.mrb[0].mxu0
        %v1864 = vadd.f32 %v1711, %v1863
        %v1865 = vpop.f32.mrb[0].mxu0
        %v1866 = vadd.f32 %v1711, %v1865
        %1867 = vmatprep.mubr.bf16.mxu0 0
        %1868 = vmatmul.mubr.bf16.gmra.mrb[0].mxu0 %v1774
        %v1869 = vpop.f32.mrb[0].mxu0
        %v1870 = vadd.f32 %v1715, %v1869
        %v1871 = vpop.f32.mrb[0].mxu0
        %v1872 = vadd.f32 %v1715, %v1871
        %v1873 = vpop.f32.mrb[0].mxu0
        %v1874 = vadd.f32 %v1719, %v1873
        %v1875 = vpop.f32.mrb[0].mxu0
        %v1876 = vadd.f32 %v1719, %v1875
        %1877 = vmatprep.mubr.bf16.mxu0 0
        %1878 = vmatmul.mubr.bf16.gmra.mrb[0].mxu0 %v1775
        %v1879 = vpop.f32.mrb[0].mxu0
        %v1880 = vadd.f32 %v1723, %v1879
        %v1881 = vpop.f32.mrb[0].mxu0
        %v1882 = vadd.f32 %v1723, %v1881
        %v1883 = vpop.f32.mrb[0].mxu0
        %v1884 = vadd.f32 %v1727, %v1883
        %v1885 = vpop.f32.mrb[0].mxu0
        %v1886 = vadd.f32 %v1727, %v1885
        %1887 = vmatprep.mubr.bf16.mxu0 0
        %1888 = vmatmul.mubr.bf16.gmra.mrb[0].mxu0 %v1776
        %v1889 = vpop.f32.mrb[0].mxu0
        %v1890 = vadd.f32 %v1731, %v1889
        %v1891 = vpop.f32.mrb[0].mxu0
        %v1892 = vadd.f32 %v1731, %v1891
        %v1893 = vpop.f32.mrb[0].mxu0
        %v1894 = vadd.f32 %v1735, %v1893
        %v1895 = vpop.f32.mrb[0].mxu0
        %v1896 = vadd.f32 %v1735, %v1895
        %1897 = vdwg.mxu0
        %v1898 = vpack.c.bf16 %v1824, %v1820
        %v1899 = vpack.c.bf16 %v1826, %v1822
        %v1900 = vpack.c.bf16 %v1834, %v1830
        %v1901 = vpack.c.bf16 %v1836, %v1832
        %v1902 = vpack.c.bf16 %v1844, %v1840
        %v1903 = vpack.c.bf16 %v1846, %v1842
        %v1904 = vpack.c.bf16 %v1854, %v1850
        %v1905 = vpack.c.bf16 %v1856, %v1852
        %v1906 = vpack.c.bf16 %v1864, %v1860
        %v1907 = vpack.c.bf16 %v1866, %v1862
        %v1908 = vpack.c.bf16 %v1874, %v1870
        %v1909 = vpack.c.bf16 %v1876, %v1872
        %v1910 = vpack.c.bf16 %v1884, %v1880
        %v1911 = vpack.c.bf16 %v1886, %v1882
        %v1912 = vpack.c.bf16 %v1894, %v1890
        %v1913 = vpack.c.bf16 %v1896, %v1892
        %1914 = vmatprep.subr.bf16.mxu0 %v1899
        %1915 = vmatpush1.bf16.msra.mxu0 %v1898
        %1916 = vmatprep.subr.bf16.mxu0 %v1901
        %1917 = vmatpush1.bf16.msra.mxu0 %v1900
        %1918 = vmatprep.subr.bf16.mxu0 %v1903
        %1919 = vmatpush1.bf16.msra.mxu0 %v1902
        %1920 = vmatprep.subr.bf16.mxu0 %v1905
        %1921 = vmatpush1.bf16.msra.mxu0 %v1904
        %1922 = vmatprep.subr.bf16.mxu0 %v1907
        %1923 = vmatpush1.bf16.msra.mxu0 %v1906
        %1924 = vmatprep.subr.bf16.mxu0 %v1909
        %1925 = vmatpush1.bf16.msra.mxu0 %v1908
        %1926 = vmatprep.subr.bf16.mxu0 %v1911
        %1927 = vmatpush1.bf16.msra.mxu0 %v1910
        %1928 = vmatprep.subr.bf16.mxu0 %v1913
        %1929 = vmatpush1.bf16.msra.mxu0 %v1912
        %1930 = vmatprep.subr.bf16.mxu0 0
        %1931 = vmatpush1.bf16.msra.mxu0 0
        %1932 = vmatprep.subr.bf16.mxu0 0
        %1933 = vmatpush1.bf16.msra.mxu0 0
        %1934 = vmatprep.subr.bf16.mxu0 0
        %1935 = vmatpush1.bf16.msra.mxu0 0
        %1936 = vmatprep.subr.bf16.mxu0 0
        %1937 = vmatpush1.bf16.msra.mxu0 0
        %1938 = vmatprep.subr.bf16.mxu0 0
        %1939 = vmatpush1.bf16.msra.mxu0 0
        %1940 = vmatprep.subr.bf16.mxu0 0
        %1941 = vmatpush1.bf16.msra.mxu0 0
        %1942 = vmatprep.subr.bf16.mxu0 0
        %1943 = vmatpush1.bf16.msra.mxu0 0
        %1944 = vmatprep.subr.bf16.mxu0 0
        %1945 = vmatpush1.bf16.msra.mxu0 0
        %1946 = vmatprep.mubr.bf16.mxu0 0
        %1947 = vmatmul.mubr.bf16.gmra.mrb[0].mxu0 %v1625
        %v1948 = vpop.f32.mrb[0].mxu0
        %v1949 = vadd.f32 0.0, %v1948
        %v1950 = vpop.f32.mrb[0].mxu0
        %v1951 = vadd.f32 0.0, %v1950
        %v1952 = vpop.f32.mrb[0].mxu0
        %v1953 = vadd.f32 0.0, %v1952
        %v1954 = vpop.f32.mrb[0].mxu0
        %v1955 = vadd.f32 0.0, %v1954
        %1956 = vmatprep.mubr.bf16.mxu0 0
        %1957 = vmatmul.mubr.bf16.gmra.mrb[0].mxu0 %v1626
        %v1958 = vpop.f32.mrb[0].mxu0
        %v1959 = vadd.f32 0.0, %v1958
        %v1960 = vpop.f32.mrb[0].mxu0
        %v1961 = vadd.f32 0.0, %v1960
        %v1962 = vpop.f32.mrb[0].mxu0
        %v1963 = vadd.f32 0.0, %v1962
        %v1964 = vpop.f32.mrb[0].mxu0
        %v1965 = vadd.f32 0.0, %v1964
        %1966 = vmatprep.mubr.bf16.mxu0 0
        %1967 = vmatmul.mubr.bf16.gmra.mrb[0].mxu0 %v1627
        %v1968 = vpop.f32.mrb[0].mxu0
        %v1969 = vadd.f32 0.0, %v1968
        %v1970 = vpop.f32.mrb[0].mxu0
        %v1971 = vadd.f32 0.0, %v1970
        %v1972 = vpop.f32.mrb[0].mxu0
        %v1973 = vadd.f32 0.0, %v1972
        %v1974 = vpop.f32.mrb[0].mxu0
        %v1975 = vadd.f32 0.0, %v1974
        %1976 = vmatprep.mubr.bf16.mxu0 0
        %1977 = vmatmul.mubr.bf16.gmra.mrb[0].mxu0 %v1628
        %v1978 = vpop.f32.mrb[0].mxu0
        %v1979 = vadd.f32 0.0, %v1978
        %v1980 = vpop.f32.mrb[0].mxu0
        %v1981 = vadd.f32 0.0, %v1980
        %v1982 = vpop.f32.mrb[0].mxu0
        %v1983 = vadd.f32 0.0, %v1982
        %v1984 = vpop.f32.mrb[0].mxu0
        %v1985 = vadd.f32 0.0, %v1984
        %1986 = vmatprep.mubr.bf16.mxu0 0
        %1987 = vmatmul.mubr.bf16.gmra.mrb[0].mxu0 %v1629
        %v1988 = vpop.f32.mrb[0].mxu0
        %v1989 = vadd.f32 0.0, %v1988
        %v1990 = vpop.f32.mrb[0].mxu0
        %v1991 = vadd.f32 0.0, %v1990
        %v1992 = vpop.f32.mrb[0].mxu0
        %v1993 = vadd.f32 0.0, %v1992
        %v1994 = vpop.f32.mrb[0].mxu0
        %v1995 = vadd.f32 0.0, %v1994
        %1996 = vmatprep.mubr.bf16.mxu0 0
        %1997 = vmatmul.mubr.bf16.gmra.mrb[0].mxu0 %v1630
        %v1998 = vpop.f32.mrb[0].mxu0
        %v1999 = vadd.f32 0.0, %v1998
        %v2000 = vpop.f32.mrb[0].mxu0
        %v2001 = vadd.f32 0.0, %v2000
        %v2002 = vpop.f32.mrb[0].mxu0
        %v2003 = vadd.f32 0.0, %v2002
        %v2004 = vpop.f32.mrb[0].mxu0
        %v2005 = vadd.f32 0.0, %v2004
        %2006 = vmatprep.mubr.bf16.mxu0 0
        %2007 = vmatmul.mubr.bf16.gmra.mrb[0].mxu0 %v1631
        %v2008 = vpop.f32.mrb[0].mxu0
        %v2009 = vadd.f32 0.0, %v2008
        %v2010 = vpop.f32.mrb[0].mxu0
        %v2011 = vadd.f32 0.0, %v2010
        %v2012 = vpop.f32.mrb[0].mxu0
        %v2013 = vadd.f32 0.0, %v2012
        %v2014 = vpop.f32.mrb[0].mxu0
        %v2015 = vadd.f32 0.0, %v2014
        %2016 = vmatprep.mubr.bf16.mxu0 0
        %2017 = vmatmul.mubr.bf16.gmra.mrb[0].mxu0 %v1632
        %v2018 = vpop.f32.mrb[0].mxu0
        %v2019 = vadd.f32 0.0, %v2018
        %v2020 = vpop.f32.mrb[0].mxu0
        %v2021 = vadd.f32 0.0, %v2020
        %v2022 = vpop.f32.mrb[0].mxu0
        %v2023 = vadd.f32 0.0, %v2022
        %v2024 = vpop.f32.mrb[0].mxu0
        %v2025 = vadd.f32 0.0, %v2024
        %2026 = vmatprep.mubr.bf16.mxu0 0
        %2027 = vmatmul.mubr.bf16.gmra.mrb[0].mxu0 %v1633
        %v2028 = vpop.f32.mrb[0].mxu0
        %v2029 = vadd.f32 0.0, %v2028
        %v2030 = vpop.f32.mrb[0].mxu0
        %v2031 = vadd.f32 0.0, %v2030
        %v2032 = vpop.f32.mrb[0].mxu0
        %v2033 = vadd.f32 0.0, %v2032
        %v2034 = vpop.f32.mrb[0].mxu0
        %v2035 = vadd.f32 0.0, %v2034
        %2036 = vmatprep.mubr.bf16.mxu0 0
        %2037 = vmatmul.mubr.bf16.gmra.mrb[0].mxu0 %v1634
        %v2038 = vpop.f32.mrb[0].mxu0
        %v2039 = vadd.f32 0.0, %v2038
        %v2040 = vpop.f32.mrb[0].mxu0
        %v2041 = vadd.f32 0.0, %v2040
        %v2042 = vpop.f32.mrb[0].mxu0
        %v2043 = vadd.f32 0.0, %v2042
        %v2044 = vpop.f32.mrb[0].mxu0
        %v2045 = vadd.f32 0.0, %v2044
        %2046 = vmatprep.mubr.bf16.mxu0 0
        %2047 = vmatmul.mubr.bf16.gmra.mrb[0].mxu0 %v1635
        %v2048 = vpop.f32.mrb[0].mxu0
        %v2049 = vadd.f32 0.0, %v2048
        %v2050 = vpop.f32.mrb[0].mxu0
        %v2051 = vadd.f32 0.0, %v2050
        %v2052 = vpop.f32.mrb[0].mxu0
        %v2053 = vadd.f32 0.0, %v2052
        %v2054 = vpop.f32.mrb[0].mxu0
        %v2055 = vadd.f32 0.0, %v2054
        %2056 = vmatprep.mubr.bf16.mxu0 0
        %2057 = vmatmul.mubr.bf16.gmra.mrb[0].mxu0 %v1636
        %v2058 = vpop.f32.mrb[0].mxu0
        %v2059 = vadd.f32 0.0, %v2058
        %v2060 = vpop.f32.mrb[0].mxu0
        %v2061 = vadd.f32 0.0, %v2060
        %v2062 = vpop.f32.mrb[0].mxu0
        %v2063 = vadd.f32 0.0, %v2062
        %v2064 = vpop.f32.mrb[0].mxu0
        %v2065 = vadd.f32 0.0, %v2064
        %2066 = vmatprep.mubr.bf16.mxu0 0
        %2067 = vmatmul.mubr.bf16.gmra.mrb[0].mxu0 %v1637
        %v2068 = vpop.f32.mrb[0].mxu0
        %v2069 = vadd.f32 0.0, %v2068
        %v2070 = vpop.f32.mrb[0].mxu0
        %v2071 = vadd.f32 0.0, %v2070
        %v2072 = vpop.f32.mrb[0].mxu0
        %v2073 = vadd.f32 0.0, %v2072
        %v2074 = vpop.f32.mrb[0].mxu0
        %v2075 = vadd.f32 0.0, %v2074
        %2076 = vmatprep.mubr.bf16.mxu0 0
        %2077 = vmatmul.mubr.bf16.gmra.mrb[0].mxu0 %v1638
        %v2078 = vpop.f32.mrb[0].mxu0
        %v2079 = vadd.f32 0.0, %v2078
        %v2080 = vpop.f32.mrb[0].mxu0
        %v2081 = vadd.f32 0.0, %v2080
        %v2082 = vpop.f32.mrb[0].mxu0
        %v2083 = vadd.f32 0.0, %v2082
        %v2084 = vpop.f32.mrb[0].mxu0
        %v2085 = vadd.f32 0.0, %v2084
        %2086 = vmatprep.mubr.bf16.mxu0 0
        %2087 = vmatmul.mubr.bf16.gmra.mrb[0].mxu0 %v1639
        %v2088 = vpop.f32.mrb[0].mxu0
        %v2089 = vadd.f32 0.0, %v2088
        %v2090 = vpop.f32.mrb[0].mxu0
        %v2091 = vadd.f32 0.0, %v2090
        %v2092 = vpop.f32.mrb[0].mxu0
        %v2093 = vadd.f32 0.0, %v2092
        %v2094 = vpop.f32.mrb[0].mxu0
        %v2095 = vadd.f32 0.0, %v2094
        %2096 = vmatprep.mubr.bf16.mxu0 0
        %2097 = vmatmul.mubr.bf16.gmra.mrb[0].mxu0 %v1640
        %v2098 = vpop.f32.mrb[0].mxu0
        %v2099 = vadd.f32 0.0, %v2098
        %v2100 = vpop.f32.mrb[0].mxu0
        %v2101 = vadd.f32 0.0, %v2100
        %v2102 = vpop.f32.mrb[0].mxu0
        %v2103 = vadd.f32 0.0, %v2102
        %v2104 = vpop.f32.mrb[0].mxu0
        %v2105 = vadd.f32 0.0, %v2104
        %2106 = vdwg.mxu0
        %v2107 = vmax.f32 %v1949, %v1951
        %2108 = vmax.xlane.f32.xlu0 %v2107
        %v2109 = vpop.xlane.xlu0 %2108
        %v2110 = vmax.f32 %v1953, %v1955
        %2111 = vmax.xlane.f32.xlu0 %v2110
        %v2112 = vpop.xlane.xlu0 %2111
        %v2113 = vmax.f32 %v1959, %v1961
        %2114 = vmax.xlane.f32.xlu0 %v2113
        %v2115 = vpop.xlane.xlu0 %2114
        %v2116 = vmax.f32 %v1963, %v1965
        %2117 = vmax.xlane.f32.xlu0 %v2116
        %v2118 = vpop.xlane.xlu0 %2117
        %v2119 = vmax.f32 %v1969, %v1971
        %2120 = vmax.xlane.f32.xlu0 %v2119
        %v2121 = vpop.xlane.xlu0 %2120
        %v2122 = vmax.f32 %v1973, %v1975
        %2123 = vmax.xlane.f32.xlu0 %v2122
        %v2124 = vpop.xlane.xlu0 %2123
        %v2125 = vmax.f32 %v1979, %v1981
        %2126 = vmax.xlane.f32.xlu0 %v2125
        %v2127 = vpop.xlane.xlu0 %2126
        %v2128 = vmax.f32 %v1983, %v1985
        %2129 = vmax.xlane.f32.xlu0 %v2128
        %v2130 = vpop.xlane.xlu0 %2129
        %v2131 = vmax.f32 %v1989, %v1991
        %2132 = vmax.xlane.f32.xlu0 %v2131
        %v2133 = vpop.xlane.xlu0 %2132
        %v2134 = vmax.f32 %v1993, %v1995
        %2135 = vmax.xlane.f32.xlu0 %v2134
        %v2136 = vpop.xlane.xlu0 %2135
        %v2137 = vmax.f32 %v1999, %v2001
        %2138 = vmax.xlane.f32.xlu0 %v2137
        %v2139 = vpop.xlane.xlu0 %2138
        %v2140 = vmax.f32 %v2003, %v2005
        %2141 = vmax.xlane.f32.xlu0 %v2140
        %v2142 = vpop.xlane.xlu0 %2141
        %v2143 = vmax.f32 %v2009, %v2011
        %2144 = vmax.xlane.f32.xlu0 %v2143
        %v2145 = vpop.xlane.xlu0 %2144
        %v2146 = vmax.f32 %v2013, %v2015
        %2147 = vmax.xlane.f32.xlu0 %v2146
        %v2148 = vpop.xlane.xlu0 %2147
        %v2149 = vmax.f32 %v2019, %v2021
        %2150 = vmax.xlane.f32.xlu0 %v2149
        %v2151 = vpop.xlane.xlu0 %2150
        %v2152 = vmax.f32 %v2023, %v2025
        %2153 = vmax.xlane.f32.xlu0 %v2152
        %v2154 = vpop.xlane.xlu0 %2153
        %v2155 = vmax.f32 %v2029, %v2031
        %2156 = vmax.xlane.f32.xlu0 %v2155
        %v2157 = vpop.xlane.xlu0 %2156
        %v2158 = vmax.f32 %v2033, %v2035
        %2159 = vmax.xlane.f32.xlu0 %v2158
        %v2160 = vpop.xlane.xlu0 %2159
        %v2161 = vmax.f32 %v2039, %v2041
        %2162 = vmax.xlane.f32.xlu0 %v2161
        %v2163 = vpop.xlane.xlu0 %2162
        %v2164 = vmax.f32 %v2043, %v2045
        %2165 = vmax.xlane.f32.xlu0 %v2164
        %v2166 = vpop.xlane.xlu0 %2165
        %v2167 = vmax.f32 %v2049, %v2051
        %2168 = vmax.xlane.f32.xlu0 %v2167
        %v2169 = vpop.xlane.xlu0 %2168
        %v2170 = vmax.f32 %v2053, %v2055
        %2171 = vmax.xlane.f32.xlu0 %v2170
        %v2172 = vpop.xlane.xlu0 %2171
        %v2173 = vmax.f32 %v2059, %v2061
        %2174 = vmax.xlane.f32.xlu0 %v2173
        %v2175 = vpop.xlane.xlu0 %2174
        %v2176 = vmax.f32 %v2063, %v2065
        %2177 = vmax.xlane.f32.xlu0 %v2176
        %v2178 = vpop.xlane.xlu0 %2177
        %v2179 = vmax.f32 %v2069, %v2071
        %2180 = vmax.xlane.f32.xlu0 %v2179
        %v2181 = vpop.xlane.xlu0 %2180
        %v2182 = vmax.f32 %v2073, %v2075
        %2183 = vmax.xlane.f32.xlu0 %v2182
        %v2184 = vpop.xlane.xlu0 %2183
        %v2185 = vmax.f32 %v2079, %v2081
        %2186 = vmax.xlane.f32.xlu0 %v2185
        %v2187 = vpop.xlane.xlu0 %2186
        %v2188 = vmax.f32 %v2083, %v2085
        %2189 = vmax.xlane.f32.xlu0 %v2188
        %v2190 = vpop.xlane.xlu0 %2189
        %v2191 = vmax.f32 %v2089, %v2091
        %2192 = vmax.xlane.f32.xlu0 %v2191
        %v2193 = vpop.xlane.xlu0 %2192
        %v2194 = vmax.f32 %v2093, %v2095
        %2195 = vmax.xlane.f32.xlu0 %v2194
        %v2196 = vpop.xlane.xlu0 %2195
        %v2197 = vmax.f32 %v2099, %v2101
        %2198 = vmax.xlane.f32.xlu0 %v2197
        %v2199 = vpop.xlane.xlu0 %2198
        %v2200 = vmax.f32 %v2103, %v2105
        %2201 = vmax.xlane.f32.xlu0 %v2200
        %v2202 = vpop.xlane.xlu0 %2201
        %v2203 = vsub.f32 %v1949, %v2109
        %v2204 = vsub.f32 %v1951, %v2109
        %v2205 = vsub.f32 %v1953, %v2112
        %v2206 = vsub.f32 %v1955, %v2112
        %v2207 = vsub.f32 %v1959, %v2115
        %v2208 = vsub.f32 %v1961, %v2115
        %v2209 = vsub.f32 %v1963, %v2118
        %v2210 = vsub.f32 %v1965, %v2118
        %v2211 = vsub.f32 %v1969, %v2121
        %v2212 = vsub.f32 %v1971, %v2121
        %v2213 = vsub.f32 %v1973, %v2124
        %v2214 = vsub.f32 %v1975, %v2124
        %v2215 = vsub.f32 %v1979, %v2127
        %v2216 = vsub.f32 %v1981, %v2127
        %v2217 = vsub.f32 %v1983, %v2130
        %v2218 = vsub.f32 %v1985, %v2130
        %v2219 = vsub.f32 %v1989, %v2133
        %v2220 = vsub.f32 %v1991, %v2133
        %v2221 = vsub.f32 %v1993, %v2136
        %v2222 = vsub.f32 %v1995, %v2136
        %v2223 = vsub.f32 %v1999, %v2139
        %v2224 = vsub.f32 %v2001, %v2139
        %v2225 = vsub.f32 %v2003, %v2142
        %v2226 = vsub.f32 %v2005, %v2142
        %v2227 = vsub.f32 %v2009, %v2145
        %v2228 = vsub.f32 %v2011, %v2145
        %v2229 = vsub.f32 %v2013, %v2148
        %v2230 = vsub.f32 %v2015, %v2148
        %v2231 = vsub.f32 %v2019, %v2151
        %v2232 = vsub.f32 %v2021, %v2151
        %v2233 = vsub.f32 %v2023, %v2154
        %v2234 = vsub.f32 %v2025, %v2154
        %v2235 = vsub.f32 %v2029, %v2157
        %v2236 = vsub.f32 %v2031, %v2157
        %v2237 = vsub.f32 %v2033, %v2160
        %v2238 = vsub.f32 %v2035, %v2160
        %v2239 = vsub.f32 %v2039, %v2163
        %v2240 = vsub.f32 %v2041, %v2163
        %v2241 = vsub.f32 %v2043, %v2166
        %v2242 = vsub.f32 %v2045, %v2166
        %v2243 = vsub.f32 %v2049, %v2169
        %v2244 = vsub.f32 %v2051, %v2169
        %v2245 = vsub.f32 %v2053, %v2172
        %v2246 = vsub.f32 %v2055, %v2172
        %v2247 = vsub.f32 %v2059, %v2175
        %v2248 = vsub.f32 %v2061, %v2175
        %v2249 = vsub.f32 %v2063, %v2178
        %v2250 = vsub.f32 %v2065, %v2178
        %v2251 = vsub.f32 %v2069, %v2181
        %v2252 = vsub.f32 %v2071, %v2181
        %v2253 = vsub.f32 %v2073, %v2184
        %v2254 = vsub.f32 %v2075, %v2184
        %v2255 = vsub.f32 %v2079, %v2187
        %v2256 = vsub.f32 %v2081, %v2187
        %v2257 = vsub.f32 %v2083, %v2190
        %v2258 = vsub.f32 %v2085, %v2190
        %v2259 = vsub.f32 %v2089, %v2193
        %v2260 = vsub.f32 %v2091, %v2193
        %v2261 = vsub.f32 %v2093, %v2196
        %v2262 = vsub.f32 %v2095, %v2196
        %v2263 = vsub.f32 %v2099, %v2199
        %v2264 = vsub.f32 %v2101, %v2199
        %v2265 = vsub.f32 %v2103, %v2202
        %v2266 = vsub.f32 %v2105, %v2202
        %v2267 = vmul.f32 %v2203, 1.442695
        %v2268 = vpow.pop %v2267
        %v2269 = vmul.f32 %v2204, 1.442695
        %v2270 = vpow.pop %v2269
        %v2271 = vmul.f32 %v2205, 1.442695
        %v2272 = vpow.pop %v2271
        %v2273 = vmul.f32 %v2206, 1.442695
        %v2274 = vpow.pop %v2273
        %v2275 = vmul.f32 %v2207, 1.442695
        %v2276 = vpow.pop %v2275
        %v2277 = vmul.f32 %v2208, 1.442695
        %v2278 = vpow.pop %v2277
        %v2279 = vmul.f32 %v2209, 1.442695
        %v2280 = vpow.pop %v2279
        %v2281 = vmul.f32 %v2210, 1.442695
        %v2282 = vpow.pop %v2281
        %v2283 = vmul.f32 %v2211, 1.442695
        %v2284 = vpow.pop %v2283
        %v2285 = vmul.f32 %v2212, 1.442695
        %v2286 = vpow.pop %v2285
        %v2287 = vmul.f32 %v2213, 1.442695
        %v2288 = vpow.pop %v2287
        %v2289 = vmul.f32 %v2214, 1.442695
        %v2290 = vpow.pop %v2289
        %v2291 = vmul.f32 %v2215, 1.442695
        %v2292 = vpow.pop %v2291
        %v2293 = vmul.f32 %v2216, 1.442695
        %v2294 = vpow.pop %v2293
        %v2295 = vmul.f32 %v2217, 1.442695
        %v2296 = vpow.pop %v2295
        %v2297 = vmul.f32 %v2218, 1.442695
        %v2298 = vpow.pop %v2297
        %v2299 = vmul.f32 %v2219, 1.442695
        %v2300 = vpow.pop %v2299
        %v2301 = vmul.f32 %v2220, 1.442695
        %v2302 = vpow.pop %v2301
        %v2303 = vmul.f32 %v2221, 1.442695
        %v2304 = vpow.pop %v2303
        %v2305 = vmul.f32 %v2222, 1.442695
        %v2306 = vpow.pop %v2305
        %v2307 = vmul.f32 %v2223, 1.442695
        %v2308 = vpow.pop %v2307
        %v2309 = vmul.f32 %v2224, 1.442695
        %v2310 = vpow.pop %v2309
        %v2311 = vmul.f32 %v2225, 1.442695
        %v2312 = vpow.pop %v2311
        %v2313 = vmul.f32 %v2226, 1.442695
        %v2314 = vpow.pop %v2313
        %v2315 = vmul.f32 %v2227, 1.442695
        %v2316 = vpow.pop %v2315
        %v2317 = vmul.f32 %v2228, 1.442695
        %v2318 = vpow.pop %v2317
        %v2319 = vmul.f32 %v2229, 1.442695
        %v2320 = vpow.pop %v2319
        %v2321 = vmul.f32 %v2230, 1.442695
        %v2322 = vpow.pop %v2321
        %v2323 = vmul.f32 %v2231, 1.442695
        %v2324 = vpow.pop %v2323
        %v2325 = vmul.f32 %v2232, 1.442695
        %v2326 = vpow.pop %v2325
        %v2327 = vmul.f32 %v2233, 1.442695
        %v2328 = vpow.pop %v2327
        %v2329 = vmul.f32 %v2234, 1.442695
        %v2330 = vpow.pop %v2329
        %v2331 = vmul.f32 %v2235, 1.442695
        %v2332 = vpow.pop %v2331
        %v2333 = vmul.f32 %v2236, 1.442695
        %v2334 = vpow.pop %v2333
        %v2335 = vmul.f32 %v2237, 1.442695
        %v2336 = vpow.pop %v2335
        %v2337 = vmul.f32 %v2238, 1.442695
        %v2338 = vpow.pop %v2337
        %v2339 = vmul.f32 %v2239, 1.442695
        %v2340 = vpow.pop %v2339
        %v2341 = vmul.f32 %v2240, 1.442695
        %v2342 = vpow.pop %v2341
        %v2343 = vmul.f32 %v2241, 1.442695
        %v2344 = vpow.pop %v2343
        %v2345 = vmul.f32 %v2242, 1.442695
        %v2346 = vpow.pop %v2345
        %v2347 = vmul.f32 %v2243, 1.442695
        %v2348 = vpow.pop %v2347
        %v2349 = vmul.f32 %v2244, 1.442695
        %v2350 = vpow.pop %v2349
        %v2351 = vmul.f32 %v2245, 1.442695
        %v2352 = vpow.pop %v2351
        %v2353 = vmul.f32 %v2246, 1.442695
        %v2354 = vpow.pop %v2353
        %v2355 = vmul.f32 %v2247, 1.442695
        %v2356 = vpow.pop %v2355
        %v2357 = vmul.f32 %v2248, 1.442695
        %v2358 = vpow.pop %v2357
        %v2359 = vmul.f32 %v2249, 1.442695
        %v2360 = vpow.pop %v2359
        %v2361 = vmul.f32 %v2250, 1.442695
        %v2362 = vpow.pop %v2361
        %v2363 = vmul.f32 %v2251, 1.442695
        %v2364 = vpow.pop %v2363
        %v2365 = vmul.f32 %v2252, 1.442695
        %v2366 = vpow.pop %v2365
        %v2367 = vmul.f32 %v2253, 1.442695
        %v2368 = vpow.pop %v2367
        %v2369 = vmul.f32 %v2254, 1.442695
        %v2370 = vpow.pop %v2369
        %v2371 = vmul.f32 %v2255, 1.442695
        %v2372 = vpow.pop %v2371
        %v2373 = vmul.f32 %v2256, 1.442695
        %v2374 = vpow.pop %v2373
        %v2375 = vmul.f32 %v2257, 1.442695
        %v2376 = vpow.pop %v2375
        %v2377 = vmul.f32 %v2258, 1.442695
        %v2378 = vpow.pop %v2377
        %v2379 = vmul.f32 %v2259, 1.442695
        %v2380 = vpow.pop %v2379
        %v2381 = vmul.f32 %v2260, 1.442695
        %v2382 = vpow.pop %v2381
        %v2383 = vmul.f32 %v2261, 1.442695
        %v2384 = vpow.pop %v2383
        %v2385 = vmul.f32 %v2262, 1.442695
        %v2386 = vpow.pop %v2385
        %v2387 = vmul.f32 %v2263, 1.442695
        %v2388 = vpow.pop %v2387
        %v2389 = vmul.f32 %v2264, 1.442695
        %v2390 = vpow.pop %v2389
        %v2391 = vmul.f32 %v2265, 1.442695
        %v2392 = vpow.pop %v2391
        %v2393 = vmul.f32 %v2266, 1.442695
        %v2394 = vpow.pop %v2393
        %v2395 = vadd.f32 %v2268, %v2270
        %2396 = vadd.xlane.f32.xlu0 %v2395
        %v2397 = vpop.xlane.xlu0 %2396
        %v2398 = vadd.f32 %v2272, %v2274
        %2399 = vadd.xlane.f32.xlu0 %v2398
        %v2400 = vpop.xlane.xlu0 %2399
        %v2401 = vadd.f32 %v2276, %v2278
        %2402 = vadd.xlane.f32.xlu0 %v2401
        %v2403 = vpop.xlane.xlu0 %2402
        %v2404 = vadd.f32 %v2280, %v2282
        %2405 = vadd.xlane.f32.xlu0 %v2404
        %v2406 = vpop.xlane.xlu0 %2405
        %v2407 = vadd.f32 %v2284, %v2286
        %2408 = vadd.xlane.f32.xlu0 %v2407
        %v2409 = vpop.xlane.xlu0 %2408
        %v2410 = vadd.f32 %v2288, %v2290
        %2411 = vadd.xlane.f32.xlu0 %v2410
        %v2412 = vpop.xlane.xlu0 %2411
        %v2413 = vadd.f32 %v2292, %v2294
        %2414 = vadd.xlane.f32.xlu0 %v2413
        %v2415 = vpop.xlane.xlu0 %2414
        %v2416 = vadd.f32 %v2296, %v2298
        %2417 = vadd.xlane.f32.xlu0 %v2416
        %v2418 = vpop.xlane.xlu0 %2417
        %v2419 = vadd.f32 %v2300, %v2302
        %2420 = vadd.xlane.f32.xlu0 %v2419
        %v2421 = vpop.xlane.xlu0 %2420
        %v2422 = vadd.f32 %v2304, %v2306
        %2423 = vadd.xlane.f32.xlu0 %v2422
        %v2424 = vpop.xlane.xlu0 %2423
        %v2425 = vadd.f32 %v2308, %v2310
        %2426 = vadd.xlane.f32.xlu0 %v2425
        %v2427 = vpop.xlane.xlu0 %2426
        %v2428 = vadd.f32 %v2312, %v2314
        %2429 = vadd.xlane.f32.xlu0 %v2428
        %v2430 = vpop.xlane.xlu0 %2429
        %v2431 = vadd.f32 %v2316, %v2318
        %2432 = vadd.xlane.f32.xlu0 %v2431
        %v2433 = vpop.xlane.xlu0 %2432
        %v2434 = vadd.f32 %v2320, %v2322
        %2435 = vadd.xlane.f32.xlu0 %v2434
        %v2436 = vpop.xlane.xlu0 %2435
        %v2437 = vadd.f32 %v2324, %v2326
        %2438 = vadd.xlane.f32.xlu0 %v2437
        %v2439 = vpop.xlane.xlu0 %2438
        %v2440 = vadd.f32 %v2328, %v2330
        %2441 = vadd.xlane.f32.xlu0 %v2440
        %v2442 = vpop.xlane.xlu0 %2441
        %v2443 = vadd.f32 %v2332, %v2334
        %2444 = vadd.xlane.f32.xlu0 %v2443
        %v2445 = vpop.xlane.xlu0 %2444
        %v2446 = vadd.f32 %v2336, %v2338
        %2447 = vadd.xlane.f32.xlu0 %v2446
        %v2448 = vpop.xlane.xlu0 %2447
        %v2449 = vadd.f32 %v2340, %v2342
        %2450 = vadd.xlane.f32.xlu0 %v2449
        %v2451 = vpop.xlane.xlu0 %2450
        %v2452 = vadd.f32 %v2344, %v2346
        %2453 = vadd.xlane.f32.xlu0 %v2452
        %v2454 = vpop.xlane.xlu0 %2453
        %v2455 = vadd.f32 %v2348, %v2350
        %2456 = vadd.xlane.f32.xlu0 %v2455
        %v2457 = vpop.xlane.xlu0 %2456
        %v2458 = vadd.f32 %v2352, %v2354
        %2459 = vadd.xlane.f32.xlu0 %v2458
        %v2460 = vpop.xlane.xlu0 %2459
        %v2461 = vadd.f32 %v2356, %v2358
        %2462 = vadd.xlane.f32.xlu0 %v2461
        %v2463 = vpop.xlane.xlu0 %2462
        %v2464 = vadd.f32 %v2360, %v2362
        %2465 = vadd.xlane.f32.xlu0 %v2464
        %v2466 = vpop.xlane.xlu0 %2465
        %v2467 = vadd.f32 %v2364, %v2366
        %2468 = vadd.xlane.f32.xlu0 %v2467
        %v2469 = vpop.xlane.xlu0 %2468
        %v2470 = vadd.f32 %v2368, %v2370
        %2471 = vadd.xlane.f32.xlu0 %v2470
        %v2472 = vpop.xlane.xlu0 %2471
        %v2473 = vadd.f32 %v2372, %v2374
        %2474 = vadd.xlane.f32.xlu0 %v2473
        %v2475 = vpop.xlane.xlu0 %2474
        %v2476 = vadd.f32 %v2376, %v2378
        %2477 = vadd.xlane.f32.xlu0 %v2476
        %v2478 = vpop.xlane.xlu0 %2477
        %v2479 = vadd.f32 %v2380, %v2382
        %2480 = vadd.xlane.f32.xlu0 %v2479
        %v2481 = vpop.xlane.xlu0 %2480
        %v2482 = vadd.f32 %v2384, %v2386
        %2483 = vadd.xlane.f32.xlu0 %v2482
        %v2484 = vpop.xlane.xlu0 %2483
        %v2485 = vadd.f32 %v2388, %v2390
        %2486 = vadd.xlane.f32.xlu0 %v2485
        %v2487 = vpop.xlane.xlu0 %2486
        %v2488 = vadd.f32 %v2392, %v2394
        %2489 = vadd.xlane.f32.xlu0 %v2488
        %v2490 = vpop.xlane.xlu0 %2489
        %v2491 = vpack.c.bf16 %v2272, %v2268
        %v2492 = vpack.c.bf16 %v2274, %v2270
        %v2493 = vpack.c.bf16 %v2280, %v2276
        %v2494 = vpack.c.bf16 %v2282, %v2278
        %v2495 = vpack.c.bf16 %v2288, %v2284
        %v2496 = vpack.c.bf16 %v2290, %v2286
        %v2497 = vpack.c.bf16 %v2296, %v2292
        %v2498 = vpack.c.bf16 %v2298, %v2294
        %v2499 = vpack.c.bf16 %v2304, %v2300
        %v2500 = vpack.c.bf16 %v2306, %v2302
        %v2501 = vpack.c.bf16 %v2312, %v2308
        %v2502 = vpack.c.bf16 %v2314, %v2310
        %v2503 = vpack.c.bf16 %v2320, %v2316
        %v2504 = vpack.c.bf16 %v2322, %v2318
        %v2505 = vpack.c.bf16 %v2328, %v2324
        %v2506 = vpack.c.bf16 %v2330, %v2326
        %v2507 = vpack.c.bf16 %v2336, %v2332
        %v2508 = vpack.c.bf16 %v2338, %v2334
        %v2509 = vpack.c.bf16 %v2344, %v2340
        %v2510 = vpack.c.bf16 %v2346, %v2342
        %v2511 = vpack.c.bf16 %v2352, %v2348
        %v2512 = vpack.c.bf16 %v2354, %v2350
        %v2513 = vpack.c.bf16 %v2360, %v2356
        %v2514 = vpack.c.bf16 %v2362, %v2358
        %v2515 = vpack.c.bf16 %v2368, %v2364
        %v2516 = vpack.c.bf16 %v2370, %v2366
        %v2517 = vpack.c.bf16 %v2376, %v2372
        %v2518 = vpack.c.bf16 %v2378, %v2374
        %v2519 = vpack.c.bf16 %v2384, %v2380
        %v2520 = vpack.c.bf16 %v2386, %v2382
        %v2521 = vpack.c.bf16 %v2392, %v2388
        %v2522 = vpack.c.bf16 %v2394, %v2390
        %2523 = vmatprep.subr.bf16.mxu0 0
        %2524 = vmatpush1.bf16.msra.mxu0 %v1641
        %2525 = vmatprep.subr.bf16.mxu0 0
        %2526 = vmatpush1.bf16.msra.mxu0 %v1642
        %2527 = vmatprep.subr.bf16.mxu0 0
        %2528 = vmatpush1.bf16.msra.mxu0 %v1643
        %2529 = vmatprep.subr.bf16.mxu0 0
        %2530 = vmatpush1.bf16.msra.mxu0 %v1644
        %2531 = vmatprep.subr.bf16.mxu0 0
        %2532 = vmatpush1.bf16.msra.mxu0 %v1645
        %2533 = vmatprep.subr.bf16.mxu0 0
        %2534 = vmatpush1.bf16.msra.mxu0 %v1646
        %2535 = vmatprep.subr.bf16.mxu0 0
        %2536 = vmatpush1.bf16.msra.mxu0 %v1647
        %2537 = vmatprep.subr.bf16.mxu0 0
        %2538 = vmatpush1.bf16.msra.mxu0 %v1648
        %2539 = vmatprep.subr.bf16.mxu0 0
        %2540 = vmatpush1.bf16.msra.mxu0 %v1649
        %2541 = vmatprep.subr.bf16.mxu0 0
        %2542 = vmatpush1.bf16.msra.mxu0 %v1650
        %2543 = vmatprep.subr.bf16.mxu0 0
        %2544 = vmatpush1.bf16.msra.mxu0 %v1651
        %2545 = vmatprep.subr.bf16.mxu0 0
        %2546 = vmatpush1.bf16.msra.mxu0 %v1652
        %2547 = vmatprep.subr.bf16.mxu0 0
        %2548 = vmatpush1.bf16.msra.mxu0 %v1653
        %2549 = vmatprep.subr.bf16.mxu0 0
        %2550 = vmatpush1.bf16.msra.mxu0 %v1654
        %2551 = vmatprep.subr.bf16.mxu0 0
        %2552 = vmatpush1.bf16.msra.mxu0 %v1655
        %2553 = vmatprep.subr.bf16.mxu0 0
        %2554 = vmatpush1.bf16.msra.mxu0 %v1656
        %2555 = vmatprep.mubr.bf16.mxu0 %v2492
        %2556 = vmatmul.mubr.bf16.gmra.mrb[0].mxu0 %v2491
        %v2557 = vpop.f32.mrb[0].mxu0
        %v2558 = vadd.f32 0.0, %v2557
        %v2559 = vpop.f32.mrb[0].mxu0
        %v2560 = vpop.f32.mrb[0].mxu0
        %v2561 = vadd.f32 0.0, %v2560
        %v2562 = vpop.f32.mrb[0].mxu0
        %2563 = vmatprep.mubr.bf16.mxu0 %v2494
        %2564 = vmatmul.mubr.bf16.gmra.mrb[0].mxu0 %v2493
        %v2565 = vpop.f32.mrb[0].mxu0
        %v2566 = vadd.f32 0.0, %v2565
        %v2567 = vpop.f32.mrb[0].mxu0
        %v2568 = vpop.f32.mrb[0].mxu0
        %v2569 = vadd.f32 0.0, %v2568
        %v2570 = vpop.f32.mrb[0].mxu0
        %2571 = vmatprep.mubr.bf16.mxu0 %v2496
        %2572 = vmatmul.mubr.bf16.gmra.mrb[0].mxu0 %v2495
        %v2573 = vpop.f32.mrb[0].mxu0
        %v2574 = vadd.f32 0.0, %v2573
        %v2575 = vpop.f32.mrb[0].mxu0
        %v2576 = vpop.f32.mrb[0].mxu0
        %v2577 = vadd.f32 0.0, %v2576
        %v2578 = vpop.f32.mrb[0].mxu0
        %2579 = vmatprep.mubr.bf16.mxu0 %v2498
        %2580 = vmatmul.mubr.bf16.gmra.mrb[0].mxu0 %v2497
        %v2581 = vpop.f32.mrb[0].mxu0
        %v2582 = vadd.f32 0.0, %v2581
        %v2583 = vpop.f32.mrb[0].mxu0
        %v2584 = vpop.f32.mrb[0].mxu0
        %v2585 = vadd.f32 0.0, %v2584
        %v2586 = vpop.f32.mrb[0].mxu0
        %2587 = vmatprep.mubr.bf16.mxu0 %v2500
        %2588 = vmatmul.mubr.bf16.gmra.mrb[0].mxu0 %v2499
        %v2589 = vpop.f32.mrb[0].mxu0
        %v2590 = vadd.f32 0.0, %v2589
        %v2591 = vpop.f32.mrb[0].mxu0
        %v2592 = vpop.f32.mrb[0].mxu0
        %v2593 = vadd.f32 0.0, %v2592
        %v2594 = vpop.f32.mrb[0].mxu0
        %2595 = vmatprep.mubr.bf16.mxu0 %v2502
        %2596 = vmatmul.mubr.bf16.gmra.mrb[0].mxu0 %v2501
        %v2597 = vpop.f32.mrb[0].mxu0
        %v2598 = vadd.f32 0.0, %v2597
        %v2599 = vpop.f32.mrb[0].mxu0
        %v2600 = vpop.f32.mrb[0].mxu0
        %v2601 = vadd.f32 0.0, %v2600
        %v2602 = vpop.f32.mrb[0].mxu0
        %2603 = vmatprep.mubr.bf16.mxu0 %v2504
        %2604 = vmatmul.mubr.bf16.gmra.mrb[0].mxu0 %v2503
        %v2605 = vpop.f32.mrb[0].mxu0
        %v2606 = vadd.f32 0.0, %v2605
        %v2607 = vpop.f32.mrb[0].mxu0
        %v2608 = vpop.f32.mrb[0].mxu0
        %v2609 = vadd.f32 0.0, %v2608
        %v2610 = vpop.f32.mrb[0].mxu0
        %2611 = vmatprep.mubr.bf16.mxu0 %v2506
        %2612 = vmatmul.mubr.bf16.gmra.mrb[0].mxu0 %v2505
        %v2613 = vpop.f32.mrb[0].mxu0
        %v2614 = vadd.f32 0.0, %v2613
        %v2615 = vpop.f32.mrb[0].mxu0
        %v2616 = vpop.f32.mrb[0].mxu0
        %v2617 = vadd.f32 0.0, %v2616
        %v2618 = vpop.f32.mrb[0].mxu0
        %2619 = vmatprep.mubr.bf16.mxu0 %v2508
        %2620 = vmatmul.mubr.bf16.gmra.mrb[0].mxu0 %v2507
        %v2621 = vpop.f32.mrb[0].mxu0
        %v2622 = vadd.f32 0.0, %v2621
        %v2623 = vpop.f32.mrb[0].mxu0
        %v2624 = vpop.f32.mrb[0].mxu0
        %v2625 = vadd.f32 0.0, %v2624
        %v2626 = vpop.f32.mrb[0].mxu0
        %2627 = vmatprep.mubr.bf16.mxu0 %v2510
        %2628 = vmatmul.mubr.bf16.gmra.mrb[0].mxu0 %v2509
        %v2629 = vpop.f32.mrb[0].mxu0
        %v2630 = vadd.f32 0.0, %v2629
        %v2631 = vpop.f32.mrb[0].mxu0
        %v2632 = vpop.f32.mrb[0].mxu0
        %v2633 = vadd.f32 0.0, %v2632
        %v2634 = vpop.f32.mrb[0].mxu0
        %2635 = vmatprep.mubr.bf16.mxu0 %v2512
        %2636 = vmatmul.mubr.bf16.gmra.mrb[0].mxu0 %v2511
        %v2637 = vpop.f32.mrb[0].mxu0
        %v2638 = vadd.f32 0.0, %v2637
        %v2639 = vpop.f32.mrb[0].mxu0
        %v2640 = vpop.f32.mrb[0].mxu0
        %v2641 = vadd.f32 0.0, %v2640
        %v2642 = vpop.f32.mrb[0].mxu0
        %2643 = vmatprep.mubr.bf16.mxu0 %v2514
        %2644 = vmatmul.mubr.bf16.gmra.mrb[0].mxu0 %v2513
        %v2645 = vpop.f32.mrb[0].mxu0
        %v2646 = vadd.f32 0.0, %v2645
        %v2647 = vpop.f32.mrb[0].mxu0
        %v2648 = vpop.f32.mrb[0].mxu0
        %v2649 = vadd.f32 0.0, %v2648
        %v2650 = vpop.f32.mrb[0].mxu0
        %2651 = vmatprep.mubr.bf16.mxu0 %v2516
        %2652 = vmatmul.mubr.bf16.gmra.mrb[0].mxu0 %v2515
        %v2653 = vpop.f32.mrb[0].mxu0
        %v2654 = vadd.f32 0.0, %v2653
        %v2655 = vpop.f32.mrb[0].mxu0
        %v2656 = vpop.f32.mrb[0].mxu0
        %v2657 = vadd.f32 0.0, %v2656
        %v2658 = vpop.f32.mrb[0].mxu0
        %2659 = vmatprep.mubr.bf16.mxu0 %v2518
        %2660 = vmatmul.mubr.bf16.gmra.mrb[0].mxu0 %v2517
        %v2661 = vpop.f32.mrb[0].mxu0
        %v2662 = vadd.f32 0.0, %v2661
        %v2663 = vpop.f32.mrb[0].mxu0
        %v2664 = vpop.f32.mrb[0].mxu0
        %v2665 = vadd.f32 0.0, %v2664
        %v2666 = vpop.f32.mrb[0].mxu0
        %2667 = vmatprep.mubr.bf16.mxu0 %v2520
        %2668 = vmatmul.mubr.bf16.gmra.mrb[0].mxu0 %v2519
        %v2669 = vpop.f32.mrb[0].mxu0
        %v2670 = vadd.f32 0.0, %v2669
        %v2671 = vpop.f32.mrb[0].mxu0
        %v2672 = vpop.f32.mrb[0].mxu0
        %v2673 = vadd.f32 0.0, %v2672
        %v2674 = vpop.f32.mrb[0].mxu0
        %2675 = vmatprep.mubr.bf16.mxu0 %v2522
        %2676 = vmatmul.mubr.bf16.gmra.mrb[0].mxu0 %v2521
        %v2677 = vpop.f32.mrb[0].mxu0
        %v2678 = vadd.f32 0.0, %v2677
        %v2679 = vpop.f32.mrb[0].mxu0
        %v2680 = vpop.f32.mrb[0].mxu0
        %v2681 = vadd.f32 0.0, %v2680
        %v2682 = vpop.f32.mrb[0].mxu0
        %2683 = vdwg.mxu0
        %v2684 = vrcp.pop %v2397
        %v2685 = vrcp.pop %v2400
        %v2686 = vrcp.pop %v2403
        %v2687 = vrcp.pop %v2406
        %v2688 = vrcp.pop %v2409
        %v2689 = vrcp.pop %v2412
        %v2690 = vrcp.pop %v2415
        %v2691 = vrcp.pop %v2418
        %v2692 = vrcp.pop %v2421
        %v2693 = vrcp.pop %v2424
        %v2694 = vrcp.pop %v2427
        %v2695 = vrcp.pop %v2430
        %v2696 = vrcp.pop %v2433
        %v2697 = vrcp.pop %v2436
        %v2698 = vrcp.pop %v2439
        %v2699 = vrcp.pop %v2442
        %v2700 = vrcp.pop %v2445
        %v2701 = vrcp.pop %v2448
        %v2702 = vrcp.pop %v2451
        %v2703 = vrcp.pop %v2454
        %v2704 = vrcp.pop %v2457
        %v2705 = vrcp.pop %v2460
        %v2706 = vrcp.pop %v2463
        %v2707 = vrcp.pop %v2466
        %v2708 = vrcp.pop %v2469
        %v2709 = vrcp.pop %v2472
        %v2710 = vrcp.pop %v2475
        %v2711 = vrcp.pop %v2478
        %v2712 = vrcp.pop %v2481
        %v2713 = vrcp.pop %v2484
        %v2714 = vrcp.pop %v2487
        %v2715 = vrcp.pop %v2490
        %v2716 = vmul.f32 %v2558, %v2684
        %v2717 = vmul.f32 %v2561, %v2685
        %v2718 = vmul.f32 %v2566, %v2686
        %v2719 = vmul.f32 %v2569, %v2687
        %v2720 = vmul.f32 %v2574, %v2688
        %v2721 = vmul.f32 %v2577, %v2689
        %v2722 = vmul.f32 %v2582, %v2690
        %v2723 = vmul.f32 %v2585, %v2691
        %v2724 = vmul.f32 %v2590, %v2692
        %v2725 = vmul.f32 %v2593, %v2693
        %v2726 = vmul.f32 %v2598, %v2694
        %v2727 = vmul.f32 %v2601, %v2695
        %v2728 = vmul.f32 %v2606, %v2696
        %v2729 = vmul.f32 %v2609, %v2697
        %v2730 = vmul.f32 %v2614, %v2698
        %v2731 = vmul.f32 %v2617, %v2699
        %v2732 = vmul.f32 %v2622, %v2700
        %v2733 = vmul.f32 %v2625, %v2701
        %v2734 = vmul.f32 %v2630, %v2702
        %v2735 = vmul.f32 %v2633, %v2703
        %v2736 = vmul.f32 %v2638, %v2704
        %v2737 = vmul.f32 %v2641, %v2705
        %v2738 = vmul.f32 %v2646, %v2706
        %v2739 = vmul.f32 %v2649, %v2707
        %v2740 = vmul.f32 %v2654, %v2708
        %v2741 = vmul.f32 %v2657, %v2709
        %v2742 = vmul.f32 %v2662, %v2710
        %v2743 = vmul.f32 %v2665, %v2711
        %v2744 = vmul.f32 %v2670, %v2712
        %v2745 = vmul.f32 %v2673, %v2713
        %v2746 = vmul.f32 %v2678, %v2714
        %v2747 = vmul.f32 %v2681, %v2715
        %v2748 = vpack.c.bf16 %v2717, %v2716
        %v2749 = vpack.c.bf16 %v2719, %v2718
        %v2750 = vpack.c.bf16 %v2721, %v2720
        %v2751 = vpack.c.bf16 %v2723, %v2722
        %v2752 = vpack.c.bf16 %v2725, %v2724
        %v2753 = vpack.c.bf16 %v2727, %v2726
        %v2754 = vpack.c.bf16 %v2729, %v2728
        %v2755 = vpack.c.bf16 %v2731, %v2730
        %v2756 = vpack.c.bf16 %v2733, %v2732
        %v2757 = vpack.c.bf16 %v2735, %v2734
        %v2758 = vpack.c.bf16 %v2737, %v2736
        %v2759 = vpack.c.bf16 %v2739, %v2738
        %v2760 = vpack.c.bf16 %v2741, %v2740
        %v2761 = vpack.c.bf16 %v2743, %v2742
        %v2762 = vpack.c.bf16 %v2745, %v2744
        %v2763 = vpack.c.bf16 %v2747, %v2746
        %v2764 = vld [vmem:[%s6] sm:$0xf]
        %v2765 = vld [vmem:[%s6 + $0x4] sm:$0xf]
        %v2766 = vld [vmem:[%s6 + $0x8] sm:$0xf]
        %v2767 = vld [vmem:[%s6 + $0xc] sm:$0xf]
        %v2768 = vld [vmem:[%s6 + $0x10] sm:$0xf]
        %v2769 = vld [vmem:[%s6 + $0x14] sm:$0xf]
        %v2770 = vld [vmem:[%s6 + $0x18] sm:$0xf]
        %v2771 = vld [vmem:[%s6 + $0x1c] sm:$0xf]
        %v2772 = vld [vmem:[%s6 + $0x20] sm:$0xf]
        %v2773 = vld [vmem:[%s6 + $0x24] sm:$0xf]
        %v2774 = vld [vmem:[%s6 + $0x28] sm:$0xf]
        %v2775 = vld [vmem:[%s6 + $0x2c] sm:$0xf]
        %v2776 = vld [vmem:[%s6 + $0x30] sm:$0xf]
        %v2777 = vld [vmem:[%s6 + $0x34] sm:$0xf]
        %v2778 = vld [vmem:[%s6 + $0x38] sm:$0xf]
        %v2779 = vld [vmem:[%s6 + $0x3c] sm:$0xf]
        %2780 = vset.pattern.permute.xlu0 3
        %2781 = vperm.xlu0 %2780, %v330
        %v2782 = vpop.permute.xlu0 %2781
        %2784 = vset.pattern.permute.xlu0 3
        %2785 = vperm.xlu0 %2784, %v331
        %v2786 = vpop.permute.xlu0 %2785
        %2788 = vset.pattern.permute.xlu0 3
        %2789 = vperm.xlu0 %2788, %v332
        %v2790 = vpop.permute.xlu0 %2789
        %2792 = vset.pattern.permute.xlu0 3
        %2793 = vperm.xlu0 %2792, %v333
        %v2794 = vpop.permute.xlu0 %2793
        %2796 = vset.pattern.permute.xlu0 3
        %2797 = vperm.xlu0 %2796, %v334
        %v2798 = vpop.permute.xlu0 %2797
        %2800 = vset.pattern.permute.xlu0 3
        %2801 = vperm.xlu0 %2800, %v335
        %v2802 = vpop.permute.xlu0 %2801
        %2804 = vset.pattern.permute.xlu0 3
        %2805 = vperm.xlu0 %2804, %v336
        %v2806 = vpop.permute.xlu0 %2805
        %2808 = vset.pattern.permute.xlu0 3
        %2809 = vperm.xlu0 %2808, %v337
        %v2810 = vpop.permute.xlu0 %2809
        %2812 = vset.pattern.permute.xlu0 3
        %2813 = vperm.xlu0 %2812, %v338
        %v2814 = vpop.permute.xlu0 %2813
        %2816 = vset.pattern.permute.xlu0 3
        %2817 = vperm.xlu0 %2816, %v339
        %v2818 = vpop.permute.xlu0 %2817
        %2820 = vset.pattern.permute.xlu0 3
        %2821 = vperm.xlu0 %2820, %v340
        %v2822 = vpop.permute.xlu0 %2821
        %2824 = vset.pattern.permute.xlu0 3
        %2825 = vperm.xlu0 %2824, %v341
        %v2826 = vpop.permute.xlu0 %2825
        %2828 = vset.pattern.permute.xlu0 3
        %2829 = vperm.xlu0 %2828, %v342
        %v2830 = vpop.permute.xlu0 %2829
        %2832 = vset.pattern.permute.xlu0 3
        %2833 = vperm.xlu0 %2832, %v343
        %v2834 = vpop.permute.xlu0 %2833
        %2836 = vset.pattern.permute.xlu0 3
        %2837 = vperm.xlu0 %2836, %v344
        %v2838 = vpop.permute.xlu0 %2837
        %2840 = vset.pattern.permute.xlu0 3
        %2841 = vperm.xlu0 %2840, %v345
        %v2842 = vpop.permute.xlu0 %2841
        %v2860 = vunpack.c.l.b16 %v2764
        %v2861 = vunpack.c.l.b16 %v2765
        %v2862 = vunpack.c.l.b16 %v2766
        %v2863 = vunpack.c.l.b16 %v2767
        %v2864 = vunpack.c.l.b16 %v2768
        %v2865 = vunpack.c.l.b16 %v2769
        %v2866 = vunpack.c.l.b16 %v2770
        %v2867 = vunpack.c.l.b16 %v2771
        %v2868 = vunpack.c.l.b16 %v2772
        %v2869 = vunpack.c.l.b16 %v2773
        %v2870 = vunpack.c.l.b16 %v2774
        %v2871 = vunpack.c.l.b16 %v2775
        %v2872 = vunpack.c.l.b16 %v2776
        %v2873 = vunpack.c.l.b16 %v2777
        %v2874 = vunpack.c.l.b16 %v2778
        %v2875 = vunpack.c.l.b16 %v2779
        %v2876 = vpack.c.b16 %v2861, %v2860
        %v2877 = vpack.c.b16 %v2863, %v2862
        %v2878 = vpack.c.b16 %v2865, %v2864
        %v2879 = vpack.c.b16 %v2867, %v2866
        %v2880 = vpack.c.b16 %v2869, %v2868
        %v2881 = vpack.c.b16 %v2871, %v2870
        %v2882 = vpack.c.b16 %v2873, %v2872
        %v2883 = vpack.c.b16 %v2875, %v2874
        %2892 = vmatprep.subr.bf16.mxu0 0
        %2893 = vmatpush1.bf16.xpose.msra.mxu0 %v2748
        %2894 = vmatprep.subr.bf16.mxu0 0
        %2895 = vmatpush1.bf16.xpose.msra.mxu0 %v2749
        %2896 = vmatprep.subr.bf16.mxu0 0
        %2897 = vmatpush1.bf16.xpose.msra.mxu0 %v2750
        %2898 = vmatprep.subr.bf16.mxu0 0
        %2899 = vmatpush1.bf16.xpose.msra.mxu0 %v2751
        %2900 = vmatprep.subr.bf16.mxu0 0
        %2901 = vmatpush1.bf16.xpose.msra.mxu0 %v2752
        %2902 = vmatprep.subr.bf16.mxu0 0
        %2903 = vmatpush1.bf16.xpose.msra.mxu0 %v2753
        %2904 = vmatprep.subr.bf16.mxu0 0
        %2905 = vmatpush1.bf16.xpose.msra.mxu0 %v2754
        %2906 = vmatprep.subr.bf16.mxu0 0
        %2907 = vmatpush1.bf16.xpose.msra.mxu0 %v2755
        %2908 = vmatprep.subr.bf16.mxu0 0
        %2909 = vmatpush1.bf16.xpose.msra.mxu0 %v2756
        %2910 = vmatprep.subr.bf16.mxu0 0
        %2911 = vmatpush1.bf16.xpose.msra.mxu0 %v2757
        %2912 = vmatprep.subr.bf16.mxu0 0
        %2913 = vmatpush1.bf16.xpose.msra.mxu0 %v2758
        %2914 = vmatprep.subr.bf16.mxu0 0
        %2915 = vmatpush1.bf16.xpose.msra.mxu0 %v2759
        %2916 = vmatprep.subr.bf16.mxu0 0
        %2917 = vmatpush1.bf16.xpose.msra.mxu0 %v2760
        %2918 = vmatprep.subr.bf16.mxu0 0
        %2919 = vmatpush1.bf16.xpose.msra.mxu0 %v2761
        %2920 = vmatprep.subr.bf16.mxu0 0
        %2921 = vmatpush1.bf16.xpose.msra.mxu0 %v2762
        %2922 = vmatprep.subr.bf16.mxu0 0
        %2923 = vmatpush1.bf16.xpose.msra.mxu0 %v2763
        %2924 = vmatprep.mubr.bf16.mxu0 0
        %2925 = vmatmul.mubr.bf16.gmra.mrb[0].mxu0 %v2876
        %v2926 = vpop.f32.mrb[0].mxu0
        %v2927 = vadd.f32 %v2782, %v2926
        %v2928 = vpop.f32.mrb[0].mxu0
        %v2929 = vadd.f32 %v2782, %v2928
        %v2930 = vpop.f32.mrb[0].mxu0
        %v2931 = vadd.f32 %v2786, %v2930
        %v2932 = vpop.f32.mrb[0].mxu0
        %v2933 = vadd.f32 %v2786, %v2932
        %2934 = vmatprep.mubr.bf16.mxu0 0
        %2935 = vmatmul.mubr.bf16.gmra.mrb[0].mxu0 %v2877
        %v2936 = vpop.f32.mrb[0].mxu0
        %v2937 = vadd.f32 %v2790, %v2936
        %v2938 = vpop.f32.mrb[0].mxu0
        %v2939 = vadd.f32 %v2790, %v2938
        %v2940 = vpop.f32.mrb[0].mxu0
        %v2941 = vadd.f32 %v2794, %v2940
        %v2942 = vpop.f32.mrb[0].mxu0
        %v2943 = vadd.f32 %v2794, %v2942
        %2944 = vmatprep.mubr.bf16.mxu0 0
        %2945 = vmatmul.mubr.bf16.gmra.mrb[0].mxu0 %v2878
        %v2946 = vpop.f32.mrb[0].mxu0
        %v2947 = vadd.f32 %v2798, %v2946
        %v2948 = vpop.f32.mrb[0].mxu0
        %v2949 = vadd.f32 %v2798, %v2948
        %v2950 = vpop.f32.mrb[0].mxu0
        %v2951 = vadd.f32 %v2802, %v2950
        %v2952 = vpop.f32.mrb[0].mxu0
        %v2953 = vadd.f32 %v2802, %v2952
        %2954 = vmatprep.mubr.bf16.mxu0 0
        %2955 = vmatmul.mubr.bf16.gmra.mrb[0].mxu0 %v2879
        %v2956 = vpop.f32.mrb[0].mxu0
        %v2957 = vadd.f32 %v2806, %v2956
        %v2958 = vpop.f32.mrb[0].mxu0
        %v2959 = vadd.f32 %v2806, %v2958
        %v2960 = vpop.f32.mrb[0].mxu0
        %v2961 = vadd.f32 %v2810, %v2960
        %v2962 = vpop.f32.mrb[0].mxu0
        %v2963 = vadd.f32 %v2810, %v2962
        %2964 = vmatprep.mubr.bf16.mxu0 0
        %2965 = vmatmul.mubr.bf16.gmra.mrb[0].mxu0 %v2880
        %v2966 = vpop.f32.mrb[0].mxu0
        %v2967 = vadd.f32 %v2814, %v2966
        %v2968 = vpop.f32.mrb[0].mxu0
        %v2969 = vadd.f32 %v2814, %v2968
        %v2970 = vpop.f32.mrb[0].mxu0
        %v2971 = vadd.f32 %v2818, %v2970
        %v2972 = vpop.f32.mrb[0].mxu0
        %v2973 = vadd.f32 %v2818, %v2972
        %2974 = vmatprep.mubr.bf16.mxu0 0
        %2975 = vmatmul.mubr.bf16.gmra.mrb[0].mxu0 %v2881
        %v2976 = vpop.f32.mrb[0].mxu0
        %v2977 = vadd.f32 %v2822, %v2976
        %v2978 = vpop.f32.mrb[0].mxu0
        %v2979 = vadd.f32 %v2822, %v2978
        %v2980 = vpop.f32.mrb[0].mxu0
        %v2981 = vadd.f32 %v2826, %v2980
        %v2982 = vpop.f32.mrb[0].mxu0
        %v2983 = vadd.f32 %v2826, %v2982
        %2984 = vmatprep.mubr.bf16.mxu0 0
        %2985 = vmatmul.mubr.bf16.gmra.mrb[0].mxu0 %v2882
        %v2986 = vpop.f32.mrb[0].mxu0
        %v2987 = vadd.f32 %v2830, %v2986
        %v2988 = vpop.f32.mrb[0].mxu0
        %v2989 = vadd.f32 %v2830, %v2988
        %v2990 = vpop.f32.mrb[0].mxu0
        %v2991 = vadd.f32 %v2834, %v2990
        %v2992 = vpop.f32.mrb[0].mxu0
        %v2993 = vadd.f32 %v2834, %v2992
        %2994 = vmatprep.mubr.bf16.mxu0 0
        %2995 = vmatmul.mubr.bf16.gmra.mrb[0].mxu0 %v2883
        %v2996 = vpop.f32.mrb[0].mxu0
        %v2997 = vadd.f32 %v2838, %v2996
        %v2998 = vpop.f32.mrb[0].mxu0
        %v2999 = vadd.f32 %v2838, %v2998
        %v3000 = vpop.f32.mrb[0].mxu0
        %v3001 = vadd.f32 %v2842, %v3000
        %v3002 = vpop.f32.mrb[0].mxu0
        %v3003 = vadd.f32 %v2842, %v3002
        %3004 = vdwg.mxu0
        %v3005 = vadd.f32 %v298, %v2927
        %v3006 = vadd.f32 %v299, %v2929
        %v3007 = vadd.f32 %v300, %v2931
        %v3008 = vadd.f32 %v301, %v2933
        %v3009 = vadd.f32 %v302, %v2937
        %v3010 = vadd.f32 %v303, %v2939
        %v3011 = vadd.f32 %v304, %v2941
        %v3012 = vadd.f32 %v305, %v2943
        %v3013 = vadd.f32 %v306, %v2947
        %v3014 = vadd.f32 %v307, %v2949
        %v3015 = vadd.f32 %v308, %v2951
        %v3016 = vadd.f32 %v309, %v2953
        %v3017 = vadd.f32 %v310, %v2957
        %v3018 = vadd.f32 %v311, %v2959
        %v3019 = vadd.f32 %v312, %v2961
        %v3020 = vadd.f32 %v313, %v2963
        %v3021 = vadd.f32 %v314, %v2967
        %v3022 = vadd.f32 %v315, %v2969
        %v3023 = vadd.f32 %v316, %v2971
        %v3024 = vadd.f32 %v317, %v2973
        %v3025 = vadd.f32 %v318, %v2977
        %v3026 = vadd.f32 %v319, %v2979
        %v3027 = vadd.f32 %v320, %v2981
        %v3028 = vadd.f32 %v321, %v2983
        %v3029 = vadd.f32 %v322, %v2987
        %v3030 = vadd.f32 %v323, %v2989
        %v3031 = vadd.f32 %v324, %v2991
        %v3032 = vadd.f32 %v325, %v2993
        %v3033 = vadd.f32 %v326, %v2997
        %v3034 = vadd.f32 %v327, %v2999
        %v3035 = vadd.f32 %v328, %v3001
        %v3036 = vadd.f32 %v329, %v3003
        %3037 = vst [vmem:[%s296] sm:$0xff] %v3005
        %3038 = vst [vmem:[%s296 + $0x8] sm:$0xff] %v3006
        %3039 = vst [vmem:[%s296 + $0x10] sm:$0xff] %v3007
        %3040 = vst [vmem:[%s296 + $0x18] sm:$0xff] %v3008
        %3041 = vst [vmem:[%s296 + $0x20] sm:$0xff] %v3009
        %3042 = vst [vmem:[%s296 + $0x28] sm:$0xff] %v3010
        %3043 = vst [vmem:[%s296 + $0x30] sm:$0xff] %v3011
        %3044 = vst [vmem:[%s296 + $0x38] sm:$0xff] %v3012
        %3045 = vst [vmem:[%s296 + $0x40] sm:$0xff] %v3013
        %3046 = vst [vmem:[%s296 + $0x48] sm:$0xff] %v3014
        %3047 = vst [vmem:[%s296 + $0x50] sm:$0xff] %v3015
        %3048 = vst [vmem:[%s296 + $0x58] sm:$0xff] %v3016
        %3049 = vst [vmem:[%s296 + $0x60] sm:$0xff] %v3017
        %3050 = vst [vmem:[%s296 + $0x68] sm:$0xff] %v3018
        %3051 = vst [vmem:[%s296 + $0x70] sm:$0xff] %v3019
        %3052 = vst [vmem:[%s296 + $0x78] sm:$0xff] %v3020
        %3053 = vst [vmem:[%s296 + $0x80] sm:$0xff] %v3021
        %3054 = vst [vmem:[%s296 + $0x88] sm:$0xff] %v3022
        %3055 = vst [vmem:[%s296 + $0x90] sm:$0xff] %v3023
        %3056 = vst [vmem:[%s296 + $0x98] sm:$0xff] %v3024
        %3057 = vst [vmem:[%s296 + $0xa0] sm:$0xff] %v3025
        %3058 = vst [vmem:[%s296 + $0xa8] sm:$0xff] %v3026
        %3059 = vst [vmem:[%s296 + $0xb0] sm:$0xff] %v3027
        %3060 = vst [vmem:[%s296 + $0xb8] sm:$0xff] %v3028
        %3061 = vst [vmem:[%s296 + $0xc0] sm:$0xff] %v3029
        %3062 = vst [vmem:[%s296 + $0xc8] sm:$0xff] %v3030
        %3063 = vst [vmem:[%s296 + $0xd0] sm:$0xff] %v3031
        %3064 = vst [vmem:[%s296 + $0xd8] sm:$0xff] %v3032
        %3065 = vst [vmem:[%s296 + $0xe0] sm:$0xff] %v3033
        %3066 = vst [vmem:[%s296 + $0xe8] sm:$0xff] %v3034
        %3067 = vst [vmem:[%s296 + $0xf0] sm:$0xff] %v3035
        %3068 = vst [vmem:[%s296 + $0xf8] sm:$0xff] %v3036
        %s3069 = sand.u32 %s184, 1
        %s3070 = scalar_lea.sflag [#allocation4], %s3069
        %s3071 = sand.u32 %s184, 1
        %s3072 = smul.addr %s3071, 256
        %s3073 = scalar_lea.vmem [#allocation5], %s3072
        // Predicated region
        $region53: #{tpu_custom_call.1} parent=47 // pred_check
          %p3074 = pneg %p194
        $region54: #{tpu_custom_call.1} parent=47 // pred_check_branch
          %3076 = sbr.rel (%p3074) target = $region56
        $region55: #{tpu_custom_call.1} parent=47 // pred_region
          %s3078 = ssub.s32 4096, 4096
          %3079 = vsyncadd %s3070, %s3078
          %s3080 = smul.addr %s24, 32
          %s3081 = smul.addr %s3080, 128
          %s3082 = scalar_lea.hbm %s7, %s3081
          %s3083 = sshll.u32 %s3073, 4
          %s3084 = int_to_ptr.vmem [resolvable:$true] %s3083
          %3089 = dma.vmem_to_hbm [thread:$0]  %s3084, 4096, %s3082, %s3070, 256, 256, 16
        $region56: #{tpu_custom_call.1} parent=47 // pred_fallthru
          _
      $region48: #{tpu_custom_call.1} parent=5 // pred_fallthru
        _
      %p3090 = scmp.le.s32.totalorder 2, %s19
      // Predicated region
      $region57: #{tpu_custom_call.1} parent=5 // pred_check
        %p3091 = pneg %p3090
      $region58: #{tpu_custom_call.1} parent=5 // pred_check_branch
        %3093 = sbr.rel (%p3091) target = $region60
      $region59: #{tpu_custom_call.1} parent=5 // pred_region
        %s3094 = ssub.s32 %s19, 2
        // Predicated region
        $region61: #{tpu_custom_call.1} parent=59 // pred_check
          %p3095 = pneg %p200
        $region62: #{tpu_custom_call.1} parent=59 // pred_check_branch
          %3097 = sbr.rel (%p3095) target = $region64
        $region63: #{tpu_custom_call.1} parent=59 // pred_region
          %s3098 = sand.u32 %s185, 1
          %s3099 = scalar_lea.sflag [#allocation4], %s3098
          %s3100 = sand.u32 %s185, 1
          %s3101 = smul.addr %s3100, 256
          %s3102 = scalar_lea.vmem [#allocation5], %s3101
          %3103 = dma.done %s3099, 4096
        $region64: #{tpu_custom_call.1} parent=59 // pred_fallthru
          _
      $region60: #{tpu_custom_call.1} parent=5 // pred_fallthru
        _
    $region6: #{tpu_custom_call.1} parent=1 // loop_footer
      %s23 = sadd.s32 1, %s19
    $region7: #{tpu_custom_call.1} parent=1 // loop_footer_branch
      %18 = sbr.rel target = $region3
    $region8: #{tpu_custom_call.1} parent=1 // loop_exit
      _
    %3104 = vsyncpa [#allocation3], 1
    %s3105 = scalar_lea.sflag [#allocation3], 1
    %3106 = vsyncpa %s3105, 1
    %3107 = vsyncpa [#allocation4], 1
    %s3108 = scalar_lea.sflag [#allocation4], 1
    %3109 = vsyncpa %s3108, 1

</llo_original>
